<compile_context>
chip_gen: v5e
topology: v5e:2x2
jax: 0.10.0
libtpu: 0.0.40
codegen_flags: <defaults>
</compile_context>

<pallas_src>
import functools

import jax
import jax.numpy as jnp
import numpy as np
from jax import lax
from jax.experimental import pallas as pl
from jax.experimental.pallas import tpu as pltpu

MXU_DTYPE = jnp.bfloat16   # MXU operand dtype (f32 accumulation everywhere)
LANE = 128
SUBLANE = 8


def _round_up(x, m):
    return (x + m - 1) // m * m


def _pack_gates(w, H, Hp, dtype):
    """PyTorch gate order (i, f, g, o) -> kernel order (i, f, o, g), each gate
    block zero-padded from H to Hp columns. Works for [.., 4H] weights/biases."""
    i, f, g, o = jnp.split(w, 4, axis=-1)

    def pad_last(p):
        if Hp == H:
            return p
        cfg = [(0, 0)] * (p.ndim - 1) + [(0, Hp - H)]
        return jnp.pad(p, cfg)

    return jnp.concatenate(
        [pad_last(i), pad_last(f), pad_last(o), pad_last(g)], axis=-1
    ).astype(dtype)


# --------------------------- fused LSTM + FC kernel ---------------------------
def _make_fused_lstm_kernel(num_layers, Tc, Bp, Hp):
    """Per time-chunk kernel.
    in  : x2d chunk [Tc*Bp, D_in] (bf16), per layer (w_ih, w_hh, b), w_fc, b_fc
    out : logits chunk [Tc*Bp, Dp_out]
    scratch: gx [Tc*Bp, 4Hp] f32, hs [Tc*Bp, Hp] bf16,
             h_state [L, Bp, Hp] f32, c_state [L, Bp, Hp] f32 (persist across chunks)
    """
    n_in = 3 + 3 * num_layers
    # Small Tc: full unroll for LLO visibility; cap to bound vreg pressure.
    unroll = Tc if Tc <= 8 else 4

    def kernel(*refs):
        x_ref = refs[0]
        layer_refs = refs[1:1 + 3 * num_layers]
        w_fc_ref = refs[1 + 3 * num_layers]
        b_fc_ref = refs[2 + 3 * num_layers]
        out_ref = refs[n_in]
        gx_scr, hs_scr, h_state, c_state = refs[n_in + 1:n_in + 5]

        # Zero the carried recurrent state on the first time-chunk only.
        @pl.when(pl.program_id(0) == 0)
        def _init():
            h_state[...] = jnp.zeros_like(h_state)
            c_state[...] = jnp.zeros_like(c_state)

        for layer in range(num_layers):
            w_ih_ref = layer_refs[3 * layer + 0]
            w_hh_ref = layer_refs[3 * layer + 1]
            b_ref = layer_refs[3 * layer + 2]

            inp = x_ref[...] if layer == 0 else hs_scr[...]
            # Hoisted input projection (+ bias) for ALL Tc steps of this chunk:
            # one bulk MXU matmul off the serial recurrence path.
            gx_scr[...] = (
                jnp.dot(inp, w_ih_ref[...], preferred_element_type=jnp.float32)
                + b_ref[...]
            )

            def step(t, carry):
                h, c = carry                      # h: bf16 MXU operand, c: f32
                row = pl.multiple_of(t * Bp, Bp)  # sublane-aligned start
                gates = gx_scr[pl.ds(row, Bp), :] + jnp.dot(
                    h, w_hh_ref[...], preferred_element_type=jnp.float32)
                # Gate columns pre-permuted to (i, f, o, g): one sigmoid over a
                # contiguous [Bp, 3Hp] slab + one tanh over [Bp, Hp].
                sig = jax.nn.sigmoid(gates[:, :3 * Hp])
                i_g = sig[:, 0 * Hp:1 * Hp]
                f_g = sig[:, 1 * Hp:2 * Hp]
                o_g = sig[:, 2 * Hp:3 * Hp]
                g_g = jnp.tanh(gates[:, 3 * Hp:])
                c_new = f_g * c + i_g * g_g
                h_new = (o_g * jnp.tanh(c_new)).astype(hs_scr.dtype)
                hs_scr[pl.ds(row, Bp), :] = h_new     # lane-dense (Hp % 128 == 0)
                return (h_new, c_new)

            h0 = h_state[layer].astype(hs_scr.dtype)
            c0 = c_state[layer]
            h_fin, c_fin = lax.fori_loop(0, Tc, step, (h0, c0), unroll=unroll)
            h_state[layer] = h_fin.astype(jnp.float32)
            c_state[layer] = c_fin

        # Fused Linear epilogue over this chunk's Tc*Bp rows; Dp_out is a
        # multiple of 128 so the store is a lane-dense unmasked vst.
        out_ref[...] = (
            jnp.dot(hs_scr[...], w_fc_ref[...], preferred_element_type=jnp.float32)
            + b_fc_ref[...]
        ).astype(out_ref.dtype)

    return kernel


# ------------------------------- Full model -----------------------------------
@functools.partial(jax.jit, static_argnames=("time_chunk",))
def lstm_model_forward(x, params, *, time_chunk=8):
    """x: [B, T, input_dim] -> logits [B, T, input_dim] (batch_first)."""
    B, T, D_in = x.shape
    H = params["layers"][0][1].shape[0]
    L = len(params["layers"])
    D_out = params["w_fc"].shape[1]

    Bp = _round_up(B, SUBLANE)       # pad batch to full sublane tiles
    Hp = _round_up(H, LANE)          # lane-pad hidden width
    Dp_out = _round_up(D_out, LANE)  # lane-pad FC output width
    Tc = min(time_chunk, T)
    num_chunks = pl.cdiv(T, Tc)
    Tp = num_chunks * Tc

    # Time-major input, padded batch/time, bf16 MXU operand, flattened rows.
    x_tm = jnp.transpose(x, (1, 0, 2)).astype(MXU_DTYPE)
    x_tm = jnp.pad(x_tm, ((0, Tp - T), (0, Bp - B), (0, 0)))
    x2d = x_tm.reshape(Tp * Bp, D_in)

    # Pack parameters: gate permutation + lane padding + bf16 weights.
    flat = [x2d]
    in_specs = [pl.BlockSpec((Tc * Bp, D_in), lambda t: (t, 0))]
    for li, (w_ih, w_hh, b) in enumerate(params["layers"]):
        w_ih_p = _pack_gates(w_ih, H, Hp, MXU_DTYPE)
        if li > 0 and Hp != H:
            w_ih_p = jnp.pad(w_ih_p, ((0, Hp - H), (0, 0)))
        w_hh_p = _pack_gates(w_hh, H, Hp, MXU_DTYPE)
        if Hp != H:
            w_hh_p = jnp.pad(w_hh_p, ((0, Hp - H), (0, 0)))
        b_p = _pack_gates(b, H, Hp, jnp.float32)
        flat += [w_ih_p, w_hh_p, b_p]
        d_l = D_in if li == 0 else Hp
        in_specs += [
            pl.BlockSpec((d_l, 4 * Hp), lambda t: (0, 0)),
            pl.BlockSpec((Hp, 4 * Hp), lambda t: (0, 0)),
            pl.BlockSpec((1, 4 * Hp), lambda t: (0, 0)),
        ]
    w_fc_p = jnp.pad(params["w_fc"],
                     ((0, Hp - H), (0, Dp_out - D_out))).astype(MXU_DTYPE)
    b_fc_p = jnp.pad(params["b_fc"],
                     ((0, 0), (0, Dp_out - D_out))).astype(jnp.float32)
    flat += [w_fc_p, b_fc_p]
    in_specs += [
        pl.BlockSpec((Hp, Dp_out), lambda t: (0, 0)),
        pl.BlockSpec((1, Dp_out), lambda t: (0, 0)),
    ]
    out_specs = pl.BlockSpec((Tc * Bp, Dp_out), lambda t: (t, 0))

    scratch_shapes = [
        pltpu.VMEM((Tc * Bp, 4 * Hp), jnp.float32),   # hoisted gates_x chunk
        pltpu.VMEM((Tc * Bp, Hp), MXU_DTYPE),         # per-layer hidden seq chunk
        pltpu.VMEM((L, Bp, Hp), jnp.float32),         # carried h (across chunks)
        pltpu.VMEM((L, Bp, Hp), jnp.float32),         # carried c (across chunks)
    ]

    # Explicit scoped-VMEM budget from the real footprint (inputs/outputs are
    # double-buffered by the pipeline), with margin, clamped to v7x physical.
    def _nbytes(shape, dtype):
        return int(np.prod(shape)) * jnp.dtype(dtype).itemsize

    vmem_bytes = 2 * _nbytes((Tc * Bp, D_in), MXU_DTYPE)
    vmem_bytes += 2 * _nbytes((Tc * Bp, Dp_out), x.dtype)
    for a in flat[1:]:
        vmem_bytes += 2 * a.size * a.dtype.itemsize
    vmem_bytes += _nbytes((Tc * Bp, 4 * Hp), jnp.float32)
    vmem_bytes += _nbytes((Tc * Bp, Hp), MXU_DTYPE)
    vmem_bytes += 2 * _nbytes((L, Bp, Hp), jnp.float32)
    vmem_limit = int(min(max(int(vmem_bytes * 1.5) + (2 << 20), 8 << 20), 64 << 20))

    out2d = pl.pallas_call(
        _make_fused_lstm_kernel(L, Tc, Bp, Hp),
        out_shape=jax.ShapeDtypeStruct((Tp * Bp, Dp_out), x.dtype),
        grid_spec=pltpu.PrefetchScalarGridSpec(
            num_scalar_prefetch=0,
            grid=(num_chunks,),
            in_specs=in_specs,
            out_specs=out_specs,
            scratch_shapes=scratch_shapes,
        ),
        compiler_params=pltpu.CompilerParams(
            dimension_semantics=("arbitrary",),
            vmem_limit_bytes=vmem_limit,
        ),
    )(*flat)

    out = out2d.reshape(Tp, Bp, Dp_out)[:T, :B, :D_out]
    return jnp.transpose(out, (1, 0, 2))


def init_params(key, input_dim, hidden_dim, num_layers):
    """PyTorch-style uniform(-1/sqrt(H), 1/sqrt(H)) init, deterministic.
    Weights stored transposed vs PyTorch: w_ih [d_in, 4H], w_hh [H, 4H],
    PyTorch gate order (i, f, g, o); bias = b_ih + b_hh."""
    bound = 1.0 / np.sqrt(hidden_dim)
    layers = []
    for layer in range(num_layers):
        d_in = input_dim if layer == 0 else hidden_dim
        key, k1, k2, k3, k4 = jax.random.split(key, 5)
        w_ih = jax.random.uniform(k1, (d_in, 4 * hidden_dim), jnp.float32, -bound, bound)
        w_hh = jax.random.uniform(k2, (hidden_dim, 4 * hidden_dim), jnp.float32, -bound, bound)
        b_ih = jax.random.uniform(k3, (4 * hidden_dim,), jnp.float32, -bound, bound)
        b_hh = jax.random.uniform(k4, (4 * hidden_dim,), jnp.float32, -bound, bound)
        layers.append((w_ih, w_hh, (b_ih + b_hh)[None, :]))
    key, k5, k6 = jax.random.split(key, 3)
    w_fc = jax.random.uniform(k5, (hidden_dim, input_dim), jnp.float32, -bound, bound)
    b_fc = jax.random.uniform(k6, (input_dim,), jnp.float32, -bound, bound)[None, :]
    return {"layers": layers, "w_fc": w_fc, "b_fc": b_fc}


# ------------------------------- References -----------------------------------
def lstm_model_ref_f32(x, params):
    """Pure f32 reference (PyTorch LSTM + Linear semantics)."""
    out = x
    for (w_ih, w_hh, b) in params["layers"]:
        B = out.shape[0]
        H = w_hh.shape[0]

        def step(carry, xt, w_ih=w_ih, w_hh=w_hh, b=b):
            h, c = carry
            gates = xt @ w_ih + h @ w_hh + b[0]
            i_g, f_g, g_g, o_g = jnp.split(gates, 4, axis=-1)
            c = jax.nn.sigmoid(f_g) * c + jax.nn.sigmoid(i_g) * jnp.tanh(g_g)
            h = jax.nn.sigmoid(o_g) * jnp.tanh(c)
            return (h, c), h

        h0 = jnp.zeros((B, H), jnp.float32)
        c0 = jnp.zeros((B, H), jnp.float32)
        xs = jnp.transpose(out, (1, 0, 2))
        _, hs = jax.lax.scan(step, (h0, c0), xs)
        out = jnp.transpose(hs, (1, 0, 2))
    return out @ params["w_fc"] + params["b_fc"][0]


def lstm_model_ref_mixed(x, params):
    """Mirrors the kernel numerics: bf16 matmul operands, f32 accumulation,
    f32 gate math and c state, bf16 hidden state."""
    out = x.astype(MXU_DTYPE)
    for (w_ih, w_hh, b) in params["layers"]:
        B = out.shape[0]
        H = w_hh.shape[0]
        w_ih_b = w_ih.astype(MXU_DTYPE)
        w_hh_b = w_hh.astype(MXU_DTYPE)

        def step(carry, gx, w_hh_b=w_hh_b):
            h, c = carry
            gates = gx + jnp.dot(h, w_hh_b, preferred_element_type=jnp.float32)
            i_g, f_g, g_g, o_g = jnp.split(gates, 4, axis=-1)
            c = jax.nn.sigmoid(f_g) * c + jax.nn.sigmoid(i_g) * jnp.tanh(g_g)
            h = (jax.nn.sigmoid(o_g) * jnp.tanh(c)).astype(MXU_DTYPE)
            return (h, c), h

        xs = jnp.transpose(out, (1, 0, 2))  # [T, B, D] bf16
        gx = jnp.dot(xs, w_ih_b, preferred_element_type=jnp.float32) + b[0]
        h0 = jnp.zeros((B, H), MXU_DTYPE)
        c0 = jnp.zeros((B, H), jnp.float32)
        _, hs = jax.lax.scan(step, (h0, c0), gx)
        out = jnp.transpose(hs, (1, 0, 2))
    return (jnp.dot(out, params["w_fc"].astype(MXU_DTYPE),
                    preferred_element_type=jnp.float32) + params["b_fc"][0])


if __name__ == "__main__":
    INPUT_DIM = 32
    HIDDEN_DIM = 32
    NUM_LAYERS = 2
    BATCH = 2
    SEQ = 8

    key = jax.random.PRNGKey(0)
    key, kx, kp = jax.random.split(key, 3)
    x = jax.random.normal(kx, (BATCH, SEQ, INPUT_DIM), jnp.float32)
    params = init_params(kp, INPUT_DIM, HIDDEN_DIM, NUM_LAYERS)

    # time_chunk=4 -> 2 grid steps, exercising the cross-chunk (h, c) carry.
    logits = lstm_model_forward(x, params, time_chunk=4)
    logits = jax.block_until_ready(logits)
    assert logits.shape == (BATCH, SEQ, INPUT_DIM)

    # Tight check vs a reference that mirrors the kernel's mixed precision.
    ref_mixed = jax.block_until_ready(lstm_model_ref_mixed(x, params))
    np.testing.assert_allclose(np.asarray(logits), np.asarray(ref_mixed),
                               rtol=2e-3, atol=2e-3)

    # Loose sanity check vs the pure f32 PyTorch-semantics reference
    # (slack accounts for bf16 MXU operands).
    ref_f32 = jax.block_until_ready(lstm_model_ref_f32(x, params))
    np.testing.assert_allclose(np.asarray(logits), np.asarray(ref_f32),
                               rtol=8e-2, atol=8e-2)

    print("KERNEL_OK")
</pallas_src>

<mosaic_0001>
module attributes {stable_mosaic.version = 11 : i64} {
  func.func @kernel(%arg0: i32, %arg1: memref<32x32xbf16, #tpu.memory_space<vmem>>, %arg2: memref<32x512xbf16, #tpu.memory_space<vmem>>, %arg3: memref<128x512xbf16, #tpu.memory_space<vmem>>, %arg4: memref<1x512xf32, #tpu.memory_space<vmem>>, %arg5: memref<128x512xbf16, #tpu.memory_space<vmem>>, %arg6: memref<128x512xbf16, #tpu.memory_space<vmem>>, %arg7: memref<1x512xf32, #tpu.memory_space<vmem>>, %arg8: memref<128x128xbf16, #tpu.memory_space<vmem>>, %arg9: memref<1x128xf32, #tpu.memory_space<vmem>>, %arg10: memref<32x128xf32, #tpu.memory_space<vmem>>, %arg11: memref<32x512xf32, #tpu.memory_space<vmem>>, %arg12: memref<32x128xbf16, #tpu.memory_space<vmem>>, %arg13: memref<2x8x128xf32, #tpu.memory_space<vmem>>, %arg14: memref<2x8x128xf32, #tpu.memory_space<vmem>>) attributes {dimension_semantics = [#tpu.dimension_semantics<arbitrary>], iteration_bounds = array<i64: 2>, scalar_prefetch = 0 : i64, scratch_operands = 4 : i64, tpu.core_type = #tpu.core_type<tc>, window_params = [{transform_indices = @transform_0, window_bounds = array<i64: 32, 32>}, {pipeline_mode = #tpu.pipeline_mode<synchronous>, transform_indices = @transform_1, window_bounds = array<i64: 32, 512>}, {pipeline_mode = #tpu.pipeline_mode<synchronous>, transform_indices = @transform_2, window_bounds = array<i64: 128, 512>}, {pipeline_mode = #tpu.pipeline_mode<synchronous>, transform_indices = @transform_3, window_bounds = array<i64: 1, 512>}, {pipeline_mode = #tpu.pipeline_mode<synchronous>, transform_indices = @transform_4, window_bounds = array<i64: 128, 512>}, {pipeline_mode = #tpu.pipeline_mode<synchronous>, transform_indices = @transform_5, window_bounds = array<i64: 128, 512>}, {pipeline_mode = #tpu.pipeline_mode<synchronous>, transform_indices = @transform_6, window_bounds = array<i64: 1, 512>}, {pipeline_mode = #tpu.pipeline_mode<synchronous>, transform_indices = @transform_7, window_bounds = array<i64: 128, 128>}, {pipeline_mode = #tpu.pipeline_mode<synchronous>, transform_indices = @transform_8, window_bounds = array<i64: 1, 128>}, {transform_indices = @transform_9, window_bounds = array<i64: 32, 128>}]} {
    %c0_i32 = arith.constant 0 : i32
    %0 = arith.cmpi eq, %arg0, %c0_i32 : i32
    %1 = arith.extui %0 : i1 to i32
    %c0_i32_0 = arith.constant 0 : i32
    %2 = arith.cmpi ne, %1, %c0_i32_0 : i32
    scf.if %2 {
      %cst_110 = arith.constant 0.000000e+00 : f32
      %256 = vector.broadcast %cst_110 : f32 to vector<2x8x128xf32>
      %c0_111 = arith.constant 0 : index
      %c0_112 = arith.constant 0 : index
      %c0_113 = arith.constant 0 : index
      %257 = vector.load %arg13[%c0_111, %c0_112, %c0_113] : memref<2x8x128xf32, #tpu.memory_space<vmem>>, vector<2x8x128xf32>
      tpu.vector_store %arg13[%c0_111, %c0_112, %c0_113], %256 {strides = array<i32>} : memref<2x8x128xf32, #tpu.memory_space<vmem>>, vector<2x8x128xf32>,
      %cst_114 = arith.constant 0.000000e+00 : f32
      %258 = vector.broadcast %cst_114 : f32 to vector<2x8x128xf32>
      %c0_115 = arith.constant 0 : index
      %c0_116 = arith.constant 0 : index
      %c0_117 = arith.constant 0 : index
      %259 = vector.load %arg14[%c0_115, %c0_116, %c0_117] : memref<2x8x128xf32, #tpu.memory_space<vmem>>, vector<2x8x128xf32>
      tpu.vector_store %arg14[%c0_115, %c0_116, %c0_117], %258 {strides = array<i32>} : memref<2x8x128xf32, #tpu.memory_space<vmem>>, vector<2x8x128xf32>,
    } else {
    }
    %c0 = arith.constant 0 : index
    %c0_1 = arith.constant 0 : index
    %3 = vector.load %arg1[%c0, %c0_1] : memref<32x32xbf16, #tpu.memory_space<vmem>>, vector<32x32xbf16>
    %c0_2 = arith.constant 0 : index
    %c0_3 = arith.constant 0 : index
    %4 = vector.load %arg2[%c0_2, %c0_3] : memref<32x512xbf16, #tpu.memory_space<vmem>>, vector<32x512xbf16>
    %cst = arith.constant dense<0.000000e+00> : vector<32x512xf32>
    %5 = tpu.matmul %3, %4, %cst {dimension_numbers = #tpu.dot_dimension_numbers<[1], [0], [0], [1], [0, 0, 1, 1], [], []>} : vector<32x32xbf16>, vector<32x512xbf16>, vector<32x512xf32> -> vector<32x512xf32>
    %c0_4 = arith.constant 0 : index
    %c0_5 = arith.constant 0 : index
    %6 = vector.load %arg4[%c0_4, %c0_5] : memref<1x512xf32, #tpu.memory_space<vmem>>, vector<1x512xf32>
    %7 = vector.broadcast %6 : vector<1x512xf32> to vector<32x512xf32>
    %8 = arith.addf %5, %7 : vector<32x512xf32>
    %c0_6 = arith.constant 0 : index
    %c0_7 = arith.constant 0 : index
    %9 = vector.load %arg11[%c0_6, %c0_7] : memref<32x512xf32, #tpu.memory_space<vmem>>, vector<32x512xf32>
    tpu.vector_store %arg11[%c0_6, %c0_7], %8 {strides = array<i32>} : memref<32x512xf32, #tpu.memory_space<vmem>>, vector<32x512xf32>,
    %c0_8 = arith.constant 0 : index
    %c0_9 = arith.constant 0 : index
    %c0_10 = arith.constant 0 : index
    %10 = vector.load %arg13[%c0_8, %c0_9, %c0_10] : memref<2x8x128xf32, #tpu.memory_space<vmem>>, vector<1x8x128xf32>
    %11 = vector.shape_cast %10 : vector<1x8x128xf32> to vector<8x128xf32>
    %12 = arith.truncf %11 : vector<8x128xf32> to vector<8x128xbf16>
    %c0_11 = arith.constant 0 : index
    %c0_12 = arith.constant 0 : index
    %c0_13 = arith.constant 0 : index
    %13 = vector.load %arg14[%c0_11, %c0_12, %c0_13] : memref<2x8x128xf32, #tpu.memory_space<vmem>>, vector<1x8x128xf32>
    %14 = vector.shape_cast %13 : vector<1x8x128xf32> to vector<8x128xf32>
    %c0_i32_14 = arith.constant 0 : i32
    %c8_i32 = arith.constant 8 : i32
    %15 = arith.muli %c0_i32_14, %c8_i32 : i32
    %16 = tpu.assume_multiple %15, 8 : i32
    %17 = arith.index_cast %16 : i32 to index
    %c0_15 = arith.constant 0 : index
    %18 = vector.load %arg11[%17, %c0_15] : memref<32x512xf32, #tpu.memory_space<vmem>>, vector<8x512xf32>
    %c0_16 = arith.constant 0 : index
    %c0_17 = arith.constant 0 : index
    %19 = vector.load %arg3[%c0_16, %c0_17] : memref<128x512xbf16, #tpu.memory_space<vmem>>, vector<128x512xbf16>
    %cst_18 = arith.constant dense<0.000000e+00> : vector<8x512xf32>
    %20 = tpu.matmul %12, %19, %cst_18 {dimension_numbers = #tpu.dot_dimension_numbers<[1], [0], [0], [1], [0, 0, 1, 1], [], []>} : vector<8x128xbf16>, vector<128x512xbf16>, vector<8x512xf32> -> vector<8x512xf32>
    %21 = arith.addf %18, %20 : vector<8x512xf32>
    %22 = vector.extract_strided_slice %21 {offsets = [0, 0], sizes = [8, 384], strides = [1, 1]} : vector<8x512xf32> to vector<8x384xf32>
    %23 = arith.negf %22 : vector<8x384xf32>
    %24 = math.exp %23 : vector<8x384xf32>
    %cst_19 = arith.constant 1.000000e+00 : f32
    %25 = vector.broadcast %cst_19 : f32 to vector<8x384xf32>
    %26 = arith.addf %25, %24 : vector<8x384xf32>
    %27 = arith.divf %25, %26 : vector<8x384xf32>
    %28 = vector.extract_strided_slice %27 {offsets = [0, 0], sizes = [8, 128], strides = [1, 1]} : vector<8x384xf32> to vector<8x128xf32>
    %29 = vector.extract_strided_slice %27 {offsets = [0, 128], sizes = [8, 128], strides = [1, 1]} : vector<8x384xf32> to vector<8x128xf32>
    %30 = vector.extract_strided_slice %27 {offsets = [0, 256], sizes = [8, 128], strides = [1, 1]} : vector<8x384xf32> to vector<8x128xf32>
    %31 = vector.extract_strided_slice %21 {offsets = [0, 384], sizes = [8, 128], strides = [1, 1]} : vector<8x512xf32> to vector<8x128xf32>
    %32 = math.tanh %31 : vector<8x128xf32>
    %33 = arith.mulf %29, %14 : vector<8x128xf32>
    %34 = arith.mulf %28, %32 : vector<8x128xf32>
    %35 = arith.addf %33, %34 : vector<8x128xf32>
    %36 = math.tanh %35 : vector<8x128xf32>
    %37 = arith.mulf %30, %36 : vector<8x128xf32>
    %38 = arith.truncf %37 : vector<8x128xf32> to vector<8x128xbf16>
    %39 = arith.index_cast %16 : i32 to index
    %c0_20 = arith.constant 0 : index
    %40 = vector.load %arg12[%39, %c0_20] : memref<32x128xbf16, #tpu.memory_space<vmem>>, vector<8x128xbf16>
    tpu.vector_store %arg12[%39, %c0_20], %38 {strides = array<i32>} : memref<32x128xbf16, #tpu.memory_space<vmem>>, vector<8x128xbf16>,
    %c1_i32 = arith.constant 1 : i32
    %c8_i32_21 = arith.constant 8 : i32
    %41 = arith.muli %c1_i32, %c8_i32_21 : i32
    %42 = tpu.assume_multiple %41, 8 : i32
    %43 = arith.index_cast %42 : i32 to index
    %c0_22 = arith.constant 0 : index
    %44 = vector.load %arg11[%43, %c0_22] : memref<32x512xf32, #tpu.memory_space<vmem>>, vector<8x512xf32>
    %c0_23 = arith.constant 0 : index
    %c0_24 = arith.constant 0 : index
    %45 = vector.load %arg3[%c0_23, %c0_24] : memref<128x512xbf16, #tpu.memory_space<vmem>>, vector<128x512xbf16>
    %cst_25 = arith.constant dense<0.000000e+00> : vector<8x512xf32>
    %46 = tpu.matmul %38, %45, %cst_25 {dimension_numbers = #tpu.dot_dimension_numbers<[1], [0], [0], [1], [0, 0, 1, 1], [], []>} : vector<8x128xbf16>, vector<128x512xbf16>, vector<8x512xf32> -> vector<8x512xf32>
    %47 = arith.addf %44, %46 : vector<8x512xf32>
    %48 = vector.extract_strided_slice %47 {offsets = [0, 0], sizes = [8, 384], strides = [1, 1]} : vector<8x512xf32> to vector<8x384xf32>
    %49 = arith.negf %48 : vector<8x384xf32>
    %50 = math.exp %49 : vector<8x384xf32>
    %cst_26 = arith.constant 1.000000e+00 : f32
    %51 = vector.broadcast %cst_26 : f32 to vector<8x384xf32>
    %52 = arith.addf %51, %50 : vector<8x384xf32>
    %53 = arith.divf %51, %52 : vector<8x384xf32>
    %54 = vector.extract_strided_slice %53 {offsets = [0, 0], sizes = [8, 128], strides = [1, 1]} : vector<8x384xf32> to vector<8x128xf32>
    %55 = vector.extract_strided_slice %53 {offsets = [0, 128], sizes = [8, 128], strides = [1, 1]} : vector<8x384xf32> to vector<8x128xf32>
    %56 = vector.extract_strided_slice %53 {offsets = [0, 256], sizes = [8, 128], strides = [1, 1]} : vector<8x384xf32> to vector<8x128xf32>
    %57 = vector.extract_strided_slice %47 {offsets = [0, 384], sizes = [8, 128], strides = [1, 1]} : vector<8x512xf32> to vector<8x128xf32>
    %58 = math.tanh %57 : vector<8x128xf32>
    %59 = arith.mulf %55, %35 : vector<8x128xf32>
    %60 = arith.mulf %54, %58 : vector<8x128xf32>
    %61 = arith.addf %59, %60 : vector<8x128xf32>
    %62 = math.tanh %61 : vector<8x128xf32>
    %63 = arith.mulf %56, %62 : vector<8x128xf32>
    %64 = arith.truncf %63 : vector<8x128xf32> to vector<8x128xbf16>
    %65 = arith.index_cast %42 : i32 to index
    %c0_27 = arith.constant 0 : index
    %66 = vector.load %arg12[%65, %c0_27] : memref<32x128xbf16, #tpu.memory_space<vmem>>, vector<8x128xbf16>
    tpu.vector_store %arg12[%65, %c0_27], %64 {strides = array<i32>} : memref<32x128xbf16, #tpu.memory_space<vmem>>, vector<8x128xbf16>,
    %c2_i32 = arith.constant 2 : i32
    %c8_i32_28 = arith.constant 8 : i32
    %67 = arith.muli %c2_i32, %c8_i32_28 : i32
    %68 = tpu.assume_multiple %67, 8 : i32
    %69 = arith.index_cast %68 : i32 to index
    %c0_29 = arith.constant 0 : index
    %70 = vector.load %arg11[%69, %c0_29] : memref<32x512xf32, #tpu.memory_space<vmem>>, vector<8x512xf32>
    %c0_30 = arith.constant 0 : index
    %c0_31 = arith.constant 0 : index
    %71 = vector.load %arg3[%c0_30, %c0_31] : memref<128x512xbf16, #tpu.memory_space<vmem>>, vector<128x512xbf16>
    %cst_32 = arith.constant dense<0.000000e+00> : vector<8x512xf32>
    %72 = tpu.matmul %64, %71, %cst_32 {dimension_numbers = #tpu.dot_dimension_numbers<[1], [0], [0], [1], [0, 0, 1, 1], [], []>} : vector<8x128xbf16>, vector<128x512xbf16>, vector<8x512xf32> -> vector<8x512xf32>
    %73 = arith.addf %70, %72 : vector<8x512xf32>
    %74 = vector.extract_strided_slice %73 {offsets = [0, 0], sizes = [8, 384], strides = [1, 1]} : vector<8x512xf32> to vector<8x384xf32>
    %75 = arith.negf %74 : vector<8x384xf32>
    %76 = math.exp %75 : vector<8x384xf32>
    %cst_33 = arith.constant 1.000000e+00 : f32
    %77 = vector.broadcast %cst_33 : f32 to vector<8x384xf32>
    %78 = arith.addf %77, %76 : vector<8x384xf32>
    %79 = arith.divf %77, %78 : vector<8x384xf32>
    %80 = vector.extract_strided_slice %79 {offsets = [0, 0], sizes = [8, 128], strides = [1, 1]} : vector<8x384xf32> to vector<8x128xf32>
    %81 = vector.extract_strided_slice %79 {offsets = [0, 128], sizes = [8, 128], strides = [1, 1]} : vector<8x384xf32> to vector<8x128xf32>
    %82 = vector.extract_strided_slice %79 {offsets = [0, 256], sizes = [8, 128], strides = [1, 1]} : vector<8x384xf32> to vector<8x128xf32>
    %83 = vector.extract_strided_slice %73 {offsets = [0, 384], sizes = [8, 128], strides = [1, 1]} : vector<8x512xf32> to vector<8x128xf32>
    %84 = math.tanh %83 : vector<8x128xf32>
    %85 = arith.mulf %81, %61 : vector<8x128xf32>
    %86 = arith.mulf %80, %84 : vector<8x128xf32>
    %87 = arith.addf %85, %86 : vector<8x128xf32>
    %88 = math.tanh %87 : vector<8x128xf32>
    %89 = arith.mulf %82, %88 : vector<8x128xf32>
    %90 = arith.truncf %89 : vector<8x128xf32> to vector<8x128xbf16>
    %91 = arith.index_cast %68 : i32 to index
    %c0_34 = arith.constant 0 : index
    %92 = vector.load %arg12[%91, %c0_34] : memref<32x128xbf16, #tpu.memory_space<vmem>>, vector<8x128xbf16>
    tpu.vector_store %arg12[%91, %c0_34], %90 {strides = array<i32>} : memref<32x128xbf16, #tpu.memory_space<vmem>>, vector<8x128xbf16>,
    %c3_i32 = arith.constant 3 : i32
    %c8_i32_35 = arith.constant 8 : i32
    %93 = arith.muli %c3_i32, %c8_i32_35 : i32
    %94 = tpu.assume_multiple %93, 8 : i32
    %95 = arith.index_cast %94 : i32 to index
    %c0_36 = arith.constant 0 : index
    %96 = vector.load %arg11[%95, %c0_36] : memref<32x512xf32, #tpu.memory_space<vmem>>, vector<8x512xf32>
    %c0_37 = arith.constant 0 : index
    %c0_38 = arith.constant 0 : index
    %97 = vector.load %arg3[%c0_37, %c0_38] : memref<128x512xbf16, #tpu.memory_space<vmem>>, vector<128x512xbf16>
    %cst_39 = arith.constant dense<0.000000e+00> : vector<8x512xf32>
    %98 = tpu.matmul %90, %97, %cst_39 {dimension_numbers = #tpu.dot_dimension_numbers<[1], [0], [0], [1], [0, 0, 1, 1], [], []>} : vector<8x128xbf16>, vector<128x512xbf16>, vector<8x512xf32> -> vector<8x512xf32>
    %99 = arith.addf %96, %98 : vector<8x512xf32>
    %100 = vector.extract_strided_slice %99 {offsets = [0, 0], sizes = [8, 384], strides = [1, 1]} : vector<8x512xf32> to vector<8x384xf32>
    %101 = arith.negf %100 : vector<8x384xf32>
    %102 = math.exp %101 : vector<8x384xf32>
    %cst_40 = arith.constant 1.000000e+00 : f32
    %103 = vector.broadcast %cst_40 : f32 to vector<8x384xf32>
    %104 = arith.addf %103, %102 : vector<8x384xf32>
    %105 = arith.divf %103, %104 : vector<8x384xf32>
    %106 = vector.extract_strided_slice %105 {offsets = [0, 0], sizes = [8, 128], strides = [1, 1]} : vector<8x384xf32> to vector<8x128xf32>
    %107 = vector.extract_strided_slice %105 {offsets = [0, 128], sizes = [8, 128], strides = [1, 1]} : vector<8x384xf32> to vector<8x128xf32>
    %108 = vector.extract_strided_slice %105 {offsets = [0, 256], sizes = [8, 128], strides = [1, 1]} : vector<8x384xf32> to vector<8x128xf32>
    %109 = vector.extract_strided_slice %99 {offsets = [0, 384], sizes = [8, 128], strides = [1, 1]} : vector<8x512xf32> to vector<8x128xf32>
    %110 = math.tanh %109 : vector<8x128xf32>
    %111 = arith.mulf %107, %87 : vector<8x128xf32>
    %112 = arith.mulf %106, %110 : vector<8x128xf32>
    %113 = arith.addf %111, %112 : vector<8x128xf32>
    %114 = math.tanh %113 : vector<8x128xf32>
    %115 = arith.mulf %108, %114 : vector<8x128xf32>
    %116 = arith.truncf %115 : vector<8x128xf32> to vector<8x128xbf16>
    %117 = arith.index_cast %94 : i32 to index
    %c0_41 = arith.constant 0 : index
    %118 = vector.load %arg12[%117, %c0_41] : memref<32x128xbf16, #tpu.memory_space<vmem>>, vector<8x128xbf16>
    tpu.vector_store %arg12[%117, %c0_41], %116 {strides = array<i32>} : memref<32x128xbf16, #tpu.memory_space<vmem>>, vector<8x128xbf16>,
    %c4_i32 = arith.constant 4 : i32
    %119 = arith.extf %116 : vector<8x128xbf16> to vector<8x128xf32>
    %c0_42 = arith.constant 0 : index
    %c0_43 = arith.constant 0 : index
    %c0_44 = arith.constant 0 : index
    %120 = vector.load %arg13[%c0_42, %c0_43, %c0_44] : memref<2x8x128xf32, #tpu.memory_space<vmem>>, vector<1x8x128xf32>
    %121 = vector.shape_cast %120 : vector<1x8x128xf32> to vector<8x128xf32>
    %122 = vector.shape_cast %119 : vector<8x128xf32> to vector<1x8x128xf32>
    tpu.vector_store %arg13[%c0_42, %c0_43, %c0_44], %122 {strides = array<i32>} : memref<2x8x128xf32, #tpu.memory_space<vmem>>, vector<1x8x128xf32>,
    %c0_45 = arith.constant 0 : index
    %c0_46 = arith.constant 0 : index
    %c0_47 = arith.constant 0 : index
    %123 = vector.load %arg14[%c0_45, %c0_46, %c0_47] : memref<2x8x128xf32, #tpu.memory_space<vmem>>, vector<1x8x128xf32>
    %124 = vector.shape_cast %123 : vector<1x8x128xf32> to vector<8x128xf32>
    %125 = vector.shape_cast %113 : vector<8x128xf32> to vector<1x8x128xf32>
    tpu.vector_store %arg14[%c0_45, %c0_46, %c0_47], %125 {strides = array<i32>} : memref<2x8x128xf32, #tpu.memory_space<vmem>>, vector<1x8x128xf32>,
    %c0_48 = arith.constant 0 : index
    %c0_49 = arith.constant 0 : index
    %126 = vector.load %arg12[%c0_48, %c0_49] : memref<32x128xbf16, #tpu.memory_space<vmem>>, vector<32x128xbf16>
    %c0_50 = arith.constant 0 : index
    %c0_51 = arith.constant 0 : index
    %127 = vector.load %arg5[%c0_50, %c0_51] : memref<128x512xbf16, #tpu.memory_space<vmem>>, vector<128x512xbf16>
    %cst_52 = arith.constant dense<0.000000e+00> : vector<32x512xf32>
    %128 = tpu.matmul %126, %127, %cst_52 {dimension_numbers = #tpu.dot_dimension_numbers<[1], [0], [0], [1], [0, 0, 1, 1], [], []>} : vector<32x128xbf16>, vector<128x512xbf16>, vector<32x512xf32> -> vector<32x512xf32>
    %c0_53 = arith.constant 0 : index
    %c0_54 = arith.constant 0 : index
    %129 = vector.load %arg7[%c0_53, %c0_54] : memref<1x512xf32, #tpu.memory_space<vmem>>, vector<1x512xf32>
    %130 = vector.broadcast %129 : vector<1x512xf32> to vector<32x512xf32>
    %131 = arith.addf %128, %130 : vector<32x512xf32>
    %c0_55 = arith.constant 0 : index
    %c0_56 = arith.constant 0 : index
    %132 = vector.load %arg11[%c0_55, %c0_56] : memref<32x512xf32, #tpu.memory_space<vmem>>, vector<32x512xf32>
    tpu.vector_store %arg11[%c0_55, %c0_56], %131 {strides = array<i32>} : memref<32x512xf32, #tpu.memory_space<vmem>>, vector<32x512xf32>,
    %c1 = arith.constant 1 : index
    %c0_57 = arith.constant 0 : index
    %c0_58 = arith.constant 0 : index
    %133 = vector.load %arg13[%c1, %c0_57, %c0_58] : memref<2x8x128xf32, #tpu.memory_space<vmem>>, vector<1x8x128xf32>
    %134 = vector.shape_cast %133 : vector<1x8x128xf32> to vector<8x128xf32>
    %135 = arith.truncf %134 : vector<8x128xf32> to vector<8x128xbf16>
    %c1_59 = arith.constant 1 : index
    %c0_60 = arith.constant 0 : index
    %c0_61 = arith.constant 0 : index
    %136 = vector.load %arg14[%c1_59, %c0_60, %c0_61] : memref<2x8x128xf32, #tpu.memory_space<vmem>>, vector<1x8x128xf32>
    %137 = vector.shape_cast %136 : vector<1x8x128xf32> to vector<8x128xf32>
    %c0_i32_62 = arith.constant 0 : i32
    %c8_i32_63 = arith.constant 8 : i32
    %138 = arith.muli %c0_i32_62, %c8_i32_63 : i32
    %139 = tpu.assume_multiple %138, 8 : i32
    %140 = arith.index_cast %139 : i32 to index
    %c0_64 = arith.constant 0 : index
    %141 = vector.load %arg11[%140, %c0_64] : memref<32x512xf32, #tpu.memory_space<vmem>>, vector<8x512xf32>
    %c0_65 = arith.constant 0 : index
    %c0_66 = arith.constant 0 : index
    %142 = vector.load %arg6[%c0_65, %c0_66] : memref<128x512xbf16, #tpu.memory_space<vmem>>, vector<128x512xbf16>
    %cst_67 = arith.constant dense<0.000000e+00> : vector<8x512xf32>
    %143 = tpu.matmul %135, %142, %cst_67 {dimension_numbers = #tpu.dot_dimension_numbers<[1], [0], [0], [1], [0, 0, 1, 1], [], []>} : vector<8x128xbf16>, vector<128x512xbf16>, vector<8x512xf32> -> vector<8x512xf32>
    %144 = arith.addf %141, %143 : vector<8x512xf32>
    %145 = vector.extract_strided_slice %144 {offsets = [0, 0], sizes = [8, 384], strides = [1, 1]} : vector<8x512xf32> to vector<8x384xf32>
    %146 = arith.negf %145 : vector<8x384xf32>
    %147 = math.exp %146 : vector<8x384xf32>
    %cst_68 = arith.constant 1.000000e+00 : f32
    %148 = vector.broadcast %cst_68 : f32 to vector<8x384xf32>
    %149 = arith.addf %148, %147 : vector<8x384xf32>
    %150 = arith.divf %148, %149 : vector<8x384xf32>
    %151 = vector.extract_strided_slice %150 {offsets = [0, 0], sizes = [8, 128], strides = [1, 1]} : vector<8x384xf32> to vector<8x128xf32>
    %152 = vector.extract_strided_slice %150 {offsets = [0, 128], sizes = [8, 128], strides = [1, 1]} : vector<8x384xf32> to vector<8x128xf32>
    %153 = vector.extract_strided_slice %150 {offsets = [0, 256], sizes = [8, 128], strides = [1, 1]} : vector<8x384xf32> to vector<8x128xf32>
    %154 = vector.extract_strided_slice %144 {offsets = [0, 384], sizes = [8, 128], strides = [1, 1]} : vector<8x512xf32> to vector<8x128xf32>
    %155 = math.tanh %154 : vector<8x128xf32>
    %156 = arith.mulf %152, %137 : vector<8x128xf32>
    %157 = arith.mulf %151, %155 : vector<8x128xf32>
    %158 = arith.addf %156, %157 : vector<8x128xf32>
    %159 = math.tanh %158 : vector<8x128xf32>
    %160 = arith.mulf %153, %159 : vector<8x128xf32>
    %161 = arith.truncf %160 : vector<8x128xf32> to vector<8x128xbf16>
    %162 = arith.index_cast %139 : i32 to index
    %c0_69 = arith.constant 0 : index
    %163 = vector.load %arg12[%162, %c0_69] : memref<32x128xbf16, #tpu.memory_space<vmem>>, vector<8x128xbf16>
    tpu.vector_store %arg12[%162, %c0_69], %161 {strides = array<i32>} : memref<32x128xbf16, #tpu.memory_space<vmem>>, vector<8x128xbf16>,
    %c1_i32_70 = arith.constant 1 : i32
    %c8_i32_71 = arith.constant 8 : i32
    %164 = arith.muli %c1_i32_70, %c8_i32_71 : i32
    %165 = tpu.assume_multiple %164, 8 : i32
    %166 = arith.index_cast %165 : i32 to index
    %c0_72 = arith.constant 0 : index
    %167 = vector.load %arg11[%166, %c0_72] : memref<32x512xf32, #tpu.memory_space<vmem>>, vector<8x512xf32>
    %c0_73 = arith.constant 0 : index
    %c0_74 = arith.constant 0 : index
    %168 = vector.load %arg6[%c0_73, %c0_74] : memref<128x512xbf16, #tpu.memory_space<vmem>>, vector<128x512xbf16>
    %cst_75 = arith.constant dense<0.000000e+00> : vector<8x512xf32>
    %169 = tpu.matmul %161, %168, %cst_75 {dimension_numbers = #tpu.dot_dimension_numbers<[1], [0], [0], [1], [0, 0, 1, 1], [], []>} : vector<8x128xbf16>, vector<128x512xbf16>, vector<8x512xf32> -> vector<8x512xf32>
    %170 = arith.addf %167, %169 : vector<8x512xf32>
    %171 = vector.extract_strided_slice %170 {offsets = [0, 0], sizes = [8, 384], strides = [1, 1]} : vector<8x512xf32> to vector<8x384xf32>
    %172 = arith.negf %171 : vector<8x384xf32>
    %173 = math.exp %172 : vector<8x384xf32>
    %cst_76 = arith.constant 1.000000e+00 : f32
    %174 = vector.broadcast %cst_76 : f32 to vector<8x384xf32>
    %175 = arith.addf %174, %173 : vector<8x384xf32>
    %176 = arith.divf %174, %175 : vector<8x384xf32>
    %177 = vector.extract_strided_slice %176 {offsets = [0, 0], sizes = [8, 128], strides = [1, 1]} : vector<8x384xf32> to vector<8x128xf32>
    %178 = vector.extract_strided_slice %176 {offsets = [0, 128], sizes = [8, 128], strides = [1, 1]} : vector<8x384xf32> to vector<8x128xf32>
    %179 = vector.extract_strided_slice %176 {offsets = [0, 256], sizes = [8, 128], strides = [1, 1]} : vector<8x384xf32> to vector<8x128xf32>
    %180 = vector.extract_strided_slice %170 {offsets = [0, 384], sizes = [8, 128], strides = [1, 1]} : vector<8x512xf32> to vector<8x128xf32>
    %181 = math.tanh %180 : vector<8x128xf32>
    %182 = arith.mulf %178, %158 : vector<8x128xf32>
    %183 = arith.mulf %177, %181 : vector<8x128xf32>
    %184 = arith.addf %182, %183 : vector<8x128xf32>
    %185 = math.tanh %184 : vector<8x128xf32>
    %186 = arith.mulf %179, %185 : vector<8x128xf32>
    %187 = arith.truncf %186 : vector<8x128xf32> to vector<8x128xbf16>
    %188 = arith.index_cast %165 : i32 to index
    %c0_77 = arith.constant 0 : index
    %189 = vector.load %arg12[%188, %c0_77] : memref<32x128xbf16, #tpu.memory_space<vmem>>, vector<8x128xbf16>
    tpu.vector_store %arg12[%188, %c0_77], %187 {strides = array<i32>} : memref<32x128xbf16, #tpu.memory_space<vmem>>, vector<8x128xbf16>,
    %c2_i32_78 = arith.constant 2 : i32
    %c8_i32_79 = arith.constant 8 : i32
    %190 = arith.muli %c2_i32_78, %c8_i32_79 : i32
    %191 = tpu.assume_multiple %190, 8 : i32
    %192 = arith.index_cast %191 : i32 to index
    %c0_80 = arith.constant 0 : index
    %193 = vector.load %arg11[%192, %c0_80] : memref<32x512xf32, #tpu.memory_space<vmem>>, vector<8x512xf32>
    %c0_81 = arith.constant 0 : index
    %c0_82 = arith.constant 0 : index
    %194 = vector.load %arg6[%c0_81, %c0_82] : memref<128x512xbf16, #tpu.memory_space<vmem>>, vector<128x512xbf16>
    %cst_83 = arith.constant dense<0.000000e+00> : vector<8x512xf32>
    %195 = tpu.matmul %187, %194, %cst_83 {dimension_numbers = #tpu.dot_dimension_numbers<[1], [0], [0], [1], [0, 0, 1, 1], [], []>} : vector<8x128xbf16>, vector<128x512xbf16>, vector<8x512xf32> -> vector<8x512xf32>
    %196 = arith.addf %193, %195 : vector<8x512xf32>
    %197 = vector.extract_strided_slice %196 {offsets = [0, 0], sizes = [8, 384], strides = [1, 1]} : vector<8x512xf32> to vector<8x384xf32>
    %198 = arith.negf %197 : vector<8x384xf32>
    %199 = math.exp %198 : vector<8x384xf32>
    %cst_84 = arith.constant 1.000000e+00 : f32
    %200 = vector.broadcast %cst_84 : f32 to vector<8x384xf32>
    %201 = arith.addf %200, %199 : vector<8x384xf32>
    %202 = arith.divf %200, %201 : vector<8x384xf32>
    %203 = vector.extract_strided_slice %202 {offsets = [0, 0], sizes = [8, 128], strides = [1, 1]} : vector<8x384xf32> to vector<8x128xf32>
    %204 = vector.extract_strided_slice %202 {offsets = [0, 128], sizes = [8, 128], strides = [1, 1]} : vector<8x384xf32> to vector<8x128xf32>
    %205 = vector.extract_strided_slice %202 {offsets = [0, 256], sizes = [8, 128], strides = [1, 1]} : vector<8x384xf32> to vector<8x128xf32>
    %206 = vector.extract_strided_slice %196 {offsets = [0, 384], sizes = [8, 128], strides = [1, 1]} : vector<8x512xf32> to vector<8x128xf32>
    %207 = math.tanh %206 : vector<8x128xf32>
    %208 = arith.mulf %204, %184 : vector<8x128xf32>
    %209 = arith.mulf %203, %207 : vector<8x128xf32>
    %210 = arith.addf %208, %209 : vector<8x128xf32>
    %211 = math.tanh %210 : vector<8x128xf32>
    %212 = arith.mulf %205, %211 : vector<8x128xf32>
    %213 = arith.truncf %212 : vector<8x128xf32> to vector<8x128xbf16>
    %214 = arith.index_cast %191 : i32 to index
    %c0_85 = arith.constant 0 : index
    %215 = vector.load %arg12[%214, %c0_85] : memref<32x128xbf16, #tpu.memory_space<vmem>>, vector<8x128xbf16>
    tpu.vector_store %arg12[%214, %c0_85], %213 {strides = array<i32>} : memref<32x128xbf16, #tpu.memory_space<vmem>>, vector<8x128xbf16>,
    %c3_i32_86 = arith.constant 3 : i32
    %c8_i32_87 = arith.constant 8 : i32
    %216 = arith.muli %c3_i32_86, %c8_i32_87 : i32
    %217 = tpu.assume_multiple %216, 8 : i32
    %218 = arith.index_cast %217 : i32 to index
    %c0_88 = arith.constant 0 : index
    %219 = vector.load %arg11[%218, %c0_88] : memref<32x512xf32, #tpu.memory_space<vmem>>, vector<8x512xf32>
    %c0_89 = arith.constant 0 : index
    %c0_90 = arith.constant 0 : index
    %220 = vector.load %arg6[%c0_89, %c0_90] : memref<128x512xbf16, #tpu.memory_space<vmem>>, vector<128x512xbf16>
    %cst_91 = arith.constant dense<0.000000e+00> : vector<8x512xf32>
    %221 = tpu.matmul %213, %220, %cst_91 {dimension_numbers = #tpu.dot_dimension_numbers<[1], [0], [0], [1], [0, 0, 1, 1], [], []>} : vector<8x128xbf16>, vector<128x512xbf16>, vector<8x512xf32> -> vector<8x512xf32>
    %222 = arith.addf %219, %221 : vector<8x512xf32>
    %223 = vector.extract_strided_slice %222 {offsets = [0, 0], sizes = [8, 384], strides = [1, 1]} : vector<8x512xf32> to vector<8x384xf32>
    %224 = arith.negf %223 : vector<8x384xf32>
    %225 = math.exp %224 : vector<8x384xf32>
    %cst_92 = arith.constant 1.000000e+00 : f32
    %226 = vector.broadcast %cst_92 : f32 to vector<8x384xf32>
    %227 = arith.addf %226, %225 : vector<8x384xf32>
    %228 = arith.divf %226, %227 : vector<8x384xf32>
    %229 = vector.extract_strided_slice %228 {offsets = [0, 0], sizes = [8, 128], strides = [1, 1]} : vector<8x384xf32> to vector<8x128xf32>
    %230 = vector.extract_strided_slice %228 {offsets = [0, 128], sizes = [8, 128], strides = [1, 1]} : vector<8x384xf32> to vector<8x128xf32>
    %231 = vector.extract_strided_slice %228 {offsets = [0, 256], sizes = [8, 128], strides = [1, 1]} : vector<8x384xf32> to vector<8x128xf32>
    %232 = vector.extract_strided_slice %222 {offsets = [0, 384], sizes = [8, 128], strides = [1, 1]} : vector<8x512xf32> to vector<8x128xf32>
    %233 = math.tanh %232 : vector<8x128xf32>
    %234 = arith.mulf %230, %210 : vector<8x128xf32>
    %235 = arith.mulf %229, %233 : vector<8x128xf32>
    %236 = arith.addf %234, %235 : vector<8x128xf32>
    %237 = math.tanh %236 : vector<8x128xf32>
    %238 = arith.mulf %231, %237 : vector<8x128xf32>
    %239 = arith.truncf %238 : vector<8x128xf32> to vector<8x128xbf16>
    %240 = arith.index_cast %217 : i32 to index
    %c0_93 = arith.constant 0 : index
    %241 = vector.load %arg12[%240, %c0_93] : memref<32x128xbf16, #tpu.memory_space<vmem>>, vector<8x128xbf16>
    tpu.vector_store %arg12[%240, %c0_93], %239 {strides = array<i32>} : memref<32x128xbf16, #tpu.memory_space<vmem>>, vector<8x128xbf16>,
    %c4_i32_94 = arith.constant 4 : i32
    %242 = arith.extf %239 : vector<8x128xbf16> to vector<8x128xf32>
    %c1_95 = arith.constant 1 : index
    %c0_96 = arith.constant 0 : index
    %c0_97 = arith.constant 0 : index
    %243 = vector.load %arg13[%c1_95, %c0_96, %c0_97] : memref<2x8x128xf32, #tpu.memory_space<vmem>>, vector<1x8x128xf32>
    %244 = vector.shape_cast %243 : vector<1x8x128xf32> to vector<8x128xf32>
    %245 = vector.shape_cast %242 : vector<8x128xf32> to vector<1x8x128xf32>
    tpu.vector_store %arg13[%c1_95, %c0_96, %c0_97], %245 {strides = array<i32>} : memref<2x8x128xf32, #tpu.memory_space<vmem>>, vector<1x8x128xf32>,
    %c1_98 = arith.constant 1 : index
    %c0_99 = arith.constant 0 : index
    %c0_100 = arith.constant 0 : index
    %246 = vector.load %arg14[%c1_98, %c0_99, %c0_100] : memref<2x8x128xf32, #tpu.memory_space<vmem>>, vector<1x8x128xf32>
    %247 = vector.shape_cast %246 : vector<1x8x128xf32> to vector<8x128xf32>
    %248 = vector.shape_cast %236 : vector<8x128xf32> to vector<1x8x128xf32>
    tpu.vector_store %arg14[%c1_98, %c0_99, %c0_100], %248 {strides = array<i32>} : memref<2x8x128xf32, #tpu.memory_space<vmem>>, vector<1x8x128xf32>,
    %c0_101 = arith.constant 0 : index
    %c0_102 = arith.constant 0 : index
    %249 = vector.load %arg12[%c0_101, %c0_102] : memref<32x128xbf16, #tpu.memory_space<vmem>>, vector<32x128xbf16>
    %c0_103 = arith.constant 0 : index
    %c0_104 = arith.constant 0 : index
    %250 = vector.load %arg8[%c0_103, %c0_104] : memref<128x128xbf16, #tpu.memory_space<vmem>>, vector<128x128xbf16>
    %cst_105 = arith.constant dense<0.000000e+00> : vector<32x128xf32>
    %251 = tpu.matmul %249, %250, %cst_105 {dimension_numbers = #tpu.dot_dimension_numbers<[1], [0], [0], [1], [0, 0, 1, 1], [], []>} : vector<32x128xbf16>, vector<128x128xbf16>, vector<32x128xf32> -> vector<32x128xf32>
    %c0_106 = arith.constant 0 : index
    %c0_107 = arith.constant 0 : index
    %252 = vector.load %arg9[%c0_106, %c0_107] : memref<1x128xf32, #tpu.memory_space<vmem>>, vector<1x128xf32>
    %253 = vector.broadcast %252 : vector<1x128xf32> to vector<32x128xf32>
    %254 = arith.addf %251, %253 : vector<32x128xf32>
    %c0_108 = arith.constant 0 : index
    %c0_109 = arith.constant 0 : index
    %255 = vector.load %arg10[%c0_108, %c0_109] : memref<32x128xf32, #tpu.memory_space<vmem>>, vector<32x128xf32>
    tpu.vector_store %arg10[%c0_108, %c0_109], %254 {strides = array<i32>} : memref<32x128xf32, #tpu.memory_space<vmem>>, vector<32x128xf32>,
    return
  }
  func.func @transform_0(%arg0: i32) -> (i32, i32) {
    %c0_i32 = arith.constant 0 : i32
    %c0_i32_0 = arith.constant 0 : i32
    return %arg0, %c0_i32 : i32, i32
  }
  func.func @transform_1(%arg0: i32) -> (i32, i32) {
    %c0_i32 = arith.constant 0 : i32
    %c0_i32_0 = arith.constant 0 : i32
    %c0_i32_1 = arith.constant 0 : i32
    return %c0_i32, %c0_i32_0 : i32, i32
  }
  func.func @transform_2(%arg0: i32) -> (i32, i32) {
    %c0_i32 = arith.constant 0 : i32
    %c0_i32_0 = arith.constant 0 : i32
    %c0_i32_1 = arith.constant 0 : i32
    return %c0_i32, %c0_i32_0 : i32, i32
  }
  func.func @transform_3(%arg0: i32) -> (i32, i32) {
    %c0_i32 = arith.constant 0 : i32
    %c0_i32_0 = arith.constant 0 : i32
    %c0_i32_1 = arith.constant 0 : i32
    return %c0_i32, %c0_i32_0 : i32, i32
  }
  func.func @transform_4(%arg0: i32) -> (i32, i32) {
    %c0_i32 = arith.constant 0 : i32
    %c0_i32_0 = arith.constant 0 : i32
    %c0_i32_1 = arith.constant 0 : i32
    return %c0_i32, %c0_i32_0 : i32, i32
  }
  func.func @transform_5(%arg0: i32) -> (i32, i32) {
    %c0_i32 = arith.constant 0 : i32
    %c0_i32_0 = arith.constant 0 : i32
    %c0_i32_1 = arith.constant 0 : i32
    return %c0_i32, %c0_i32_0 : i32, i32
  }
  func.func @transform_6(%arg0: i32) -> (i32, i32) {
    %c0_i32 = arith.constant 0 : i32
    %c0_i32_0 = arith.constant 0 : i32
    %c0_i32_1 = arith.constant 0 : i32
    return %c0_i32, %c0_i32_0 : i32, i32
  }
  func.func @transform_7(%arg0: i32) -> (i32, i32) {
    %c0_i32 = arith.constant 0 : i32
    %c0_i32_0 = arith.constant 0 : i32
    %c0_i32_1 = arith.constant 0 : i32
    return %c0_i32, %c0_i32_0 : i32, i32
  }
  func.func @transform_8(%arg0: i32) -> (i32, i32) {
    %c0_i32 = arith.constant 0 : i32
    %c0_i32_0 = arith.constant 0 : i32
    %c0_i32_1 = arith.constant 0 : i32
    return %c0_i32, %c0_i32_0 : i32, i32
  }
  func.func @transform_9(%arg0: i32) -> (i32, i32) {
    %c0_i32 = arith.constant 0 : i32
    %c0_i32_0 = arith.constant 0 : i32
    return %arg0, %c0_i32 : i32, i32
  }
}

</mosaic_0001>

<llo_original>
// kernel: lstm_model_forward.1
$region0: #{lstm_model_forward.1}
  #allocation0 [shape = 'u32[]', space=smem, size = 0x4, offset = 0x4, fixed_abs, tag = 'smem constant byte address 0x4 - core index']
  #allocation1 [shape = 'u32[72,128]{1,0:T(1,128)}', space=vmem, size = 0x9000, scoped, tag = 'internal scratch']
  #allocation2 [shape = 'f32[32,512]{1,0:T(8,128)}', space=vmem, size = 0x10000, scoped, tag = 'scratch operand']
  #allocation3 [shape = 'bf16[32,128]{1,0:T(8,128)(2,1)}', space=vmem, size = 0x2000, scoped, tag = 'scratch operand']
  #allocation4 [shape = 'f32[2,8,128]{2,1,0:T(8,128)}', space=vmem, size = 0x2000, scoped, tag = 'scratch operand']
  #allocation5 [shape = 'f32[2,8,128]{2,1,0:T(8,128)}', space=vmem, size = 0x2000, scoped, tag = 'scratch operand']
  %s0 = inlined_call_operand.vmem [shape: bf16[64,32], index: 0, kind: input, shape index: {}]
  %s1 = inlined_call_operand.vmem [shape: bf16[32,512], index: 1, kind: input, shape index: {}]
  %s2 = inlined_call_operand.vmem [shape: bf16[128,512], index: 2, kind: input, shape index: {}]
  %s3 = inlined_call_operand.vmem [shape: f32[1,512], index: 3, kind: input, shape index: {}]
  %s4 = inlined_call_operand.vmem [shape: bf16[128,512], index: 4, kind: input, shape index: {}]
  %s5 = inlined_call_operand.vmem [shape: bf16[128,512], index: 5, kind: input, shape index: {}]
  %s6 = inlined_call_operand.vmem [shape: f32[1,512], index: 6, kind: input, shape index: {}]
  %s7 = inlined_call_operand.vmem [shape: bf16[128,128], index: 7, kind: input, shape index: {}]
  %s8 = inlined_call_operand.vmem [shape: f32[1,128], index: 8, kind: input, shape index: {}]
  %s9 = inlined_call_operand.vmem [shape: f32[64,128], index: 9, kind: output, shape index: {}]
  %s10 = sld [smem:[#allocation0]]
  $region73: #{lstm_model_forward.1} parent=0
    _
  %s12 = ssub.s32 1, %s10
  %s13 = scalar_select 0, %s12, %s10
  loop: start=0, step=1, limit=4
  $region2: #{lstm_model_forward.1} parent=0 // loop_pre_header
    _
  $region3: #{lstm_model_forward.1} parent=0 // loop_header
    %s15 = sphi 0, %s19
    %p16 = scmp.ge.s32.totalorder %s15, 4
    %s25 = sphi 0, %s27
    %s28 = sphi 0, %s25
    %s29 = sphi 0, %s28
    %s45 = sphi 0, %s29
    %s49 = sphi 0, %s49
    %s51 = sphi 0, %s49
    %s52 = sphi 0, %s51
    %s66 = sphi 0, %s52
    %s70 = sphi 0, %s70
    %s72 = sphi 0, %s70
    %s73 = sphi 0, %s72
    %s87 = sphi 0, %s73
    %s91 = sphi 0, %s91
    %s93 = sphi 0, %s91
    %s94 = sphi 0, %s93
    %s108 = sphi 0, %s94
    %s112 = sphi 0, %s112
    %s114 = sphi 0, %s112
    %s115 = sphi 0, %s114
    %s129 = sphi 0, %s115
    %s133 = sphi 0, %s133
    %s135 = sphi 0, %s133
    %s136 = sphi 0, %s135
    %s150 = sphi 0, %s136
    %s154 = sphi 0, %s154
    %s156 = sphi 0, %s154
    %s157 = sphi 0, %s156
    %s171 = sphi 0, %s157
    %s175 = sphi 0, %s175
    %s177 = sphi 0, %s175
    %s178 = sphi 0, %s177
    %s192 = sphi 0, %s178
    %s196 = sphi 0, %s196
    %s198 = sphi 0, %s196
    %s199 = sphi 0, %s198
    %s213 = sphi 0, %s199
    %s219 = sphi 0, %s221
    %s222 = sphi 0, %s219
    %s223 = sphi 0, %s222
    %s239 = sphi 0, %s223
  $region4: #{lstm_model_forward.1} parent=0 // loop_header_branch
    %18 = sbr.rel (%p16) target = $region8
  $region5: #{lstm_model_forward.1} parent=0 // loop_body
    %s20 = ssub.s32 %s15, 1
    %s21 = ssub.s32 %s15, 2
    %s22 = sadd.s32 %s15, 1
    %s23 = ssub.s32 %s15, %s22
    %p24 = scmp.eq.s32.totalorder %s23, 0
    %s26 = sadd.s32 %s25, 1
    %s27 = scalar_select %p24, %s25, %s26
    %p30 = pneg %p24
    %p31 = scmp.eq.s32.totalorder %s15, 1
    %p32 = por %p30, %p31
    %p33 = scmp.ne.s32.totalorder %s25, %s28
    %p34 = scmp.eq.s32.totalorder %s15, 0
    %p35 = por %p33, %p34
    %p36 = scmp.ne.s32.totalorder %s25, %s28
    %p37 = scmp.eq.s32.totalorder %s20, 1
    %p38 = por %p36, %p37
    %p39 = scmp.ne.s32.totalorder %s28, %s29
    %p40 = scmp.eq.s32.totalorder %s20, 0
    %p41 = por %p39, %p40
    %p42 = scmp.ne.s32.totalorder %s28, %s29
    %p43 = scmp.eq.s32.totalorder %s21, 1
    %p44 = por %p42, %p43
    %p46 = scmp.ne.s32.totalorder %s29, %s45
    %p47 = scmp.eq.s32.totalorder %s21, 0
    %p48 = por %p46, %p47
    %s50 = sadd.s32 %s49, 1
    %p53 = scmp.eq.s32.totalorder %s15, 1
    %p54 = scmp.ne.s32.totalorder %s49, %s51
    %p55 = scmp.eq.s32.totalorder %s15, 0
    %p56 = por %p54, %p55
    %p57 = scmp.ne.s32.totalorder %s49, %s51
    %p58 = scmp.eq.s32.totalorder %s20, 1
    %p59 = por %p57, %p58
    %p60 = scmp.ne.s32.totalorder %s51, %s52
    %p61 = scmp.eq.s32.totalorder %s20, 0
    %p62 = por %p60, %p61
    %p63 = scmp.ne.s32.totalorder %s51, %s52
    %p64 = scmp.eq.s32.totalorder %s21, 1
    %p65 = por %p63, %p64
    %p67 = scmp.ne.s32.totalorder %s52, %s66
    %p68 = scmp.eq.s32.totalorder %s21, 0
    %p69 = por %p67, %p68
    %s71 = sadd.s32 %s70, 1
    %p74 = scmp.eq.s32.totalorder %s15, 1
    %p75 = scmp.ne.s32.totalorder %s70, %s72
    %p76 = scmp.eq.s32.totalorder %s15, 0
    %p77 = por %p75, %p76
    %p78 = scmp.ne.s32.totalorder %s70, %s72
    %p79 = scmp.eq.s32.totalorder %s20, 1
    %p80 = por %p78, %p79
    %p81 = scmp.ne.s32.totalorder %s72, %s73
    %p82 = scmp.eq.s32.totalorder %s20, 0
    %p83 = por %p81, %p82
    %p84 = scmp.ne.s32.totalorder %s72, %s73
    %p85 = scmp.eq.s32.totalorder %s21, 1
    %p86 = por %p84, %p85
    %p88 = scmp.ne.s32.totalorder %s73, %s87
    %p89 = scmp.eq.s32.totalorder %s21, 0
    %p90 = por %p88, %p89
    %s92 = sadd.s32 %s91, 1
    %p95 = scmp.eq.s32.totalorder %s15, 1
    %p96 = scmp.ne.s32.totalorder %s91, %s93
    %p97 = scmp.eq.s32.totalorder %s15, 0
    %p98 = por %p96, %p97
    %p99 = scmp.ne.s32.totalorder %s91, %s93
    %p100 = scmp.eq.s32.totalorder %s20, 1
    %p101 = por %p99, %p100
    %p102 = scmp.ne.s32.totalorder %s93, %s94
    %p103 = scmp.eq.s32.totalorder %s20, 0
    %p104 = por %p102, %p103
    %p105 = scmp.ne.s32.totalorder %s93, %s94
    %p106 = scmp.eq.s32.totalorder %s21, 1
    %p107 = por %p105, %p106
    %p109 = scmp.ne.s32.totalorder %s94, %s108
    %p110 = scmp.eq.s32.totalorder %s21, 0
    %p111 = por %p109, %p110
    %s113 = sadd.s32 %s112, 1
    %p116 = scmp.eq.s32.totalorder %s15, 1
    %p117 = scmp.ne.s32.totalorder %s112, %s114
    %p118 = scmp.eq.s32.totalorder %s15, 0
    %p119 = por %p117, %p118
    %p120 = scmp.ne.s32.totalorder %s112, %s114
    %p121 = scmp.eq.s32.totalorder %s20, 1
    %p122 = por %p120, %p121
    %p123 = scmp.ne.s32.totalorder %s114, %s115
    %p124 = scmp.eq.s32.totalorder %s20, 0
    %p125 = por %p123, %p124
    %p126 = scmp.ne.s32.totalorder %s114, %s115
    %p127 = scmp.eq.s32.totalorder %s21, 1
    %p128 = por %p126, %p127
    %p130 = scmp.ne.s32.totalorder %s115, %s129
    %p131 = scmp.eq.s32.totalorder %s21, 0
    %p132 = por %p130, %p131
    %s134 = sadd.s32 %s133, 1
    %p137 = scmp.eq.s32.totalorder %s15, 1
    %p138 = scmp.ne.s32.totalorder %s133, %s135
    %p139 = scmp.eq.s32.totalorder %s15, 0
    %p140 = por %p138, %p139
    %p141 = scmp.ne.s32.totalorder %s133, %s135
    %p142 = scmp.eq.s32.totalorder %s20, 1
    %p143 = por %p141, %p142
    %p144 = scmp.ne.s32.totalorder %s135, %s136
    %p145 = scmp.eq.s32.totalorder %s20, 0
    %p146 = por %p144, %p145
    %p147 = scmp.ne.s32.totalorder %s135, %s136
    %p148 = scmp.eq.s32.totalorder %s21, 1
    %p149 = por %p147, %p148
    %p151 = scmp.ne.s32.totalorder %s136, %s150
    %p152 = scmp.eq.s32.totalorder %s21, 0
    %p153 = por %p151, %p152
    %s155 = sadd.s32 %s154, 1
    %p158 = scmp.eq.s32.totalorder %s15, 1
    %p159 = scmp.ne.s32.totalorder %s154, %s156
    %p160 = scmp.eq.s32.totalorder %s15, 0
    %p161 = por %p159, %p160
    %p162 = scmp.ne.s32.totalorder %s154, %s156
    %p163 = scmp.eq.s32.totalorder %s20, 1
    %p164 = por %p162, %p163
    %p165 = scmp.ne.s32.totalorder %s156, %s157
    %p166 = scmp.eq.s32.totalorder %s20, 0
    %p167 = por %p165, %p166
    %p168 = scmp.ne.s32.totalorder %s156, %s157
    %p169 = scmp.eq.s32.totalorder %s21, 1
    %p170 = por %p168, %p169
    %p172 = scmp.ne.s32.totalorder %s157, %s171
    %p173 = scmp.eq.s32.totalorder %s21, 0
    %p174 = por %p172, %p173
    %s176 = sadd.s32 %s175, 1
    %p179 = scmp.eq.s32.totalorder %s15, 1
    %p180 = scmp.ne.s32.totalorder %s175, %s177
    %p181 = scmp.eq.s32.totalorder %s15, 0
    %p182 = por %p180, %p181
    %p183 = scmp.ne.s32.totalorder %s175, %s177
    %p184 = scmp.eq.s32.totalorder %s20, 1
    %p185 = por %p183, %p184
    %p186 = scmp.ne.s32.totalorder %s177, %s178
    %p187 = scmp.eq.s32.totalorder %s20, 0
    %p188 = por %p186, %p187
    %p189 = scmp.ne.s32.totalorder %s177, %s178
    %p190 = scmp.eq.s32.totalorder %s21, 1
    %p191 = por %p189, %p190
    %p193 = scmp.ne.s32.totalorder %s178, %s192
    %p194 = scmp.eq.s32.totalorder %s21, 0
    %p195 = por %p193, %p194
    %s197 = sadd.s32 %s196, 1
    %p200 = scmp.eq.s32.totalorder %s15, 1
    %p201 = scmp.ne.s32.totalorder %s196, %s198
    %p202 = scmp.eq.s32.totalorder %s15, 0
    %p203 = por %p201, %p202
    %p204 = scmp.ne.s32.totalorder %s196, %s198
    %p205 = scmp.eq.s32.totalorder %s20, 1
    %p206 = por %p204, %p205
    %p207 = scmp.ne.s32.totalorder %s198, %s199
    %p208 = scmp.eq.s32.totalorder %s20, 0
    %p209 = por %p207, %p208
    %p210 = scmp.ne.s32.totalorder %s198, %s199
    %p211 = scmp.eq.s32.totalorder %s21, 1
    %p212 = por %p210, %p211
    %p214 = scmp.ne.s32.totalorder %s199, %s213
    %p215 = scmp.eq.s32.totalorder %s21, 0
    %p216 = por %p214, %p215
    %s217 = ssub.s32 %s15, %s22
    %p218 = scmp.eq.s32.totalorder %s217, 0
    %s220 = sadd.s32 %s219, 1
    %s221 = scalar_select %p218, %s219, %s220
    %p224 = pneg %p218
    %p225 = scmp.eq.s32.totalorder %s15, 1
    %p226 = por %p224, %p225
    %p227 = scmp.ne.s32.totalorder %s219, %s222
    %p228 = scmp.eq.s32.totalorder %s15, 0
    %p229 = por %p227, %p228
    %p230 = scmp.ne.s32.totalorder %s219, %s222
    %p231 = scmp.eq.s32.totalorder %s20, 1
    %p232 = por %p230, %p231
    %p233 = scmp.ne.s32.totalorder %s222, %s223
    %p234 = scmp.eq.s32.totalorder %s20, 0
    %p235 = por %p233, %p234
    %p236 = scmp.ne.s32.totalorder %s222, %s223
    %p237 = scmp.eq.s32.totalorder %s21, 1
    %p238 = por %p236, %p237
    %p240 = scmp.ne.s32.totalorder %s223, %s239
    %p241 = scmp.eq.s32.totalorder %s21, 0
    %p242 = por %p240, %p241
    %p243 = scmp.le.s32.totalorder 1, %s15
    %p244 = scmp.lt.s32.totalorder %s15, 3
    %p245 = pnand %p243, %p244
    %p246 = pneg %p245
    // Predicated region
    $region9: #{lstm_model_forward.1} parent=5 // pred_check
      _
    $region10: #{lstm_model_forward.1} parent=5 // pred_check_branch
      %248 = sbr.rel (%p245) target = $region12
    $region11: #{lstm_model_forward.1} parent=5 // pred_region
      %s249 = ssub.s32 %s15, 1
      // Predicated region
      $region13: #{lstm_model_forward.1} parent=11 // pred_check
        %p250 = pneg %p62
      $region14: #{lstm_model_forward.1} parent=11 // pred_check_branch
        %252 = sbr.rel (%p250) target = $region16
      $region15: #{lstm_model_forward.1} parent=11 // pred_region
        _
      $region16: #{lstm_model_forward.1} parent=11 // pred_fallthru
        _
      // Predicated region
      $region17: #{lstm_model_forward.1} parent=11 // pred_check
        %p253 = pneg %p83
      $region18: #{lstm_model_forward.1} parent=11 // pred_check_branch
        %255 = sbr.rel (%p253) target = $region20
      $region19: #{lstm_model_forward.1} parent=11 // pred_region
        _
      $region20: #{lstm_model_forward.1} parent=11 // pred_fallthru
        _
      // Predicated region
      $region21: #{lstm_model_forward.1} parent=11 // pred_check
        %p256 = pneg %p104
      $region22: #{lstm_model_forward.1} parent=11 // pred_check_branch
        %258 = sbr.rel (%p256) target = $region24
      $region23: #{lstm_model_forward.1} parent=11 // pred_region
        _
      $region24: #{lstm_model_forward.1} parent=11 // pred_fallthru
        _
      // Predicated region
      $region25: #{lstm_model_forward.1} parent=11 // pred_check
        %p259 = pneg %p125
      $region26: #{lstm_model_forward.1} parent=11 // pred_check_branch
        %261 = sbr.rel (%p259) target = $region28
      $region27: #{lstm_model_forward.1} parent=11 // pred_region
        _
      $region28: #{lstm_model_forward.1} parent=11 // pred_fallthru
        _
      // Predicated region
      $region29: #{lstm_model_forward.1} parent=11 // pred_check
        %p262 = pneg %p146
      $region30: #{lstm_model_forward.1} parent=11 // pred_check_branch
        %264 = sbr.rel (%p262) target = $region32
      $region31: #{lstm_model_forward.1} parent=11 // pred_region
        _
      $region32: #{lstm_model_forward.1} parent=11 // pred_fallthru
        _
      // Predicated region
      $region33: #{lstm_model_forward.1} parent=11 // pred_check
        %p265 = pneg %p167
      $region34: #{lstm_model_forward.1} parent=11 // pred_check_branch
        %267 = sbr.rel (%p265) target = $region36
      $region35: #{lstm_model_forward.1} parent=11 // pred_region
        _
      $region36: #{lstm_model_forward.1} parent=11 // pred_fallthru
        _
      // Predicated region
      $region37: #{lstm_model_forward.1} parent=11 // pred_check
        %p268 = pneg %p188
      $region38: #{lstm_model_forward.1} parent=11 // pred_check_branch
        %270 = sbr.rel (%p268) target = $region40
      $region39: #{lstm_model_forward.1} parent=11 // pred_region
        _
      $region40: #{lstm_model_forward.1} parent=11 // pred_fallthru
        _
      // Predicated region
      $region41: #{lstm_model_forward.1} parent=11 // pred_check
        %p271 = pneg %p209
      $region42: #{lstm_model_forward.1} parent=11 // pred_check_branch
        %273 = sbr.rel (%p271) target = $region44
      $region43: #{lstm_model_forward.1} parent=11 // pred_region
        _
      $region44: #{lstm_model_forward.1} parent=11 // pred_fallthru
        _
    $region12: #{lstm_model_forward.1} parent=5 // pred_fallthru
      _
    %p274 = scmp.lt.s32.totalorder %s15, 2
    // Predicated region
    $region45: #{lstm_model_forward.1} parent=5 // pred_check
      %p275 = pneg %p274
    $region46: #{lstm_model_forward.1} parent=5 // pred_check_branch
      %277 = sbr.rel (%p275) target = $region48
    $region47: #{lstm_model_forward.1} parent=5 // pred_region
      // Predicated region
      $region49: #{lstm_model_forward.1} parent=47 // pred_check
        %p278 = pneg %p35
      $region50: #{lstm_model_forward.1} parent=47 // pred_check_branch
        %280 = sbr.rel (%p278) target = $region52
      $region51: #{lstm_model_forward.1} parent=47 // pred_region
        %s281 = smul.u32 4, %s15
        %p282 = scmp.lt.s32.totalorder %s281, 7
        %s283 = scalar_select %p282, %s281, 7
        %s284 = smul.addr %s283, 4
        %s285 = scalar_lea.vmem %s0, %s284
        %s286 = smul.u32 4, %s15
      $region52: #{lstm_model_forward.1} parent=47 // pred_fallthru
        _
    $region48: #{lstm_model_forward.1} parent=5 // pred_fallthru
      _
    %p287 = scmp.le.s32.totalorder 1, %s15
    %p288 = scmp.lt.s32.totalorder %s15, 3
    %p289 = pnand %p287, %p288
    %p290 = pneg %p289
    // Predicated region
    $region53: #{lstm_model_forward.1} parent=5 // pred_check
      _
    $region54: #{lstm_model_forward.1} parent=5 // pred_check_branch
      %292 = sbr.rel (%p289) target = $region56
    $region55: #{lstm_model_forward.1} parent=5 // pred_region
      %s293 = ssub.s32 %s15, 1
      %s294 = smul.u32 4, %s20
      %p295 = scmp.lt.s32.totalorder %s294, 7
      %s296 = scalar_select %p295, %s294, 7
      %s297 = smul.addr %s296, 4
      %s298 = scalar_lea.vmem %s0, %s297
      %p299 = pneg %p41
      %p300 = pneg %p38
      %p301 = pneg %p62
      %p302 = pneg %p59
      %p303 = pneg %p83
      %p304 = pneg %p80
      %p305 = pneg %p104
      %p306 = pneg %p101
      %p307 = pneg %p125
      %p308 = pneg %p122
      %p309 = pneg %p146
      %p310 = pneg %p143
      %p311 = pneg %p167
      %p312 = pneg %p164
      %p313 = pneg %p188
      %p314 = pneg %p185
      %p315 = pneg %p209
      %p316 = pneg %p206
      %p317 = pneg %p235
      %p318 = pneg %p232
      %s319 = smul.u32 4, %s20
      %p320 = scmp.lt.s32.totalorder %s319, 7
      %s321 = scalar_select %p320, %s319, 7
      %s322 = smul.addr %s321, 8
      %s323 = scalar_lea.vmem %s9, %s322
      %s324 = smul.u32 4, %s20
      %p325 = scmp.lt.s32.totalorder %s324, 7
      %s326 = scalar_select %p325, %s324, 7
      %s327 = smul.addr %s326, 4
      %s328 = scalar_lea.vmem %s0, %s327
      %s329 = smul.u32 4, %s20
      %s330 = smul.u32 4, %s20
      %p331 = scmp.lt.s32.totalorder %s330, 7
      %s332 = scalar_select %p331, %s330, 7
      %s333 = smul.addr %s332, 8
      %s334 = scalar_lea.vmem %s9, %s333
      %s335 = smul.u32 4, %s20
      %p337 = scmp.eq.s32.totalorder %s20, 0
      // Predicated region
      $region57: #{lstm_model_forward.1} parent=55 // pred_check
        %p338 = pneg %p337
      $region58: #{lstm_model_forward.1} parent=55 // pred_check_branch
        %340 = sbr.rel (%p338) target = $region60
      $region59: #{lstm_model_forward.1} parent=55 // pred_region
        %341 = vst [vmem:[#allocation4] sm:$0xff] 0.0
        %342 = vst [vmem:[#allocation4 + $0x8] sm:$0xff] 0.0
        %343 = vst [vmem:[#allocation5] sm:$0xff] 0.0
        %344 = vst [vmem:[#allocation5 + $0x8] sm:$0xff] 0.0
      $region60: #{lstm_model_forward.1} parent=55 // pred_fallthru
        _
      %v345 = vld [vmem:[%s328] sm:$0xf]
      %v346 = vld [vmem:[%s328 + $0x4] sm:$0xf]
      %v347 = vld [vmem:[%s328 + $0x8] sm:$0xf]
      %v348 = vld [vmem:[%s328 + $0xc] sm:$0xf]
      %v349 = vld [vmem:[%s1] sm:$0xff]
      %v350 = vld [vmem:[%s1 + $0x8] sm:$0xff]
      %v351 = vld [vmem:[%s1 + $0x10] sm:$0xff]
      %v352 = vld [vmem:[%s1 + $0x18] sm:$0xff]
      %v353 = vld [vmem:[%s1 + $0x20] sm:$0xff]
      %v354 = vld [vmem:[%s1 + $0x28] sm:$0xff]
      %v355 = vld [vmem:[%s1 + $0x30] sm:$0xff]
      %v356 = vld [vmem:[%s1 + $0x38] sm:$0xff]
      %v357 = vld [vmem:[%s3] sm:$0xf]
      %v359 = vperm.slane %v357, 0
      %v360 = vperm.slane %v357, 1
      %v361 = vperm.slane %v357, 2
      %v362 = vperm.slane %v357, 3
      %v371 = vunpack.c.l.b16 %v345
      %v372 = vunpack.c.l.b16 %v346
      %v373 = vunpack.c.l.b16 %v347
      %v374 = vunpack.c.l.b16 %v348
      %v375 = vpack.c.b16 %v372, %v371
      %v376 = vpack.c.b16 %v374, %v373
      %v385 = vunpack.c.l.b16 %v349
      %v386 = vunpack.c.h.b16 %v349
      %v387 = vunpack.c.l.b16 %v350
      %v388 = vunpack.c.h.b16 %v350
      %v389 = vunpack.c.l.b16 %v351
      %v390 = vunpack.c.h.b16 %v351
      %v391 = vunpack.c.l.b16 %v352
      %v392 = vunpack.c.h.b16 %v352
      %v393 = vunpack.c.l.b16 %v353
      %v394 = vunpack.c.h.b16 %v353
      %v395 = vunpack.c.l.b16 %v354
      %v396 = vunpack.c.h.b16 %v354
      %v397 = vunpack.c.l.b16 %v355
      %v398 = vunpack.c.h.b16 %v355
      %v399 = vunpack.c.l.b16 %v356
      %v400 = vunpack.c.h.b16 %v356
      %v401 = vpack.c.b16 %v389, %v385
      %v402 = vpack.c.b16 %v390, %v386
      %v403 = vpack.c.b16 %v391, %v387
      %v404 = vpack.c.b16 %v392, %v388
      %v405 = vpack.c.b16 %v397, %v393
      %v406 = vpack.c.b16 %v398, %v394
      %v407 = vpack.c.b16 %v399, %v395
      %v408 = vpack.c.b16 %v400, %v396
      %vm417 = vcmask 261120
      %v419 = vsel %vm417, %v375, 0
      %v422 = vsel %vm417, %v376, 0
      %424 = vmatpush.bf16.msra.mxu0 0
      %425 = vmatpush.bf16.msra.mxu0 0
      %426 = vmatpush.bf16.msra.mxu0 0
      %427 = vmatpush.bf16.msra.mxu0 0
      %428 = vmatpush.bf16.msra.mxu0 0
      %429 = vmatpush.bf16.msra.mxu0 0
      %430 = vmatpush.bf16.msra.mxu0 %v405
      %431 = vmatpush.bf16.msra.mxu0 %v401
      %432 = vmatmul.bf16.gmra.mxu0 %v419
      %v433 = vpop.f32.mrf.mxu0
      %v434 = vadd.f32 %v359, %v433
      %v435 = vpop.f32.mrf.mxu0
      %v436 = vadd.f32 %v359, %v435
      %437 = vmatmul.bf16.gmra.mxu0 %v422
      %v438 = vpop.f32.mrf.mxu0
      %v439 = vadd.f32 %v359, %v438
      %v440 = vpop.f32.mrf.mxu0
      %v441 = vadd.f32 %v359, %v440
      %442 = vdwg.mxu0
      %443 = vmatpush.bf16.msra.mxu0 0
      %444 = vmatpush.bf16.msra.mxu0 0
      %445 = vmatpush.bf16.msra.mxu0 0
      %446 = vmatpush.bf16.msra.mxu0 0
      %447 = vmatpush.bf16.msra.mxu0 0
      %448 = vmatpush.bf16.msra.mxu0 0
      %449 = vmatpush.bf16.msra.mxu0 %v406
      %450 = vmatpush.bf16.msra.mxu0 %v402
      %451 = vmatmul.bf16.gmra.mxu0 %v419
      %v452 = vpop.f32.mrf.mxu0
      %v453 = vadd.f32 %v360, %v452
      %v454 = vpop.f32.mrf.mxu0
      %v455 = vadd.f32 %v360, %v454
      %456 = vmatmul.bf16.gmra.mxu0 %v422
      %v457 = vpop.f32.mrf.mxu0
      %v458 = vadd.f32 %v360, %v457
      %v459 = vpop.f32.mrf.mxu0
      %v460 = vadd.f32 %v360, %v459
      %461 = vdwg.mxu0
      %462 = vmatpush.bf16.msra.mxu0 0
      %463 = vmatpush.bf16.msra.mxu0 0
      %464 = vmatpush.bf16.msra.mxu0 0
      %465 = vmatpush.bf16.msra.mxu0 0
      %466 = vmatpush.bf16.msra.mxu0 0
      %467 = vmatpush.bf16.msra.mxu0 0
      %468 = vmatpush.bf16.msra.mxu0 %v407
      %469 = vmatpush.bf16.msra.mxu0 %v403
      %470 = vmatmul.bf16.gmra.mxu0 %v419
      %v471 = vpop.f32.mrf.mxu0
      %v472 = vadd.f32 %v361, %v471
      %v473 = vpop.f32.mrf.mxu0
      %v474 = vadd.f32 %v361, %v473
      %475 = vmatmul.bf16.gmra.mxu0 %v422
      %v476 = vpop.f32.mrf.mxu0
      %v477 = vadd.f32 %v361, %v476
      %v478 = vpop.f32.mrf.mxu0
      %v479 = vadd.f32 %v361, %v478
      %480 = vdwg.mxu0
      %481 = vmatpush.bf16.msra.mxu0 0
      %482 = vmatpush.bf16.msra.mxu0 0
      %483 = vmatpush.bf16.msra.mxu0 0
      %484 = vmatpush.bf16.msra.mxu0 0
      %485 = vmatpush.bf16.msra.mxu0 0
      %486 = vmatpush.bf16.msra.mxu0 0
      %487 = vmatpush.bf16.msra.mxu0 %v408
      %488 = vmatpush.bf16.msra.mxu0 %v404
      %489 = vmatmul.bf16.gmra.mxu0 %v419
      %v490 = vpop.f32.mrf.mxu0
      %v491 = vadd.f32 %v362, %v490
      %v492 = vpop.f32.mrf.mxu0
      %v493 = vadd.f32 %v362, %v492
      %494 = vmatmul.bf16.gmra.mxu0 %v422
      %v495 = vpop.f32.mrf.mxu0
      %v496 = vadd.f32 %v362, %v495
      %v497 = vpop.f32.mrf.mxu0
      %v498 = vadd.f32 %v362, %v497
      %499 = vdwg.mxu0
      %500 = vst [vmem:[#allocation2] sm:$0xff] %v434
      %501 = vst [vmem:[#allocation2 + $0x8] sm:$0xff] %v453
      %502 = vst [vmem:[#allocation2 + $0x10] sm:$0xff] %v472
      %503 = vst [vmem:[#allocation2 + $0x18] sm:$0xff] %v491
      %504 = vst [vmem:[#allocation2 + $0x20] sm:$0xff] %v436
      %505 = vst [vmem:[#allocation2 + $0x28] sm:$0xff] %v455
      %506 = vst [vmem:[#allocation2 + $0x30] sm:$0xff] %v474
      %507 = vst [vmem:[#allocation2 + $0x38] sm:$0xff] %v493
      %508 = vst [vmem:[#allocation2 + $0x40] sm:$0xff] %v439
      %509 = vst [vmem:[#allocation2 + $0x48] sm:$0xff] %v458
      %510 = vst [vmem:[#allocation2 + $0x50] sm:$0xff] %v477
      %511 = vst [vmem:[#allocation2 + $0x58] sm:$0xff] %v496
      %512 = vst [vmem:[#allocation2 + $0x60] sm:$0xff] %v441
      %513 = vst [vmem:[#allocation2 + $0x68] sm:$0xff] %v460
      %514 = vst [vmem:[#allocation2 + $0x70] sm:$0xff] %v479
      %515 = vst [vmem:[#allocation2 + $0x78] sm:$0xff] %v498
      %v516 = vld [vmem:[#allocation4] sm:$0xff]
      %v517 = vpack.c.bf16 %v516, %v516
      %v518 = vld [vmem:[#allocation5] sm:$0xff]
      %s519 = smul.u32 0, 4
      %s520 = smul.addr %s519, 8
      %s521 = scalar_lea.vmem [#allocation2], %s520
      %v522 = vld [vmem:[%s521] sm:$0xff]
      %v523 = vld [vmem:[%s521 + $0x8] sm:$0xff]
      %v524 = vld [vmem:[%s521 + $0x10] sm:$0xff]
      %v525 = vld [vmem:[%s521 + $0x18] sm:$0xff]
      %v526 = vld [vmem:[%s2] sm:$0xff]
      %v527 = vld [vmem:[%s2 + $0x8] sm:$0xff]
      %v528 = vld [vmem:[%s2 + $0x10] sm:$0xff]
      %v529 = vld [vmem:[%s2 + $0x18] sm:$0xff]
      %v530 = vld [vmem:[%s2 + $0x20] sm:$0xff]
      %v531 = vld [vmem:[%s2 + $0x28] sm:$0xff]
      %v532 = vld [vmem:[%s2 + $0x30] sm:$0xff]
      %v533 = vld [vmem:[%s2 + $0x38] sm:$0xff]
      %v534 = vld [vmem:[%s2 + $0x40] sm:$0xff]
      %v535 = vld [vmem:[%s2 + $0x48] sm:$0xff]
      %v536 = vld [vmem:[%s2 + $0x50] sm:$0xff]
      %v537 = vld [vmem:[%s2 + $0x58] sm:$0xff]
      %v538 = vld [vmem:[%s2 + $0x60] sm:$0xff]
      %v539 = vld [vmem:[%s2 + $0x68] sm:$0xff]
      %v540 = vld [vmem:[%s2 + $0x70] sm:$0xff]
      %v541 = vld [vmem:[%s2 + $0x78] sm:$0xff]
      %v542 = vld [vmem:[%s2 + $0x80] sm:$0xff]
      %v543 = vld [vmem:[%s2 + $0x88] sm:$0xff]
      %v544 = vld [vmem:[%s2 + $0x90] sm:$0xff]
      %v545 = vld [vmem:[%s2 + $0x98] sm:$0xff]
      %v546 = vld [vmem:[%s2 + $0xa0] sm:$0xff]
      %v547 = vld [vmem:[%s2 + $0xa8] sm:$0xff]
      %v548 = vld [vmem:[%s2 + $0xb0] sm:$0xff]
      %v549 = vld [vmem:[%s2 + $0xb8] sm:$0xff]
      %v550 = vld [vmem:[%s2 + $0xc0] sm:$0xff]
      %v551 = vld [vmem:[%s2 + $0xc8] sm:$0xff]
      %v552 = vld [vmem:[%s2 + $0xd0] sm:$0xff]
      %v553 = vld [vmem:[%s2 + $0xd8] sm:$0xff]
      %v554 = vld [vmem:[%s2 + $0xe0] sm:$0xff]
      %v555 = vld [vmem:[%s2 + $0xe8] sm:$0xff]
      %v556 = vld [vmem:[%s2 + $0xf0] sm:$0xff]
      %v557 = vld [vmem:[%s2 + $0xf8] sm:$0xff]
      %v590 = vunpack.c.l.b16 %v526
      %v591 = vunpack.c.h.b16 %v526
      %v592 = vunpack.c.l.b16 %v527
      %v593 = vunpack.c.h.b16 %v527
      %v594 = vunpack.c.l.b16 %v528
      %v595 = vunpack.c.h.b16 %v528
      %v596 = vunpack.c.l.b16 %v529
      %v597 = vunpack.c.h.b16 %v529
      %v598 = vunpack.c.l.b16 %v530
      %v599 = vunpack.c.h.b16 %v530
      %v600 = vunpack.c.l.b16 %v531
      %v601 = vunpack.c.h.b16 %v531
      %v602 = vunpack.c.l.b16 %v532
      %v603 = vunpack.c.h.b16 %v532
      %v604 = vunpack.c.l.b16 %v533
      %v605 = vunpack.c.h.b16 %v533
      %v606 = vunpack.c.l.b16 %v534
      %v607 = vunpack.c.h.b16 %v534
      %v608 = vunpack.c.l.b16 %v535
      %v609 = vunpack.c.h.b16 %v535
      %v610 = vunpack.c.l.b16 %v536
      %v611 = vunpack.c.h.b16 %v536
      %v612 = vunpack.c.l.b16 %v537
      %v613 = vunpack.c.h.b16 %v537
      %v614 = vunpack.c.l.b16 %v538
      %v615 = vunpack.c.h.b16 %v538
      %v616 = vunpack.c.l.b16 %v539
      %v617 = vunpack.c.h.b16 %v539
      %v618 = vunpack.c.l.b16 %v540
      %v619 = vunpack.c.h.b16 %v540
      %v620 = vunpack.c.l.b16 %v541
      %v621 = vunpack.c.h.b16 %v541
      %v622 = vunpack.c.l.b16 %v542
      %v623 = vunpack.c.h.b16 %v542
      %v624 = vunpack.c.l.b16 %v543
      %v625 = vunpack.c.h.b16 %v543
      %v626 = vunpack.c.l.b16 %v544
      %v627 = vunpack.c.h.b16 %v544
      %v628 = vunpack.c.l.b16 %v545
      %v629 = vunpack.c.h.b16 %v545
      %v630 = vunpack.c.l.b16 %v546
      %v631 = vunpack.c.h.b16 %v546
      %v632 = vunpack.c.l.b16 %v547
      %v633 = vunpack.c.h.b16 %v547
      %v634 = vunpack.c.l.b16 %v548
      %v635 = vunpack.c.h.b16 %v548
      %v636 = vunpack.c.l.b16 %v549
      %v637 = vunpack.c.h.b16 %v549
      %v638 = vunpack.c.l.b16 %v550
      %v639 = vunpack.c.h.b16 %v550
      %v640 = vunpack.c.l.b16 %v551
      %v641 = vunpack.c.h.b16 %v551
      %v642 = vunpack.c.l.b16 %v552
      %v643 = vunpack.c.h.b16 %v552
      %v644 = vunpack.c.l.b16 %v553
      %v645 = vunpack.c.h.b16 %v553
      %v646 = vunpack.c.l.b16 %v554
      %v647 = vunpack.c.h.b16 %v554
      %v648 = vunpack.c.l.b16 %v555
      %v649 = vunpack.c.h.b16 %v555
      %v650 = vunpack.c.l.b16 %v556
      %v651 = vunpack.c.h.b16 %v556
      %v652 = vunpack.c.l.b16 %v557
      %v653 = vunpack.c.h.b16 %v557
      %v654 = vpack.c.b16 %v594, %v590
      %v655 = vpack.c.b16 %v595, %v591
      %v656 = vpack.c.b16 %v596, %v592
      %v657 = vpack.c.b16 %v597, %v593
      %v658 = vpack.c.b16 %v602, %v598
      %v659 = vpack.c.b16 %v603, %v599
      %v660 = vpack.c.b16 %v604, %v600
      %v661 = vpack.c.b16 %v605, %v601
      %v662 = vpack.c.b16 %v610, %v606
      %v663 = vpack.c.b16 %v611, %v607
      %v664 = vpack.c.b16 %v612, %v608
      %v665 = vpack.c.b16 %v613, %v609
      %v666 = vpack.c.b16 %v618, %v614
      %v667 = vpack.c.b16 %v619, %v615
      %v668 = vpack.c.b16 %v620, %v616
      %v669 = vpack.c.b16 %v621, %v617
      %v670 = vpack.c.b16 %v626, %v622
      %v671 = vpack.c.b16 %v627, %v623
      %v672 = vpack.c.b16 %v628, %v624
      %v673 = vpack.c.b16 %v629, %v625
      %v674 = vpack.c.b16 %v634, %v630
      %v675 = vpack.c.b16 %v635, %v631
      %v676 = vpack.c.b16 %v636, %v632
      %v677 = vpack.c.b16 %v637, %v633
      %v678 = vpack.c.b16 %v642, %v638
      %v679 = vpack.c.b16 %v643, %v639
      %v680 = vpack.c.b16 %v644, %v640
      %v681 = vpack.c.b16 %v645, %v641
      %v682 = vpack.c.b16 %v650, %v646
      %v683 = vpack.c.b16 %v651, %v647
      %v684 = vpack.c.b16 %v652, %v648
      %v685 = vpack.c.b16 %v653, %v649
      %718 = vmatpush.bf16.msra.mxu0 %v682
      %719 = vmatpush.bf16.msra.mxu0 %v678
      %720 = vmatpush.bf16.msra.mxu0 %v674
      %721 = vmatpush.bf16.msra.mxu0 %v670
      %722 = vmatpush.bf16.msra.mxu0 %v666
      %723 = vmatpush.bf16.msra.mxu0 %v662
      %724 = vmatpush.bf16.msra.mxu0 %v658
      %725 = vmatpush.bf16.msra.mxu0 %v654
      %726 = vmatmul.bf16.gmra.mxu0 %v517
      %v727 = vpop.f32.mrf.mxu0
      %v728 = vadd.f32 0.0, %v727
      %v729 = vpop.f32.mrf.mxu0
      %730 = vdwg.mxu0
      %731 = vmatpush.bf16.msra.mxu0 %v683
      %732 = vmatpush.bf16.msra.mxu0 %v679
      %733 = vmatpush.bf16.msra.mxu0 %v675
      %734 = vmatpush.bf16.msra.mxu0 %v671
      %735 = vmatpush.bf16.msra.mxu0 %v667
      %736 = vmatpush.bf16.msra.mxu0 %v663
      %737 = vmatpush.bf16.msra.mxu0 %v659
      %738 = vmatpush.bf16.msra.mxu0 %v655
      %739 = vmatmul.bf16.gmra.mxu0 %v517
      %v740 = vpop.f32.mrf.mxu0
      %v741 = vadd.f32 0.0, %v740
      %v742 = vpop.f32.mrf.mxu0
      %743 = vdwg.mxu0
      %744 = vmatpush.bf16.msra.mxu0 %v684
      %745 = vmatpush.bf16.msra.mxu0 %v680
      %746 = vmatpush.bf16.msra.mxu0 %v676
      %747 = vmatpush.bf16.msra.mxu0 %v672
      %748 = vmatpush.bf16.msra.mxu0 %v668
      %749 = vmatpush.bf16.msra.mxu0 %v664
      %750 = vmatpush.bf16.msra.mxu0 %v660
      %751 = vmatpush.bf16.msra.mxu0 %v656
      %752 = vmatmul.bf16.gmra.mxu0 %v517
      %v753 = vpop.f32.mrf.mxu0
      %v754 = vadd.f32 0.0, %v753
      %v755 = vpop.f32.mrf.mxu0
      %756 = vdwg.mxu0
      %757 = vmatpush.bf16.msra.mxu0 %v685
      %758 = vmatpush.bf16.msra.mxu0 %v681
      %759 = vmatpush.bf16.msra.mxu0 %v677
      %760 = vmatpush.bf16.msra.mxu0 %v673
      %761 = vmatpush.bf16.msra.mxu0 %v669
      %762 = vmatpush.bf16.msra.mxu0 %v665
      %763 = vmatpush.bf16.msra.mxu0 %v661
      %764 = vmatpush.bf16.msra.mxu0 %v657
      %765 = vmatmul.bf16.gmra.mxu0 %v517
      %v766 = vpop.f32.mrf.mxu0
      %v767 = vadd.f32 0.0, %v766
      %v768 = vpop.f32.mrf.mxu0
      %769 = vdwg.mxu0
      %v770 = vadd.f32 %v522, %v728
      %v771 = vadd.f32 %v523, %v741
      %v772 = vadd.f32 %v524, %v754
      %v773 = vadd.f32 %v525, %v767
      %v774 = vxor.u32 %v770, 2147483648
      %v775 = vxor.u32 %v771, 2147483648
      %v776 = vxor.u32 %v772, 2147483648
      %v777 = vmul.f32 %v774, 1.442695
      %v778 = vpow.pop %v777
      %v779 = vmul.f32 %v775, 1.442695
      %v780 = vpow.pop %v779
      %v781 = vmul.f32 %v776, 1.442695
      %v782 = vpow.pop %v781
      %v783 = vadd.f32 %v778, 1.0
      %v784 = vadd.f32 %v780, 1.0
      %v785 = vadd.f32 %v782, 1.0
      %v786 = vrcp.pop %v783
      %v787 = vmul.f32 %v783, %v786
      %v788 = vsub.f32 1.0, %v787
      %v789 = vmul.f32 %v786, %v788
      %v790 = vadd.f32 %v786, %v789
      %vm791 = vweird.f32 %v783
      %vm792 = vweird.f32 %v786
      %vm793 = vmor %vm791, %vm792
      %v794 = vsel %vm793, %v786, %v790
      %v795 = vand.u32 2147483647, %v783
      %vm796 = vcmp.eq.f32.partialorder %v795, 8.507059e+37
      %v797 = vand.u32 %v783, 2147483648
      %v798 = vor.u32 1.1754944e-38, %v797
      %v799 = vsel %vm796, %v798, %v794
      %v800 = vmul.f32 1.0, %v799
      %v801 = vrcp.pop %v784
      %v802 = vmul.f32 %v784, %v801
      %v803 = vsub.f32 1.0, %v802
      %v804 = vmul.f32 %v801, %v803
      %v805 = vadd.f32 %v801, %v804
      %vm806 = vweird.f32 %v784
      %vm807 = vweird.f32 %v801
      %vm808 = vmor %vm806, %vm807
      %v809 = vsel %vm808, %v801, %v805
      %v810 = vand.u32 2147483647, %v784
      %vm811 = vcmp.eq.f32.partialorder %v810, 8.507059e+37
      %v812 = vand.u32 %v784, 2147483648
      %v813 = vor.u32 1.1754944e-38, %v812
      %v814 = vsel %vm811, %v813, %v809
      %v815 = vmul.f32 1.0, %v814
      %v816 = vrcp.pop %v785
      %v817 = vmul.f32 %v785, %v816
      %v818 = vsub.f32 1.0, %v817
      %v819 = vmul.f32 %v816, %v818
      %v820 = vadd.f32 %v816, %v819
      %vm821 = vweird.f32 %v785
      %vm822 = vweird.f32 %v816
      %vm823 = vmor %vm821, %vm822
      %v824 = vsel %vm823, %v816, %v820
      %v825 = vand.u32 2147483647, %v785
      %vm826 = vcmp.eq.f32.partialorder %v825, 8.507059e+37
      %v827 = vand.u32 %v785, 2147483648
      %v828 = vor.u32 1.1754944e-38, %v827
      %v829 = vsel %vm826, %v828, %v824
      %v830 = vmul.f32 1.0, %v829
      %v831 = vtanh.pop %v773
      %v832 = vmul.f32 %v815, %v518
      %v833 = vmul.f32 %v800, %v831
      %v834 = vadd.f32 %v832, %v833
      %v835 = vtanh.pop %v834
      %v836 = vmul.f32 %v830, %v835
      %v837 = vpack.c.bf16 %v836, %v836
      %838 = vst [vmem:[#allocation3] sm:$0xf] %v837
      %s839 = smul.u32 1, 4
      %s840 = smul.addr %s839, 8
      %s841 = scalar_lea.vmem [#allocation2], %s840
      %v842 = vld [vmem:[%s841] sm:$0xff]
      %v843 = vld [vmem:[%s841 + $0x8] sm:$0xff]
      %v844 = vld [vmem:[%s841 + $0x10] sm:$0xff]
      %v845 = vld [vmem:[%s841 + $0x18] sm:$0xff]
      %v846 = vld [vmem:[%s2] sm:$0xff]
      %v847 = vld [vmem:[%s2 + $0x8] sm:$0xff]
      %v848 = vld [vmem:[%s2 + $0x10] sm:$0xff]
      %v849 = vld [vmem:[%s2 + $0x18] sm:$0xff]
      %v850 = vld [vmem:[%s2 + $0x20] sm:$0xff]
      %v851 = vld [vmem:[%s2 + $0x28] sm:$0xff]
      %v852 = vld [vmem:[%s2 + $0x30] sm:$0xff]
      %v853 = vld [vmem:[%s2 + $0x38] sm:$0xff]
      %v854 = vld [vmem:[%s2 + $0x40] sm:$0xff]
      %v855 = vld [vmem:[%s2 + $0x48] sm:$0xff]
      %v856 = vld [vmem:[%s2 + $0x50] sm:$0xff]
      %v857 = vld [vmem:[%s2 + $0x58] sm:$0xff]
      %v858 = vld [vmem:[%s2 + $0x60] sm:$0xff]
      %v859 = vld [vmem:[%s2 + $0x68] sm:$0xff]
      %v860 = vld [vmem:[%s2 + $0x70] sm:$0xff]
      %v861 = vld [vmem:[%s2 + $0x78] sm:$0xff]
      %v862 = vld [vmem:[%s2 + $0x80] sm:$0xff]
      %v863 = vld [vmem:[%s2 + $0x88] sm:$0xff]
      %v864 = vld [vmem:[%s2 + $0x90] sm:$0xff]
      %v865 = vld [vmem:[%s2 + $0x98] sm:$0xff]
      %v866 = vld [vmem:[%s2 + $0xa0] sm:$0xff]
      %v867 = vld [vmem:[%s2 + $0xa8] sm:$0xff]
      %v868 = vld [vmem:[%s2 + $0xb0] sm:$0xff]
      %v869 = vld [vmem:[%s2 + $0xb8] sm:$0xff]
      %v870 = vld [vmem:[%s2 + $0xc0] sm:$0xff]
      %v871 = vld [vmem:[%s2 + $0xc8] sm:$0xff]
      %v872 = vld [vmem:[%s2 + $0xd0] sm:$0xff]
      %v873 = vld [vmem:[%s2 + $0xd8] sm:$0xff]
      %v874 = vld [vmem:[%s2 + $0xe0] sm:$0xff]
      %v875 = vld [vmem:[%s2 + $0xe8] sm:$0xff]
      %v876 = vld [vmem:[%s2 + $0xf0] sm:$0xff]
      %v877 = vld [vmem:[%s2 + $0xf8] sm:$0xff]
      %v910 = vunpack.c.l.b16 %v846
      %v911 = vunpack.c.h.b16 %v846
      %v912 = vunpack.c.l.b16 %v847
      %v913 = vunpack.c.h.b16 %v847
      %v914 = vunpack.c.l.b16 %v848
      %v915 = vunpack.c.h.b16 %v848
      %v916 = vunpack.c.l.b16 %v849
      %v917 = vunpack.c.h.b16 %v849
      %v918 = vunpack.c.l.b16 %v850
      %v919 = vunpack.c.h.b16 %v850
      %v920 = vunpack.c.l.b16 %v851
      %v921 = vunpack.c.h.b16 %v851
      %v922 = vunpack.c.l.b16 %v852
      %v923 = vunpack.c.h.b16 %v852
      %v924 = vunpack.c.l.b16 %v853
      %v925 = vunpack.c.h.b16 %v853
      %v926 = vunpack.c.l.b16 %v854
      %v927 = vunpack.c.h.b16 %v854
      %v928 = vunpack.c.l.b16 %v855
      %v929 = vunpack.c.h.b16 %v855
      %v930 = vunpack.c.l.b16 %v856
      %v931 = vunpack.c.h.b16 %v856
      %v932 = vunpack.c.l.b16 %v857
      %v933 = vunpack.c.h.b16 %v857
      %v934 = vunpack.c.l.b16 %v858
      %v935 = vunpack.c.h.b16 %v858
      %v936 = vunpack.c.l.b16 %v859
      %v937 = vunpack.c.h.b16 %v859
      %v938 = vunpack.c.l.b16 %v860
      %v939 = vunpack.c.h.b16 %v860
      %v940 = vunpack.c.l.b16 %v861
      %v941 = vunpack.c.h.b16 %v861
      %v942 = vunpack.c.l.b16 %v862
      %v943 = vunpack.c.h.b16 %v862
      %v944 = vunpack.c.l.b16 %v863
      %v945 = vunpack.c.h.b16 %v863
      %v946 = vunpack.c.l.b16 %v864
      %v947 = vunpack.c.h.b16 %v864
      %v948 = vunpack.c.l.b16 %v865
      %v949 = vunpack.c.h.b16 %v865
      %v950 = vunpack.c.l.b16 %v866
      %v951 = vunpack.c.h.b16 %v866
      %v952 = vunpack.c.l.b16 %v867
      %v953 = vunpack.c.h.b16 %v867
      %v954 = vunpack.c.l.b16 %v868
      %v955 = vunpack.c.h.b16 %v868
      %v956 = vunpack.c.l.b16 %v869
      %v957 = vunpack.c.h.b16 %v869
      %v958 = vunpack.c.l.b16 %v870
      %v959 = vunpack.c.h.b16 %v870
      %v960 = vunpack.c.l.b16 %v871
      %v961 = vunpack.c.h.b16 %v871
      %v962 = vunpack.c.l.b16 %v872
      %v963 = vunpack.c.h.b16 %v872
      %v964 = vunpack.c.l.b16 %v873
      %v965 = vunpack.c.h.b16 %v873
      %v966 = vunpack.c.l.b16 %v874
      %v967 = vunpack.c.h.b16 %v874
      %v968 = vunpack.c.l.b16 %v875
      %v969 = vunpack.c.h.b16 %v875
      %v970 = vunpack.c.l.b16 %v876
      %v971 = vunpack.c.h.b16 %v876
      %v972 = vunpack.c.l.b16 %v877
      %v973 = vunpack.c.h.b16 %v877
      %v974 = vpack.c.b16 %v914, %v910
      %v975 = vpack.c.b16 %v915, %v911
      %v976 = vpack.c.b16 %v916, %v912
      %v977 = vpack.c.b16 %v917, %v913
      %v978 = vpack.c.b16 %v922, %v918
      %v979 = vpack.c.b16 %v923, %v919
      %v980 = vpack.c.b16 %v924, %v920
      %v981 = vpack.c.b16 %v925, %v921
      %v982 = vpack.c.b16 %v930, %v926
      %v983 = vpack.c.b16 %v931, %v927
      %v984 = vpack.c.b16 %v932, %v928
      %v985 = vpack.c.b16 %v933, %v929
      %v986 = vpack.c.b16 %v938, %v934
      %v987 = vpack.c.b16 %v939, %v935
      %v988 = vpack.c.b16 %v940, %v936
      %v989 = vpack.c.b16 %v941, %v937
      %v990 = vpack.c.b16 %v946, %v942
      %v991 = vpack.c.b16 %v947, %v943
      %v992 = vpack.c.b16 %v948, %v944
      %v993 = vpack.c.b16 %v949, %v945
      %v994 = vpack.c.b16 %v954, %v950
      %v995 = vpack.c.b16 %v955, %v951
      %v996 = vpack.c.b16 %v956, %v952
      %v997 = vpack.c.b16 %v957, %v953
      %v998 = vpack.c.b16 %v962, %v958
      %v999 = vpack.c.b16 %v963, %v959
      %v1000 = vpack.c.b16 %v964, %v960
      %v1001 = vpack.c.b16 %v965, %v961
      %v1002 = vpack.c.b16 %v970, %v966
      %v1003 = vpack.c.b16 %v971, %v967
      %v1004 = vpack.c.b16 %v972, %v968
      %v1005 = vpack.c.b16 %v973, %v969
      %1038 = vmatpush.bf16.msra.mxu0 %v1002
      %1039 = vmatpush.bf16.msra.mxu0 %v998
      %1040 = vmatpush.bf16.msra.mxu0 %v994
      %1041 = vmatpush.bf16.msra.mxu0 %v990
      %1042 = vmatpush.bf16.msra.mxu0 %v986
      %1043 = vmatpush.bf16.msra.mxu0 %v982
      %1044 = vmatpush.bf16.msra.mxu0 %v978
      %1045 = vmatpush.bf16.msra.mxu0 %v974
      %1046 = vmatmul.bf16.gmra.mxu0 %v837
      %v1047 = vpop.f32.mrf.mxu0
      %v1048 = vadd.f32 0.0, %v1047
      %v1049 = vpop.f32.mrf.mxu0
      %1050 = vdwg.mxu0
      %1051 = vmatpush.bf16.msra.mxu0 %v1003
      %1052 = vmatpush.bf16.msra.mxu0 %v999
      %1053 = vmatpush.bf16.msra.mxu0 %v995
      %1054 = vmatpush.bf16.msra.mxu0 %v991
      %1055 = vmatpush.bf16.msra.mxu0 %v987
      %1056 = vmatpush.bf16.msra.mxu0 %v983
      %1057 = vmatpush.bf16.msra.mxu0 %v979
      %1058 = vmatpush.bf16.msra.mxu0 %v975
      %1059 = vmatmul.bf16.gmra.mxu0 %v837
      %v1060 = vpop.f32.mrf.mxu0
      %v1061 = vadd.f32 0.0, %v1060
      %v1062 = vpop.f32.mrf.mxu0
      %1063 = vdwg.mxu0
      %1064 = vmatpush.bf16.msra.mxu0 %v1004
      %1065 = vmatpush.bf16.msra.mxu0 %v1000
      %1066 = vmatpush.bf16.msra.mxu0 %v996
      %1067 = vmatpush.bf16.msra.mxu0 %v992
      %1068 = vmatpush.bf16.msra.mxu0 %v988
      %1069 = vmatpush.bf16.msra.mxu0 %v984
      %1070 = vmatpush.bf16.msra.mxu0 %v980
      %1071 = vmatpush.bf16.msra.mxu0 %v976
      %1072 = vmatmul.bf16.gmra.mxu0 %v837
      %v1073 = vpop.f32.mrf.mxu0
      %v1074 = vadd.f32 0.0, %v1073
      %v1075 = vpop.f32.mrf.mxu0
      %1076 = vdwg.mxu0
      %1077 = vmatpush.bf16.msra.mxu0 %v1005
      %1078 = vmatpush.bf16.msra.mxu0 %v1001
      %1079 = vmatpush.bf16.msra.mxu0 %v997
      %1080 = vmatpush.bf16.msra.mxu0 %v993
      %1081 = vmatpush.bf16.msra.mxu0 %v989
      %1082 = vmatpush.bf16.msra.mxu0 %v985
      %1083 = vmatpush.bf16.msra.mxu0 %v981
      %1084 = vmatpush.bf16.msra.mxu0 %v977
      %1085 = vmatmul.bf16.gmra.mxu0 %v837
      %v1086 = vpop.f32.mrf.mxu0
      %v1087 = vadd.f32 0.0, %v1086
      %v1088 = vpop.f32.mrf.mxu0
      %1089 = vdwg.mxu0
      %v1090 = vadd.f32 %v842, %v1048
      %v1091 = vadd.f32 %v843, %v1061
      %v1092 = vadd.f32 %v844, %v1074
      %v1093 = vadd.f32 %v845, %v1087
      %v1094 = vxor.u32 %v1090, 2147483648
      %v1095 = vxor.u32 %v1091, 2147483648
      %v1096 = vxor.u32 %v1092, 2147483648
      %v1097 = vmul.f32 %v1094, 1.442695
      %v1098 = vpow.pop %v1097
      %v1099 = vmul.f32 %v1095, 1.442695
      %v1100 = vpow.pop %v1099
      %v1101 = vmul.f32 %v1096, 1.442695
      %v1102 = vpow.pop %v1101
      %v1103 = vadd.f32 %v1098, 1.0
      %v1104 = vadd.f32 %v1100, 1.0
      %v1105 = vadd.f32 %v1102, 1.0
      %v1106 = vrcp.pop %v1103
      %v1107 = vmul.f32 %v1103, %v1106
      %v1108 = vsub.f32 1.0, %v1107
      %v1109 = vmul.f32 %v1106, %v1108
      %v1110 = vadd.f32 %v1106, %v1109
      %vm1111 = vweird.f32 %v1103
      %vm1112 = vweird.f32 %v1106
      %vm1113 = vmor %vm1111, %vm1112
      %v1114 = vsel %vm1113, %v1106, %v1110
      %v1115 = vand.u32 2147483647, %v1103
      %vm1116 = vcmp.eq.f32.partialorder %v1115, 8.507059e+37
      %v1117 = vand.u32 %v1103, 2147483648
      %v1118 = vor.u32 1.1754944e-38, %v1117
      %v1119 = vsel %vm1116, %v1118, %v1114
      %v1120 = vmul.f32 1.0, %v1119
      %v1121 = vrcp.pop %v1104
      %v1122 = vmul.f32 %v1104, %v1121
      %v1123 = vsub.f32 1.0, %v1122
      %v1124 = vmul.f32 %v1121, %v1123
      %v1125 = vadd.f32 %v1121, %v1124
      %vm1126 = vweird.f32 %v1104
      %vm1127 = vweird.f32 %v1121
      %vm1128 = vmor %vm1126, %vm1127
      %v1129 = vsel %vm1128, %v1121, %v1125
      %v1130 = vand.u32 2147483647, %v1104
      %vm1131 = vcmp.eq.f32.partialorder %v1130, 8.507059e+37
      %v1132 = vand.u32 %v1104, 2147483648
      %v1133 = vor.u32 1.1754944e-38, %v1132
      %v1134 = vsel %vm1131, %v1133, %v1129
      %v1135 = vmul.f32 1.0, %v1134
      %v1136 = vrcp.pop %v1105
      %v1137 = vmul.f32 %v1105, %v1136
      %v1138 = vsub.f32 1.0, %v1137
      %v1139 = vmul.f32 %v1136, %v1138
      %v1140 = vadd.f32 %v1136, %v1139
      %vm1141 = vweird.f32 %v1105
      %vm1142 = vweird.f32 %v1136
      %vm1143 = vmor %vm1141, %vm1142
      %v1144 = vsel %vm1143, %v1136, %v1140
      %v1145 = vand.u32 2147483647, %v1105
      %vm1146 = vcmp.eq.f32.partialorder %v1145, 8.507059e+37
      %v1147 = vand.u32 %v1105, 2147483648
      %v1148 = vor.u32 1.1754944e-38, %v1147
      %v1149 = vsel %vm1146, %v1148, %v1144
      %v1150 = vmul.f32 1.0, %v1149
      %v1151 = vtanh.pop %v1093
      %v1152 = vmul.f32 %v1135, %v834
      %v1153 = vmul.f32 %v1120, %v1151
      %v1154 = vadd.f32 %v1152, %v1153
      %v1155 = vtanh.pop %v1154
      %v1156 = vmul.f32 %v1150, %v1155
      %v1157 = vpack.c.bf16 %v1156, %v1156
      %s1158 = scalar_lea.vmem [#allocation3], 4
      %1159 = vst [vmem:[%s1158] sm:$0xf] %v1157
      %s1160 = smul.u32 2, 4
      %s1161 = smul.addr %s1160, 8
      %s1162 = scalar_lea.vmem [#allocation2], %s1161
      %v1163 = vld [vmem:[%s1162] sm:$0xff]
      %v1164 = vld [vmem:[%s1162 + $0x8] sm:$0xff]
      %v1165 = vld [vmem:[%s1162 + $0x10] sm:$0xff]
      %v1166 = vld [vmem:[%s1162 + $0x18] sm:$0xff]
      %v1167 = vld [vmem:[%s2] sm:$0xff]
      %v1168 = vld [vmem:[%s2 + $0x8] sm:$0xff]
      %v1169 = vld [vmem:[%s2 + $0x10] sm:$0xff]
      %v1170 = vld [vmem:[%s2 + $0x18] sm:$0xff]
      %v1171 = vld [vmem:[%s2 + $0x20] sm:$0xff]
      %v1172 = vld [vmem:[%s2 + $0x28] sm:$0xff]
      %v1173 = vld [vmem:[%s2 + $0x30] sm:$0xff]
      %v1174 = vld [vmem:[%s2 + $0x38] sm:$0xff]
      %v1175 = vld [vmem:[%s2 + $0x40] sm:$0xff]
      %v1176 = vld [vmem:[%s2 + $0x48] sm:$0xff]
      %v1177 = vld [vmem:[%s2 + $0x50] sm:$0xff]
      %v1178 = vld [vmem:[%s2 + $0x58] sm:$0xff]
      %v1179 = vld [vmem:[%s2 + $0x60] sm:$0xff]
      %v1180 = vld [vmem:[%s2 + $0x68] sm:$0xff]
      %v1181 = vld [vmem:[%s2 + $0x70] sm:$0xff]
      %v1182 = vld [vmem:[%s2 + $0x78] sm:$0xff]
      %v1183 = vld [vmem:[%s2 + $0x80] sm:$0xff]
      %v1184 = vld [vmem:[%s2 + $0x88] sm:$0xff]
      %v1185 = vld [vmem:[%s2 + $0x90] sm:$0xff]
      %v1186 = vld [vmem:[%s2 + $0x98] sm:$0xff]
      %v1187 = vld [vmem:[%s2 + $0xa0] sm:$0xff]
      %v1188 = vld [vmem:[%s2 + $0xa8] sm:$0xff]
      %v1189 = vld [vmem:[%s2 + $0xb0] sm:$0xff]
      %v1190 = vld [vmem:[%s2 + $0xb8] sm:$0xff]
      %v1191 = vld [vmem:[%s2 + $0xc0] sm:$0xff]
      %v1192 = vld [vmem:[%s2 + $0xc8] sm:$0xff]
      %v1193 = vld [vmem:[%s2 + $0xd0] sm:$0xff]
      %v1194 = vld [vmem:[%s2 + $0xd8] sm:$0xff]
      %v1195 = vld [vmem:[%s2 + $0xe0] sm:$0xff]
      %v1196 = vld [vmem:[%s2 + $0xe8] sm:$0xff]
      %v1197 = vld [vmem:[%s2 + $0xf0] sm:$0xff]
      %v1198 = vld [vmem:[%s2 + $0xf8] sm:$0xff]
      %v1231 = vunpack.c.l.b16 %v1167
      %v1232 = vunpack.c.h.b16 %v1167
      %v1233 = vunpack.c.l.b16 %v1168
      %v1234 = vunpack.c.h.b16 %v1168
      %v1235 = vunpack.c.l.b16 %v1169
      %v1236 = vunpack.c.h.b16 %v1169
      %v1237 = vunpack.c.l.b16 %v1170
      %v1238 = vunpack.c.h.b16 %v1170
      %v1239 = vunpack.c.l.b16 %v1171
      %v1240 = vunpack.c.h.b16 %v1171
      %v1241 = vunpack.c.l.b16 %v1172
      %v1242 = vunpack.c.h.b16 %v1172
      %v1243 = vunpack.c.l.b16 %v1173
      %v1244 = vunpack.c.h.b16 %v1173
      %v1245 = vunpack.c.l.b16 %v1174
      %v1246 = vunpack.c.h.b16 %v1174
      %v1247 = vunpack.c.l.b16 %v1175
      %v1248 = vunpack.c.h.b16 %v1175
      %v1249 = vunpack.c.l.b16 %v1176
      %v1250 = vunpack.c.h.b16 %v1176
      %v1251 = vunpack.c.l.b16 %v1177
      %v1252 = vunpack.c.h.b16 %v1177
      %v1253 = vunpack.c.l.b16 %v1178
      %v1254 = vunpack.c.h.b16 %v1178
      %v1255 = vunpack.c.l.b16 %v1179
      %v1256 = vunpack.c.h.b16 %v1179
      %v1257 = vunpack.c.l.b16 %v1180
      %v1258 = vunpack.c.h.b16 %v1180
      %v1259 = vunpack.c.l.b16 %v1181
      %v1260 = vunpack.c.h.b16 %v1181
      %v1261 = vunpack.c.l.b16 %v1182
      %v1262 = vunpack.c.h.b16 %v1182
      %v1263 = vunpack.c.l.b16 %v1183
      %v1264 = vunpack.c.h.b16 %v1183
      %v1265 = vunpack.c.l.b16 %v1184
      %v1266 = vunpack.c.h.b16 %v1184
      %v1267 = vunpack.c.l.b16 %v1185
      %v1268 = vunpack.c.h.b16 %v1185
      %v1269 = vunpack.c.l.b16 %v1186
      %v1270 = vunpack.c.h.b16 %v1186
      %v1271 = vunpack.c.l.b16 %v1187
      %v1272 = vunpack.c.h.b16 %v1187
      %v1273 = vunpack.c.l.b16 %v1188
      %v1274 = vunpack.c.h.b16 %v1188
      %v1275 = vunpack.c.l.b16 %v1189
      %v1276 = vunpack.c.h.b16 %v1189
      %v1277 = vunpack.c.l.b16 %v1190
      %v1278 = vunpack.c.h.b16 %v1190
      %v1279 = vunpack.c.l.b16 %v1191
      %v1280 = vunpack.c.h.b16 %v1191
      %v1281 = vunpack.c.l.b16 %v1192
      %v1282 = vunpack.c.h.b16 %v1192
      %v1283 = vunpack.c.l.b16 %v1193
      %v1284 = vunpack.c.h.b16 %v1193
      %v1285 = vunpack.c.l.b16 %v1194
      %v1286 = vunpack.c.h.b16 %v1194
      %v1287 = vunpack.c.l.b16 %v1195
      %v1288 = vunpack.c.h.b16 %v1195
      %v1289 = vunpack.c.l.b16 %v1196
      %v1290 = vunpack.c.h.b16 %v1196
      %v1291 = vunpack.c.l.b16 %v1197
      %v1292 = vunpack.c.h.b16 %v1197
      %v1293 = vunpack.c.l.b16 %v1198
      %v1294 = vunpack.c.h.b16 %v1198
      %v1295 = vpack.c.b16 %v1235, %v1231
      %v1296 = vpack.c.b16 %v1236, %v1232
      %v1297 = vpack.c.b16 %v1237, %v1233
      %v1298 = vpack.c.b16 %v1238, %v1234
      %v1299 = vpack.c.b16 %v1243, %v1239
      %v1300 = vpack.c.b16 %v1244, %v1240
      %v1301 = vpack.c.b16 %v1245, %v1241
      %v1302 = vpack.c.b16 %v1246, %v1242
      %v1303 = vpack.c.b16 %v1251, %v1247
      %v1304 = vpack.c.b16 %v1252, %v1248
      %v1305 = vpack.c.b16 %v1253, %v1249
      %v1306 = vpack.c.b16 %v1254, %v1250
      %v1307 = vpack.c.b16 %v1259, %v1255
      %v1308 = vpack.c.b16 %v1260, %v1256
      %v1309 = vpack.c.b16 %v1261, %v1257
      %v1310 = vpack.c.b16 %v1262, %v1258
      %v1311 = vpack.c.b16 %v1267, %v1263
      %v1312 = vpack.c.b16 %v1268, %v1264
      %v1313 = vpack.c.b16 %v1269, %v1265
      %v1314 = vpack.c.b16 %v1270, %v1266
      %v1315 = vpack.c.b16 %v1275, %v1271
      %v1316 = vpack.c.b16 %v1276, %v1272
      %v1317 = vpack.c.b16 %v1277, %v1273
      %v1318 = vpack.c.b16 %v1278, %v1274
      %v1319 = vpack.c.b16 %v1283, %v1279
      %v1320 = vpack.c.b16 %v1284, %v1280
      %v1321 = vpack.c.b16 %v1285, %v1281
      %v1322 = vpack.c.b16 %v1286, %v1282
      %v1323 = vpack.c.b16 %v1291, %v1287
      %v1324 = vpack.c.b16 %v1292, %v1288
      %v1325 = vpack.c.b16 %v1293, %v1289
      %v1326 = vpack.c.b16 %v1294, %v1290
      %1359 = vmatpush.bf16.msra.mxu0 %v1323
      %1360 = vmatpush.bf16.msra.mxu0 %v1319
      %1361 = vmatpush.bf16.msra.mxu0 %v1315
      %1362 = vmatpush.bf16.msra.mxu0 %v1311
      %1363 = vmatpush.bf16.msra.mxu0 %v1307
      %1364 = vmatpush.bf16.msra.mxu0 %v1303
      %1365 = vmatpush.bf16.msra.mxu0 %v1299
      %1366 = vmatpush.bf16.msra.mxu0 %v1295
      %1367 = vmatmul.bf16.gmra.mxu0 %v1157
      %v1368 = vpop.f32.mrf.mxu0
      %v1369 = vadd.f32 0.0, %v1368
      %v1370 = vpop.f32.mrf.mxu0
      %1371 = vdwg.mxu0
      %1372 = vmatpush.bf16.msra.mxu0 %v1324
      %1373 = vmatpush.bf16.msra.mxu0 %v1320
      %1374 = vmatpush.bf16.msra.mxu0 %v1316
      %1375 = vmatpush.bf16.msra.mxu0 %v1312
      %1376 = vmatpush.bf16.msra.mxu0 %v1308
      %1377 = vmatpush.bf16.msra.mxu0 %v1304
      %1378 = vmatpush.bf16.msra.mxu0 %v1300
      %1379 = vmatpush.bf16.msra.mxu0 %v1296
      %1380 = vmatmul.bf16.gmra.mxu0 %v1157
      %v1381 = vpop.f32.mrf.mxu0
      %v1382 = vadd.f32 0.0, %v1381
      %v1383 = vpop.f32.mrf.mxu0
      %1384 = vdwg.mxu0
      %1385 = vmatpush.bf16.msra.mxu0 %v1325
      %1386 = vmatpush.bf16.msra.mxu0 %v1321
      %1387 = vmatpush.bf16.msra.mxu0 %v1317
      %1388 = vmatpush.bf16.msra.mxu0 %v1313
      %1389 = vmatpush.bf16.msra.mxu0 %v1309
      %1390 = vmatpush.bf16.msra.mxu0 %v1305
      %1391 = vmatpush.bf16.msra.mxu0 %v1301
      %1392 = vmatpush.bf16.msra.mxu0 %v1297
      %1393 = vmatmul.bf16.gmra.mxu0 %v1157
      %v1394 = vpop.f32.mrf.mxu0
      %v1395 = vadd.f32 0.0, %v1394
      %v1396 = vpop.f32.mrf.mxu0
      %1397 = vdwg.mxu0
      %1398 = vmatpush.bf16.msra.mxu0 %v1326
      %1399 = vmatpush.bf16.msra.mxu0 %v1322
      %1400 = vmatpush.bf16.msra.mxu0 %v1318
      %1401 = vmatpush.bf16.msra.mxu0 %v1314
      %1402 = vmatpush.bf16.msra.mxu0 %v1310
      %1403 = vmatpush.bf16.msra.mxu0 %v1306
      %1404 = vmatpush.bf16.msra.mxu0 %v1302
      %1405 = vmatpush.bf16.msra.mxu0 %v1298
      %1406 = vmatmul.bf16.gmra.mxu0 %v1157
      %v1407 = vpop.f32.mrf.mxu0
      %v1408 = vadd.f32 0.0, %v1407
      %v1409 = vpop.f32.mrf.mxu0
      %1410 = vdwg.mxu0
      %v1411 = vadd.f32 %v1163, %v1369
      %v1412 = vadd.f32 %v1164, %v1382
      %v1413 = vadd.f32 %v1165, %v1395
      %v1414 = vadd.f32 %v1166, %v1408
      %v1415 = vxor.u32 %v1411, 2147483648
      %v1416 = vxor.u32 %v1412, 2147483648
      %v1417 = vxor.u32 %v1413, 2147483648
      %v1418 = vmul.f32 %v1415, 1.442695
      %v1419 = vpow.pop %v1418
      %v1420 = vmul.f32 %v1416, 1.442695
      %v1421 = vpow.pop %v1420
      %v1422 = vmul.f32 %v1417, 1.442695
      %v1423 = vpow.pop %v1422
      %v1424 = vadd.f32 %v1419, 1.0
      %v1425 = vadd.f32 %v1421, 1.0
      %v1426 = vadd.f32 %v1423, 1.0
      %v1427 = vrcp.pop %v1424
      %v1428 = vmul.f32 %v1424, %v1427
      %v1429 = vsub.f32 1.0, %v1428
      %v1430 = vmul.f32 %v1427, %v1429
      %v1431 = vadd.f32 %v1427, %v1430
      %vm1432 = vweird.f32 %v1424
      %vm1433 = vweird.f32 %v1427
      %vm1434 = vmor %vm1432, %vm1433
      %v1435 = vsel %vm1434, %v1427, %v1431
      %v1436 = vand.u32 2147483647, %v1424
      %vm1437 = vcmp.eq.f32.partialorder %v1436, 8.507059e+37
      %v1438 = vand.u32 %v1424, 2147483648
      %v1439 = vor.u32 1.1754944e-38, %v1438
      %v1440 = vsel %vm1437, %v1439, %v1435
      %v1441 = vmul.f32 1.0, %v1440
      %v1442 = vrcp.pop %v1425
      %v1443 = vmul.f32 %v1425, %v1442
      %v1444 = vsub.f32 1.0, %v1443
      %v1445 = vmul.f32 %v1442, %v1444
      %v1446 = vadd.f32 %v1442, %v1445
      %vm1447 = vweird.f32 %v1425
      %vm1448 = vweird.f32 %v1442
      %vm1449 = vmor %vm1447, %vm1448
      %v1450 = vsel %vm1449, %v1442, %v1446
      %v1451 = vand.u32 2147483647, %v1425
      %vm1452 = vcmp.eq.f32.partialorder %v1451, 8.507059e+37
      %v1453 = vand.u32 %v1425, 2147483648
      %v1454 = vor.u32 1.1754944e-38, %v1453
      %v1455 = vsel %vm1452, %v1454, %v1450
      %v1456 = vmul.f32 1.0, %v1455
      %v1457 = vrcp.pop %v1426
      %v1458 = vmul.f32 %v1426, %v1457
      %v1459 = vsub.f32 1.0, %v1458
      %v1460 = vmul.f32 %v1457, %v1459
      %v1461 = vadd.f32 %v1457, %v1460
      %vm1462 = vweird.f32 %v1426
      %vm1463 = vweird.f32 %v1457
      %vm1464 = vmor %vm1462, %vm1463
      %v1465 = vsel %vm1464, %v1457, %v1461
      %v1466 = vand.u32 2147483647, %v1426
      %vm1467 = vcmp.eq.f32.partialorder %v1466, 8.507059e+37
      %v1468 = vand.u32 %v1426, 2147483648
      %v1469 = vor.u32 1.1754944e-38, %v1468
      %v1470 = vsel %vm1467, %v1469, %v1465
      %v1471 = vmul.f32 1.0, %v1470
      %v1472 = vtanh.pop %v1414
      %v1473 = vmul.f32 %v1456, %v1154
      %v1474 = vmul.f32 %v1441, %v1472
      %v1475 = vadd.f32 %v1473, %v1474
      %v1476 = vtanh.pop %v1475
      %v1477 = vmul.f32 %v1471, %v1476
      %v1478 = vpack.c.bf16 %v1477, %v1477
      %s1479 = scalar_lea.vmem [#allocation3], 8
      %1480 = vst [vmem:[%s1479] sm:$0xf] %v1478
      %s1481 = smul.u32 3, 4
      %s1482 = smul.addr %s1481, 8
      %s1483 = scalar_lea.vmem [#allocation2], %s1482
      %v1484 = vld [vmem:[%s1483] sm:$0xff]
      %v1485 = vld [vmem:[%s1483 + $0x8] sm:$0xff]
      %v1486 = vld [vmem:[%s1483 + $0x10] sm:$0xff]
      %v1487 = vld [vmem:[%s1483 + $0x18] sm:$0xff]
      %v1488 = vld [vmem:[%s2] sm:$0xff]
      %v1489 = vld [vmem:[%s2 + $0x8] sm:$0xff]
      %v1490 = vld [vmem:[%s2 + $0x10] sm:$0xff]
      %v1491 = vld [vmem:[%s2 + $0x18] sm:$0xff]
      %v1492 = vld [vmem:[%s2 + $0x20] sm:$0xff]
      %v1493 = vld [vmem:[%s2 + $0x28] sm:$0xff]
      %v1494 = vld [vmem:[%s2 + $0x30] sm:$0xff]
      %v1495 = vld [vmem:[%s2 + $0x38] sm:$0xff]
      %v1496 = vld [vmem:[%s2 + $0x40] sm:$0xff]
      %v1497 = vld [vmem:[%s2 + $0x48] sm:$0xff]
      %v1498 = vld [vmem:[%s2 + $0x50] sm:$0xff]
      %v1499 = vld [vmem:[%s2 + $0x58] sm:$0xff]
      %v1500 = vld [vmem:[%s2 + $0x60] sm:$0xff]
      %v1501 = vld [vmem:[%s2 + $0x68] sm:$0xff]
      %v1502 = vld [vmem:[%s2 + $0x70] sm:$0xff]
      %v1503 = vld [vmem:[%s2 + $0x78] sm:$0xff]
      %v1504 = vld [vmem:[%s2 + $0x80] sm:$0xff]
      %v1505 = vld [vmem:[%s2 + $0x88] sm:$0xff]
      %v1506 = vld [vmem:[%s2 + $0x90] sm:$0xff]
      %v1507 = vld [vmem:[%s2 + $0x98] sm:$0xff]
      %v1508 = vld [vmem:[%s2 + $0xa0] sm:$0xff]
      %v1509 = vld [vmem:[%s2 + $0xa8] sm:$0xff]
      %v1510 = vld [vmem:[%s2 + $0xb0] sm:$0xff]
      %v1511 = vld [vmem:[%s2 + $0xb8] sm:$0xff]
      %v1512 = vld [vmem:[%s2 + $0xc0] sm:$0xff]
      %v1513 = vld [vmem:[%s2 + $0xc8] sm:$0xff]
      %v1514 = vld [vmem:[%s2 + $0xd0] sm:$0xff]
      %v1515 = vld [vmem:[%s2 + $0xd8] sm:$0xff]
      %v1516 = vld [vmem:[%s2 + $0xe0] sm:$0xff]
      %v1517 = vld [vmem:[%s2 + $0xe8] sm:$0xff]
      %v1518 = vld [vmem:[%s2 + $0xf0] sm:$0xff]
      %v1519 = vld [vmem:[%s2 + $0xf8] sm:$0xff]
      %v1552 = vunpack.c.l.b16 %v1488
      %v1553 = vunpack.c.h.b16 %v1488
      %v1554 = vunpack.c.l.b16 %v1489
      %v1555 = vunpack.c.h.b16 %v1489
      %v1556 = vunpack.c.l.b16 %v1490
      %v1557 = vunpack.c.h.b16 %v1490
      %v1558 = vunpack.c.l.b16 %v1491
      %v1559 = vunpack.c.h.b16 %v1491
      %v1560 = vunpack.c.l.b16 %v1492
      %v1561 = vunpack.c.h.b16 %v1492
      %v1562 = vunpack.c.l.b16 %v1493
      %v1563 = vunpack.c.h.b16 %v1493
      %v1564 = vunpack.c.l.b16 %v1494
      %v1565 = vunpack.c.h.b16 %v1494
      %v1566 = vunpack.c.l.b16 %v1495
      %v1567 = vunpack.c.h.b16 %v1495
      %v1568 = vunpack.c.l.b16 %v1496
      %v1569 = vunpack.c.h.b16 %v1496
      %v1570 = vunpack.c.l.b16 %v1497
      %v1571 = vunpack.c.h.b16 %v1497
      %v1572 = vunpack.c.l.b16 %v1498
      %v1573 = vunpack.c.h.b16 %v1498
      %v1574 = vunpack.c.l.b16 %v1499
      %v1575 = vunpack.c.h.b16 %v1499
      %v1576 = vunpack.c.l.b16 %v1500
      %v1577 = vunpack.c.h.b16 %v1500
      %v1578 = vunpack.c.l.b16 %v1501
      %v1579 = vunpack.c.h.b16 %v1501
      %v1580 = vunpack.c.l.b16 %v1502
      %v1581 = vunpack.c.h.b16 %v1502
      %v1582 = vunpack.c.l.b16 %v1503
      %v1583 = vunpack.c.h.b16 %v1503
      %v1584 = vunpack.c.l.b16 %v1504
      %v1585 = vunpack.c.h.b16 %v1504
      %v1586 = vunpack.c.l.b16 %v1505
      %v1587 = vunpack.c.h.b16 %v1505
      %v1588 = vunpack.c.l.b16 %v1506
      %v1589 = vunpack.c.h.b16 %v1506
      %v1590 = vunpack.c.l.b16 %v1507
      %v1591 = vunpack.c.h.b16 %v1507
      %v1592 = vunpack.c.l.b16 %v1508
      %v1593 = vunpack.c.h.b16 %v1508
      %v1594 = vunpack.c.l.b16 %v1509
      %v1595 = vunpack.c.h.b16 %v1509
      %v1596 = vunpack.c.l.b16 %v1510
      %v1597 = vunpack.c.h.b16 %v1510
      %v1598 = vunpack.c.l.b16 %v1511
      %v1599 = vunpack.c.h.b16 %v1511
      %v1600 = vunpack.c.l.b16 %v1512
      %v1601 = vunpack.c.h.b16 %v1512
      %v1602 = vunpack.c.l.b16 %v1513
      %v1603 = vunpack.c.h.b16 %v1513
      %v1604 = vunpack.c.l.b16 %v1514
      %v1605 = vunpack.c.h.b16 %v1514
      %v1606 = vunpack.c.l.b16 %v1515
      %v1607 = vunpack.c.h.b16 %v1515
      %v1608 = vunpack.c.l.b16 %v1516
      %v1609 = vunpack.c.h.b16 %v1516
      %v1610 = vunpack.c.l.b16 %v1517
      %v1611 = vunpack.c.h.b16 %v1517
      %v1612 = vunpack.c.l.b16 %v1518
      %v1613 = vunpack.c.h.b16 %v1518
      %v1614 = vunpack.c.l.b16 %v1519
      %v1615 = vunpack.c.h.b16 %v1519
      %v1616 = vpack.c.b16 %v1556, %v1552
      %v1617 = vpack.c.b16 %v1557, %v1553
      %v1618 = vpack.c.b16 %v1558, %v1554
      %v1619 = vpack.c.b16 %v1559, %v1555
      %v1620 = vpack.c.b16 %v1564, %v1560
      %v1621 = vpack.c.b16 %v1565, %v1561
      %v1622 = vpack.c.b16 %v1566, %v1562
      %v1623 = vpack.c.b16 %v1567, %v1563
      %v1624 = vpack.c.b16 %v1572, %v1568
      %v1625 = vpack.c.b16 %v1573, %v1569
      %v1626 = vpack.c.b16 %v1574, %v1570
      %v1627 = vpack.c.b16 %v1575, %v1571
      %v1628 = vpack.c.b16 %v1580, %v1576
      %v1629 = vpack.c.b16 %v1581, %v1577
      %v1630 = vpack.c.b16 %v1582, %v1578
      %v1631 = vpack.c.b16 %v1583, %v1579
      %v1632 = vpack.c.b16 %v1588, %v1584
      %v1633 = vpack.c.b16 %v1589, %v1585
      %v1634 = vpack.c.b16 %v1590, %v1586
      %v1635 = vpack.c.b16 %v1591, %v1587
      %v1636 = vpack.c.b16 %v1596, %v1592
      %v1637 = vpack.c.b16 %v1597, %v1593
      %v1638 = vpack.c.b16 %v1598, %v1594
      %v1639 = vpack.c.b16 %v1599, %v1595
      %v1640 = vpack.c.b16 %v1604, %v1600
      %v1641 = vpack.c.b16 %v1605, %v1601
      %v1642 = vpack.c.b16 %v1606, %v1602
      %v1643 = vpack.c.b16 %v1607, %v1603
      %v1644 = vpack.c.b16 %v1612, %v1608
      %v1645 = vpack.c.b16 %v1613, %v1609
      %v1646 = vpack.c.b16 %v1614, %v1610
      %v1647 = vpack.c.b16 %v1615, %v1611
      %1680 = vmatpush.bf16.msra.mxu0 %v1644
      %1681 = vmatpush.bf16.msra.mxu0 %v1640
      %1682 = vmatpush.bf16.msra.mxu0 %v1636
      %1683 = vmatpush.bf16.msra.mxu0 %v1632
      %1684 = vmatpush.bf16.msra.mxu0 %v1628
      %1685 = vmatpush.bf16.msra.mxu0 %v1624
      %1686 = vmatpush.bf16.msra.mxu0 %v1620
      %1687 = vmatpush.bf16.msra.mxu0 %v1616
      %1688 = vmatmul.bf16.gmra.mxu0 %v1478
      %v1689 = vpop.f32.mrf.mxu0
      %v1690 = vadd.f32 0.0, %v1689
      %v1691 = vpop.f32.mrf.mxu0
      %1692 = vdwg.mxu0
      %1693 = vmatpush.bf16.msra.mxu0 %v1645
      %1694 = vmatpush.bf16.msra.mxu0 %v1641
      %1695 = vmatpush.bf16.msra.mxu0 %v1637
      %1696 = vmatpush.bf16.msra.mxu0 %v1633
      %1697 = vmatpush.bf16.msra.mxu0 %v1629
      %1698 = vmatpush.bf16.msra.mxu0 %v1625
      %1699 = vmatpush.bf16.msra.mxu0 %v1621
      %1700 = vmatpush.bf16.msra.mxu0 %v1617
      %1701 = vmatmul.bf16.gmra.mxu0 %v1478
      %v1702 = vpop.f32.mrf.mxu0
      %v1703 = vadd.f32 0.0, %v1702
      %v1704 = vpop.f32.mrf.mxu0
      %1705 = vdwg.mxu0
      %1706 = vmatpush.bf16.msra.mxu0 %v1646
      %1707 = vmatpush.bf16.msra.mxu0 %v1642
      %1708 = vmatpush.bf16.msra.mxu0 %v1638
      %1709 = vmatpush.bf16.msra.mxu0 %v1634
      %1710 = vmatpush.bf16.msra.mxu0 %v1630
      %1711 = vmatpush.bf16.msra.mxu0 %v1626
      %1712 = vmatpush.bf16.msra.mxu0 %v1622
      %1713 = vmatpush.bf16.msra.mxu0 %v1618
      %1714 = vmatmul.bf16.gmra.mxu0 %v1478
      %v1715 = vpop.f32.mrf.mxu0
      %v1716 = vadd.f32 0.0, %v1715
      %v1717 = vpop.f32.mrf.mxu0
      %1718 = vdwg.mxu0
      %1719 = vmatpush.bf16.msra.mxu0 %v1647
      %1720 = vmatpush.bf16.msra.mxu0 %v1643
      %1721 = vmatpush.bf16.msra.mxu0 %v1639
      %1722 = vmatpush.bf16.msra.mxu0 %v1635
      %1723 = vmatpush.bf16.msra.mxu0 %v1631
      %1724 = vmatpush.bf16.msra.mxu0 %v1627
      %1725 = vmatpush.bf16.msra.mxu0 %v1623
      %1726 = vmatpush.bf16.msra.mxu0 %v1619
      %1727 = vmatmul.bf16.gmra.mxu0 %v1478
      %v1728 = vpop.f32.mrf.mxu0
      %v1729 = vadd.f32 0.0, %v1728
      %v1730 = vpop.f32.mrf.mxu0
      %1731 = vdwg.mxu0
      %v1732 = vadd.f32 %v1484, %v1690
      %v1733 = vadd.f32 %v1485, %v1703
      %v1734 = vadd.f32 %v1486, %v1716
      %v1735 = vadd.f32 %v1487, %v1729
      %v1736 = vxor.u32 %v1732, 2147483648
      %v1737 = vxor.u32 %v1733, 2147483648
      %v1738 = vxor.u32 %v1734, 2147483648
      %v1739 = vmul.f32 %v1736, 1.442695
      %v1740 = vpow.pop %v1739
      %v1741 = vmul.f32 %v1737, 1.442695
      %v1742 = vpow.pop %v1741
      %v1743 = vmul.f32 %v1738, 1.442695
      %v1744 = vpow.pop %v1743
      %v1745 = vadd.f32 %v1740, 1.0
      %v1746 = vadd.f32 %v1742, 1.0
      %v1747 = vadd.f32 %v1744, 1.0
      %v1748 = vrcp.pop %v1745
      %v1749 = vmul.f32 %v1745, %v1748
      %v1750 = vsub.f32 1.0, %v1749
      %v1751 = vmul.f32 %v1748, %v1750
      %v1752 = vadd.f32 %v1748, %v1751
      %vm1753 = vweird.f32 %v1745
      %vm1754 = vweird.f32 %v1748
      %vm1755 = vmor %vm1753, %vm1754
      %v1756 = vsel %vm1755, %v1748, %v1752
      %v1757 = vand.u32 2147483647, %v1745
      %vm1758 = vcmp.eq.f32.partialorder %v1757, 8.507059e+37
      %v1759 = vand.u32 %v1745, 2147483648
      %v1760 = vor.u32 1.1754944e-38, %v1759
      %v1761 = vsel %vm1758, %v1760, %v1756
      %v1762 = vmul.f32 1.0, %v1761
      %v1763 = vrcp.pop %v1746
      %v1764 = vmul.f32 %v1746, %v1763
      %v1765 = vsub.f32 1.0, %v1764
      %v1766 = vmul.f32 %v1763, %v1765
      %v1767 = vadd.f32 %v1763, %v1766
      %vm1768 = vweird.f32 %v1746
      %vm1769 = vweird.f32 %v1763
      %vm1770 = vmor %vm1768, %vm1769
      %v1771 = vsel %vm1770, %v1763, %v1767
      %v1772 = vand.u32 2147483647, %v1746
      %vm1773 = vcmp.eq.f32.partialorder %v1772, 8.507059e+37
      %v1774 = vand.u32 %v1746, 2147483648
      %v1775 = vor.u32 1.1754944e-38, %v1774
      %v1776 = vsel %vm1773, %v1775, %v1771
      %v1777 = vmul.f32 1.0, %v1776
      %v1778 = vrcp.pop %v1747
      %v1779 = vmul.f32 %v1747, %v1778
      %v1780 = vsub.f32 1.0, %v1779
      %v1781 = vmul.f32 %v1778, %v1780
      %v1782 = vadd.f32 %v1778, %v1781
      %vm1783 = vweird.f32 %v1747
      %vm1784 = vweird.f32 %v1778
      %vm1785 = vmor %vm1783, %vm1784
      %v1786 = vsel %vm1785, %v1778, %v1782
      %v1787 = vand.u32 2147483647, %v1747
      %vm1788 = vcmp.eq.f32.partialorder %v1787, 8.507059e+37
      %v1789 = vand.u32 %v1747, 2147483648
      %v1790 = vor.u32 1.1754944e-38, %v1789
      %v1791 = vsel %vm1788, %v1790, %v1786
      %v1792 = vmul.f32 1.0, %v1791
      %v1793 = vtanh.pop %v1735
      %v1794 = vmul.f32 %v1777, %v1475
      %v1795 = vmul.f32 %v1762, %v1793
      %v1796 = vadd.f32 %v1794, %v1795
      %v1797 = vtanh.pop %v1796
      %v1798 = vmul.f32 %v1792, %v1797
      %v1799 = vpack.c.bf16 %v1798, %v1798
      %s1800 = scalar_lea.vmem [#allocation3], 12
      %1801 = vst [vmem:[%s1800] sm:$0xf] %v1799
      %v1802 = vunpack.c.l.bf16 %v1799
      %1803 = vst [vmem:[#allocation4] sm:$0xff] %v1802
      %1804 = vst [vmem:[#allocation5] sm:$0xff] %v1796
      %v1805 = vld [vmem:[#allocation3] sm:$0xf]
      %v1806 = vld [vmem:[#allocation3 + $0x4] sm:$0xf]
      %v1807 = vld [vmem:[#allocation3 + $0x8] sm:$0xf]
      %v1808 = vld [vmem:[#allocation3 + $0xc] sm:$0xf]
      %v1809 = vld [vmem:[%s4] sm:$0xff]
      %v1810 = vld [vmem:[%s4 + $0x8] sm:$0xff]
      %v1811 = vld [vmem:[%s4 + $0x10] sm:$0xff]
      %v1812 = vld [vmem:[%s4 + $0x18] sm:$0xff]
      %v1813 = vld [vmem:[%s4 + $0x20] sm:$0xff]
      %v1814 = vld [vmem:[%s4 + $0x28] sm:$0xff]
      %v1815 = vld [vmem:[%s4 + $0x30] sm:$0xff]
      %v1816 = vld [vmem:[%s4 + $0x38] sm:$0xff]
      %v1817 = vld [vmem:[%s4 + $0x40] sm:$0xff]
      %v1818 = vld [vmem:[%s4 + $0x48] sm:$0xff]
      %v1819 = vld [vmem:[%s4 + $0x50] sm:$0xff]
      %v1820 = vld [vmem:[%s4 + $0x58] sm:$0xff]
      %v1821 = vld [vmem:[%s4 + $0x60] sm:$0xff]
      %v1822 = vld [vmem:[%s4 + $0x68] sm:$0xff]
      %v1823 = vld [vmem:[%s4 + $0x70] sm:$0xff]
      %v1824 = vld [vmem:[%s4 + $0x78] sm:$0xff]
      %v1825 = vld [vmem:[%s4 + $0x80] sm:$0xff]
      %v1826 = vld [vmem:[%s4 + $0x88] sm:$0xff]
      %v1827 = vld [vmem:[%s4 + $0x90] sm:$0xff]
      %v1828 = vld [vmem:[%s4 + $0x98] sm:$0xff]
      %v1829 = vld [vmem:[%s4 + $0xa0] sm:$0xff]
      %v1830 = vld [vmem:[%s4 + $0xa8] sm:$0xff]
      %v1831 = vld [vmem:[%s4 + $0xb0] sm:$0xff]
      %v1832 = vld [vmem:[%s4 + $0xb8] sm:$0xff]
      %v1833 = vld [vmem:[%s4 + $0xc0] sm:$0xff]
      %v1834 = vld [vmem:[%s4 + $0xc8] sm:$0xff]
      %v1835 = vld [vmem:[%s4 + $0xd0] sm:$0xff]
      %v1836 = vld [vmem:[%s4 + $0xd8] sm:$0xff]
      %v1837 = vld [vmem:[%s4 + $0xe0] sm:$0xff]
      %v1838 = vld [vmem:[%s4 + $0xe8] sm:$0xff]
      %v1839 = vld [vmem:[%s4 + $0xf0] sm:$0xff]
      %v1840 = vld [vmem:[%s4 + $0xf8] sm:$0xff]
      %v1841 = vld [vmem:[%s6] sm:$0xf]
      %v1843 = vperm.slane %v1841, 0
      %v1844 = vperm.slane %v1841, 1
      %v1845 = vperm.slane %v1841, 2
      %v1846 = vperm.slane %v1841, 3
      %v1855 = vunpack.c.l.b16 %v1805
      %v1856 = vunpack.c.l.b16 %v1806
      %v1857 = vunpack.c.l.b16 %v1807
      %v1858 = vunpack.c.l.b16 %v1808
      %v1859 = vpack.c.b16 %v1856, %v1855
      %v1860 = vpack.c.b16 %v1858, %v1857
      %v1895 = vunpack.c.l.b16 %v1809
      %v1896 = vunpack.c.h.b16 %v1809
      %v1897 = vunpack.c.l.b16 %v1810
      %v1898 = vunpack.c.h.b16 %v1810
      %v1899 = vunpack.c.l.b16 %v1811
      %v1900 = vunpack.c.h.b16 %v1811
      %v1901 = vunpack.c.l.b16 %v1812
      %v1902 = vunpack.c.h.b16 %v1812
      %v1903 = vunpack.c.l.b16 %v1813
      %v1904 = vunpack.c.h.b16 %v1813
      %v1905 = vunpack.c.l.b16 %v1814
      %v1906 = vunpack.c.h.b16 %v1814
      %v1907 = vunpack.c.l.b16 %v1815
      %v1908 = vunpack.c.h.b16 %v1815
      %v1909 = vunpack.c.l.b16 %v1816
      %v1910 = vunpack.c.h.b16 %v1816
      %v1911 = vunpack.c.l.b16 %v1817
      %v1912 = vunpack.c.h.b16 %v1817
      %v1913 = vunpack.c.l.b16 %v1818
      %v1914 = vunpack.c.h.b16 %v1818
      %v1915 = vunpack.c.l.b16 %v1819
      %v1916 = vunpack.c.h.b16 %v1819
      %v1917 = vunpack.c.l.b16 %v1820
      %v1918 = vunpack.c.h.b16 %v1820
      %v1919 = vunpack.c.l.b16 %v1821
      %v1920 = vunpack.c.h.b16 %v1821
      %v1921 = vunpack.c.l.b16 %v1822
      %v1922 = vunpack.c.h.b16 %v1822
      %v1923 = vunpack.c.l.b16 %v1823
      %v1924 = vunpack.c.h.b16 %v1823
      %v1925 = vunpack.c.l.b16 %v1824
      %v1926 = vunpack.c.h.b16 %v1824
      %v1927 = vunpack.c.l.b16 %v1825
      %v1928 = vunpack.c.h.b16 %v1825
      %v1929 = vunpack.c.l.b16 %v1826
      %v1930 = vunpack.c.h.b16 %v1826
      %v1931 = vunpack.c.l.b16 %v1827
      %v1932 = vunpack.c.h.b16 %v1827
      %v1933 = vunpack.c.l.b16 %v1828
      %v1934 = vunpack.c.h.b16 %v1828
      %v1935 = vunpack.c.l.b16 %v1829
      %v1936 = vunpack.c.h.b16 %v1829
      %v1937 = vunpack.c.l.b16 %v1830
      %v1938 = vunpack.c.h.b16 %v1830
      %v1939 = vunpack.c.l.b16 %v1831
      %v1940 = vunpack.c.h.b16 %v1831
      %v1941 = vunpack.c.l.b16 %v1832
      %v1942 = vunpack.c.h.b16 %v1832
      %v1943 = vunpack.c.l.b16 %v1833
      %v1944 = vunpack.c.h.b16 %v1833
      %v1945 = vunpack.c.l.b16 %v1834
      %v1946 = vunpack.c.h.b16 %v1834
      %v1947 = vunpack.c.l.b16 %v1835
      %v1948 = vunpack.c.h.b16 %v1835
      %v1949 = vunpack.c.l.b16 %v1836
      %v1950 = vunpack.c.h.b16 %v1836
      %v1951 = vunpack.c.l.b16 %v1837
      %v1952 = vunpack.c.h.b16 %v1837
      %v1953 = vunpack.c.l.b16 %v1838
      %v1954 = vunpack.c.h.b16 %v1838
      %v1955 = vunpack.c.l.b16 %v1839
      %v1956 = vunpack.c.h.b16 %v1839
      %v1957 = vunpack.c.l.b16 %v1840
      %v1958 = vunpack.c.h.b16 %v1840
      %v1959 = vpack.c.b16 %v1899, %v1895
      %v1960 = vpack.c.b16 %v1900, %v1896
      %v1961 = vpack.c.b16 %v1901, %v1897
      %v1962 = vpack.c.b16 %v1902, %v1898
      %v1963 = vpack.c.b16 %v1907, %v1903
      %v1964 = vpack.c.b16 %v1908, %v1904
      %v1965 = vpack.c.b16 %v1909, %v1905
      %v1966 = vpack.c.b16 %v1910, %v1906
      %v1967 = vpack.c.b16 %v1915, %v1911
      %v1968 = vpack.c.b16 %v1916, %v1912
      %v1969 = vpack.c.b16 %v1917, %v1913
      %v1970 = vpack.c.b16 %v1918, %v1914
      %v1971 = vpack.c.b16 %v1923, %v1919
      %v1972 = vpack.c.b16 %v1924, %v1920
      %v1973 = vpack.c.b16 %v1925, %v1921
      %v1974 = vpack.c.b16 %v1926, %v1922
      %v1975 = vpack.c.b16 %v1931, %v1927
      %v1976 = vpack.c.b16 %v1932, %v1928
      %v1977 = vpack.c.b16 %v1933, %v1929
      %v1978 = vpack.c.b16 %v1934, %v1930
      %v1979 = vpack.c.b16 %v1939, %v1935
      %v1980 = vpack.c.b16 %v1940, %v1936
      %v1981 = vpack.c.b16 %v1941, %v1937
      %v1982 = vpack.c.b16 %v1942, %v1938
      %v1983 = vpack.c.b16 %v1947, %v1943
      %v1984 = vpack.c.b16 %v1948, %v1944
      %v1985 = vpack.c.b16 %v1949, %v1945
      %v1986 = vpack.c.b16 %v1950, %v1946
      %v1987 = vpack.c.b16 %v1955, %v1951
      %v1988 = vpack.c.b16 %v1956, %v1952
      %v1989 = vpack.c.b16 %v1957, %v1953
      %v1990 = vpack.c.b16 %v1958, %v1954
      %2023 = vmatpush.bf16.msra.mxu0 %v1987
      %2024 = vmatpush.bf16.msra.mxu0 %v1983
      %2025 = vmatpush.bf16.msra.mxu0 %v1979
      %2026 = vmatpush.bf16.msra.mxu0 %v1975
      %2027 = vmatpush.bf16.msra.mxu0 %v1971
      %2028 = vmatpush.bf16.msra.mxu0 %v1967
      %2029 = vmatpush.bf16.msra.mxu0 %v1963
      %2030 = vmatpush.bf16.msra.mxu0 %v1959
      %2031 = vmatmul.bf16.gmra.mxu0 %v1859
      %v2032 = vpop.f32.mrf.mxu0
      %v2033 = vadd.f32 %v1843, %v2032
      %v2034 = vpop.f32.mrf.mxu0
      %v2035 = vadd.f32 %v1843, %v2034
      %2036 = vmatmul.bf16.gmra.mxu0 %v1860
      %v2037 = vpop.f32.mrf.mxu0
      %v2038 = vadd.f32 %v1843, %v2037
      %v2039 = vpop.f32.mrf.mxu0
      %v2040 = vadd.f32 %v1843, %v2039
      %2041 = vdwg.mxu0
      %2042 = vmatpush.bf16.msra.mxu0 %v1988
      %2043 = vmatpush.bf16.msra.mxu0 %v1984
      %2044 = vmatpush.bf16.msra.mxu0 %v1980
      %2045 = vmatpush.bf16.msra.mxu0 %v1976
      %2046 = vmatpush.bf16.msra.mxu0 %v1972
      %2047 = vmatpush.bf16.msra.mxu0 %v1968
      %2048 = vmatpush.bf16.msra.mxu0 %v1964
      %2049 = vmatpush.bf16.msra.mxu0 %v1960
      %2050 = vmatmul.bf16.gmra.mxu0 %v1859
      %v2051 = vpop.f32.mrf.mxu0
      %v2052 = vadd.f32 %v1844, %v2051
      %v2053 = vpop.f32.mrf.mxu0
      %v2054 = vadd.f32 %v1844, %v2053
      %2055 = vmatmul.bf16.gmra.mxu0 %v1860
      %v2056 = vpop.f32.mrf.mxu0
      %v2057 = vadd.f32 %v1844, %v2056
      %v2058 = vpop.f32.mrf.mxu0
      %v2059 = vadd.f32 %v1844, %v2058
      %2060 = vdwg.mxu0
      %2061 = vmatpush.bf16.msra.mxu0 %v1989
      %2062 = vmatpush.bf16.msra.mxu0 %v1985
      %2063 = vmatpush.bf16.msra.mxu0 %v1981
      %2064 = vmatpush.bf16.msra.mxu0 %v1977
      %2065 = vmatpush.bf16.msra.mxu0 %v1973
      %2066 = vmatpush.bf16.msra.mxu0 %v1969
      %2067 = vmatpush.bf16.msra.mxu0 %v1965
      %2068 = vmatpush.bf16.msra.mxu0 %v1961
      %2069 = vmatmul.bf16.gmra.mxu0 %v1859
      %v2070 = vpop.f32.mrf.mxu0
      %v2071 = vadd.f32 %v1845, %v2070
      %v2072 = vpop.f32.mrf.mxu0
      %v2073 = vadd.f32 %v1845, %v2072
      %2074 = vmatmul.bf16.gmra.mxu0 %v1860
      %v2075 = vpop.f32.mrf.mxu0
      %v2076 = vadd.f32 %v1845, %v2075
      %v2077 = vpop.f32.mrf.mxu0
      %v2078 = vadd.f32 %v1845, %v2077
      %2079 = vdwg.mxu0
      %2080 = vmatpush.bf16.msra.mxu0 %v1990
      %2081 = vmatpush.bf16.msra.mxu0 %v1986
      %2082 = vmatpush.bf16.msra.mxu0 %v1982
      %2083 = vmatpush.bf16.msra.mxu0 %v1978
      %2084 = vmatpush.bf16.msra.mxu0 %v1974
      %2085 = vmatpush.bf16.msra.mxu0 %v1970
      %2086 = vmatpush.bf16.msra.mxu0 %v1966
      %2087 = vmatpush.bf16.msra.mxu0 %v1962
      %2088 = vmatmul.bf16.gmra.mxu0 %v1859
      %v2089 = vpop.f32.mrf.mxu0
      %v2090 = vadd.f32 %v1846, %v2089
      %v2091 = vpop.f32.mrf.mxu0
      %v2092 = vadd.f32 %v1846, %v2091
      %2093 = vmatmul.bf16.gmra.mxu0 %v1860
      %v2094 = vpop.f32.mrf.mxu0
      %v2095 = vadd.f32 %v1846, %v2094
      %v2096 = vpop.f32.mrf.mxu0
      %v2097 = vadd.f32 %v1846, %v2096
      %2098 = vdwg.mxu0
      %2099 = vst [vmem:[#allocation2] sm:$0xff] %v2033
      %2100 = vst [vmem:[#allocation2 + $0x8] sm:$0xff] %v2052
      %2101 = vst [vmem:[#allocation2 + $0x10] sm:$0xff] %v2071
      %2102 = vst [vmem:[#allocation2 + $0x18] sm:$0xff] %v2090
      %2103 = vst [vmem:[#allocation2 + $0x20] sm:$0xff] %v2035
      %2104 = vst [vmem:[#allocation2 + $0x28] sm:$0xff] %v2054
      %2105 = vst [vmem:[#allocation2 + $0x30] sm:$0xff] %v2073
      %2106 = vst [vmem:[#allocation2 + $0x38] sm:$0xff] %v2092
      %2107 = vst [vmem:[#allocation2 + $0x40] sm:$0xff] %v2038
      %2108 = vst [vmem:[#allocation2 + $0x48] sm:$0xff] %v2057
      %2109 = vst [vmem:[#allocation2 + $0x50] sm:$0xff] %v2076
      %2110 = vst [vmem:[#allocation2 + $0x58] sm:$0xff] %v2095
      %2111 = vst [vmem:[#allocation2 + $0x60] sm:$0xff] %v2040
      %2112 = vst [vmem:[#allocation2 + $0x68] sm:$0xff] %v2059
      %2113 = vst [vmem:[#allocation2 + $0x70] sm:$0xff] %v2078
      %2114 = vst [vmem:[#allocation2 + $0x78] sm:$0xff] %v2097
      %s2115 = scalar_lea.vmem [#allocation4], 8
      %v2116 = vld [vmem:[%s2115] sm:$0xff]
      %v2117 = vpack.c.bf16 %v2116, %v2116
      %s2118 = scalar_lea.vmem [#allocation5], 8
      %v2119 = vld [vmem:[%s2118] sm:$0xff]
      %v2120 = vld [vmem:[%s521] sm:$0xff]
      %v2121 = vld [vmem:[%s521 + $0x8] sm:$0xff]
      %v2122 = vld [vmem:[%s521 + $0x10] sm:$0xff]
      %v2123 = vld [vmem:[%s521 + $0x18] sm:$0xff]
      %v2124 = vld [vmem:[%s5] sm:$0xff]
      %v2125 = vld [vmem:[%s5 + $0x8] sm:$0xff]
      %v2126 = vld [vmem:[%s5 + $0x10] sm:$0xff]
      %v2127 = vld [vmem:[%s5 + $0x18] sm:$0xff]
      %v2128 = vld [vmem:[%s5 + $0x20] sm:$0xff]
      %v2129 = vld [vmem:[%s5 + $0x28] sm:$0xff]
      %v2130 = vld [vmem:[%s5 + $0x30] sm:$0xff]
      %v2131 = vld [vmem:[%s5 + $0x38] sm:$0xff]
      %v2132 = vld [vmem:[%s5 + $0x40] sm:$0xff]
      %v2133 = vld [vmem:[%s5 + $0x48] sm:$0xff]
      %v2134 = vld [vmem:[%s5 + $0x50] sm:$0xff]
      %v2135 = vld [vmem:[%s5 + $0x58] sm:$0xff]
      %v2136 = vld [vmem:[%s5 + $0x60] sm:$0xff]
      %v2137 = vld [vmem:[%s5 + $0x68] sm:$0xff]
      %v2138 = vld [vmem:[%s5 + $0x70] sm:$0xff]
      %v2139 = vld [vmem:[%s5 + $0x78] sm:$0xff]
      %v2140 = vld [vmem:[%s5 + $0x80] sm:$0xff]
      %v2141 = vld [vmem:[%s5 + $0x88] sm:$0xff]
      %v2142 = vld [vmem:[%s5 + $0x90] sm:$0xff]
      %v2143 = vld [vmem:[%s5 + $0x98] sm:$0xff]
      %v2144 = vld [vmem:[%s5 + $0xa0] sm:$0xff]
      %v2145 = vld [vmem:[%s5 + $0xa8] sm:$0xff]
      %v2146 = vld [vmem:[%s5 + $0xb0] sm:$0xff]
      %v2147 = vld [vmem:[%s5 + $0xb8] sm:$0xff]
      %v2148 = vld [vmem:[%s5 + $0xc0] sm:$0xff]
      %v2149 = vld [vmem:[%s5 + $0xc8] sm:$0xff]
      %v2150 = vld [vmem:[%s5 + $0xd0] sm:$0xff]
      %v2151 = vld [vmem:[%s5 + $0xd8] sm:$0xff]
      %v2152 = vld [vmem:[%s5 + $0xe0] sm:$0xff]
      %v2153 = vld [vmem:[%s5 + $0xe8] sm:$0xff]
      %v2154 = vld [vmem:[%s5 + $0xf0] sm:$0xff]
      %v2155 = vld [vmem:[%s5 + $0xf8] sm:$0xff]
      %v2188 = vunpack.c.l.b16 %v2124
      %v2189 = vunpack.c.h.b16 %v2124
      %v2190 = vunpack.c.l.b16 %v2125
      %v2191 = vunpack.c.h.b16 %v2125
      %v2192 = vunpack.c.l.b16 %v2126
      %v2193 = vunpack.c.h.b16 %v2126
      %v2194 = vunpack.c.l.b16 %v2127
      %v2195 = vunpack.c.h.b16 %v2127
      %v2196 = vunpack.c.l.b16 %v2128
      %v2197 = vunpack.c.h.b16 %v2128
      %v2198 = vunpack.c.l.b16 %v2129
      %v2199 = vunpack.c.h.b16 %v2129
      %v2200 = vunpack.c.l.b16 %v2130
      %v2201 = vunpack.c.h.b16 %v2130
      %v2202 = vunpack.c.l.b16 %v2131
      %v2203 = vunpack.c.h.b16 %v2131
      %v2204 = vunpack.c.l.b16 %v2132
      %v2205 = vunpack.c.h.b16 %v2132
      %v2206 = vunpack.c.l.b16 %v2133
      %v2207 = vunpack.c.h.b16 %v2133
      %v2208 = vunpack.c.l.b16 %v2134
      %v2209 = vunpack.c.h.b16 %v2134
      %v2210 = vunpack.c.l.b16 %v2135
      %v2211 = vunpack.c.h.b16 %v2135
      %v2212 = vunpack.c.l.b16 %v2136
      %v2213 = vunpack.c.h.b16 %v2136
      %v2214 = vunpack.c.l.b16 %v2137
      %v2215 = vunpack.c.h.b16 %v2137
      %v2216 = vunpack.c.l.b16 %v2138
      %v2217 = vunpack.c.h.b16 %v2138
      %v2218 = vunpack.c.l.b16 %v2139
      %v2219 = vunpack.c.h.b16 %v2139
      %v2220 = vunpack.c.l.b16 %v2140
      %v2221 = vunpack.c.h.b16 %v2140
      %v2222 = vunpack.c.l.b16 %v2141
      %v2223 = vunpack.c.h.b16 %v2141
      %v2224 = vunpack.c.l.b16 %v2142
      %v2225 = vunpack.c.h.b16 %v2142
      %v2226 = vunpack.c.l.b16 %v2143
      %v2227 = vunpack.c.h.b16 %v2143
      %v2228 = vunpack.c.l.b16 %v2144
      %v2229 = vunpack.c.h.b16 %v2144
      %v2230 = vunpack.c.l.b16 %v2145
      %v2231 = vunpack.c.h.b16 %v2145
      %v2232 = vunpack.c.l.b16 %v2146
      %v2233 = vunpack.c.h.b16 %v2146
      %v2234 = vunpack.c.l.b16 %v2147
      %v2235 = vunpack.c.h.b16 %v2147
      %v2236 = vunpack.c.l.b16 %v2148
      %v2237 = vunpack.c.h.b16 %v2148
      %v2238 = vunpack.c.l.b16 %v2149
      %v2239 = vunpack.c.h.b16 %v2149
      %v2240 = vunpack.c.l.b16 %v2150
      %v2241 = vunpack.c.h.b16 %v2150
      %v2242 = vunpack.c.l.b16 %v2151
      %v2243 = vunpack.c.h.b16 %v2151
      %v2244 = vunpack.c.l.b16 %v2152
      %v2245 = vunpack.c.h.b16 %v2152
      %v2246 = vunpack.c.l.b16 %v2153
      %v2247 = vunpack.c.h.b16 %v2153
      %v2248 = vunpack.c.l.b16 %v2154
      %v2249 = vunpack.c.h.b16 %v2154
      %v2250 = vunpack.c.l.b16 %v2155
      %v2251 = vunpack.c.h.b16 %v2155
      %v2252 = vpack.c.b16 %v2192, %v2188
      %v2253 = vpack.c.b16 %v2193, %v2189
      %v2254 = vpack.c.b16 %v2194, %v2190
      %v2255 = vpack.c.b16 %v2195, %v2191
      %v2256 = vpack.c.b16 %v2200, %v2196
      %v2257 = vpack.c.b16 %v2201, %v2197
      %v2258 = vpack.c.b16 %v2202, %v2198
      %v2259 = vpack.c.b16 %v2203, %v2199
      %v2260 = vpack.c.b16 %v2208, %v2204
      %v2261 = vpack.c.b16 %v2209, %v2205
      %v2262 = vpack.c.b16 %v2210, %v2206
      %v2263 = vpack.c.b16 %v2211, %v2207
      %v2264 = vpack.c.b16 %v2216, %v2212
      %v2265 = vpack.c.b16 %v2217, %v2213
      %v2266 = vpack.c.b16 %v2218, %v2214
      %v2267 = vpack.c.b16 %v2219, %v2215
      %v2268 = vpack.c.b16 %v2224, %v2220
      %v2269 = vpack.c.b16 %v2225, %v2221
      %v2270 = vpack.c.b16 %v2226, %v2222
      %v2271 = vpack.c.b16 %v2227, %v2223
      %v2272 = vpack.c.b16 %v2232, %v2228
      %v2273 = vpack.c.b16 %v2233, %v2229
      %v2274 = vpack.c.b16 %v2234, %v2230
      %v2275 = vpack.c.b16 %v2235, %v2231
      %v2276 = vpack.c.b16 %v2240, %v2236
      %v2277 = vpack.c.b16 %v2241, %v2237
      %v2278 = vpack.c.b16 %v2242, %v2238
      %v2279 = vpack.c.b16 %v2243, %v2239
      %v2280 = vpack.c.b16 %v2248, %v2244
      %v2281 = vpack.c.b16 %v2249, %v2245
      %v2282 = vpack.c.b16 %v2250, %v2246
      %v2283 = vpack.c.b16 %v2251, %v2247
      %2316 = vmatpush.bf16.msra.mxu0 %v2280
      %2317 = vmatpush.bf16.msra.mxu0 %v2276
      %2318 = vmatpush.bf16.msra.mxu0 %v2272
      %2319 = vmatpush.bf16.msra.mxu0 %v2268
      %2320 = vmatpush.bf16.msra.mxu0 %v2264
      %2321 = vmatpush.bf16.msra.mxu0 %v2260
      %2322 = vmatpush.bf16.msra.mxu0 %v2256
      %2323 = vmatpush.bf16.msra.mxu0 %v2252
      %2324 = vmatmul.bf16.gmra.mxu0 %v2117
      %v2325 = vpop.f32.mrf.mxu0
      %v2326 = vadd.f32 0.0, %v2325
      %v2327 = vpop.f32.mrf.mxu0
      %2328 = vdwg.mxu0
      %2329 = vmatpush.bf16.msra.mxu0 %v2281
      %2330 = vmatpush.bf16.msra.mxu0 %v2277
      %2331 = vmatpush.bf16.msra.mxu0 %v2273
      %2332 = vmatpush.bf16.msra.mxu0 %v2269
      %2333 = vmatpush.bf16.msra.mxu0 %v2265
      %2334 = vmatpush.bf16.msra.mxu0 %v2261
      %2335 = vmatpush.bf16.msra.mxu0 %v2257
      %2336 = vmatpush.bf16.msra.mxu0 %v2253
      %2337 = vmatmul.bf16.gmra.mxu0 %v2117
      %v2338 = vpop.f32.mrf.mxu0
      %v2339 = vadd.f32 0.0, %v2338
      %v2340 = vpop.f32.mrf.mxu0
      %2341 = vdwg.mxu0
      %2342 = vmatpush.bf16.msra.mxu0 %v2282
      %2343 = vmatpush.bf16.msra.mxu0 %v2278
      %2344 = vmatpush.bf16.msra.mxu0 %v2274
      %2345 = vmatpush.bf16.msra.mxu0 %v2270
      %2346 = vmatpush.bf16.msra.mxu0 %v2266
      %2347 = vmatpush.bf16.msra.mxu0 %v2262
      %2348 = vmatpush.bf16.msra.mxu0 %v2258
      %2349 = vmatpush.bf16.msra.mxu0 %v2254
      %2350 = vmatmul.bf16.gmra.mxu0 %v2117
      %v2351 = vpop.f32.mrf.mxu0
      %v2352 = vadd.f32 0.0, %v2351
      %v2353 = vpop.f32.mrf.mxu0
      %2354 = vdwg.mxu0
      %2355 = vmatpush.bf16.msra.mxu0 %v2283
      %2356 = vmatpush.bf16.msra.mxu0 %v2279
      %2357 = vmatpush.bf16.msra.mxu0 %v2275
      %2358 = vmatpush.bf16.msra.mxu0 %v2271
      %2359 = vmatpush.bf16.msra.mxu0 %v2267
      %2360 = vmatpush.bf16.msra.mxu0 %v2263
      %2361 = vmatpush.bf16.msra.mxu0 %v2259
      %2362 = vmatpush.bf16.msra.mxu0 %v2255
      %2363 = vmatmul.bf16.gmra.mxu0 %v2117
      %v2364 = vpop.f32.mrf.mxu0
      %v2365 = vadd.f32 0.0, %v2364
      %v2366 = vpop.f32.mrf.mxu0
      %2367 = vdwg.mxu0
      %v2368 = vadd.f32 %v2120, %v2326
      %v2369 = vadd.f32 %v2121, %v2339
      %v2370 = vadd.f32 %v2122, %v2352
      %v2371 = vadd.f32 %v2123, %v2365
      %v2372 = vxor.u32 %v2368, 2147483648
      %v2373 = vxor.u32 %v2369, 2147483648
      %v2374 = vxor.u32 %v2370, 2147483648
      %v2375 = vmul.f32 %v2372, 1.442695
      %v2376 = vpow.pop %v2375
      %v2377 = vmul.f32 %v2373, 1.442695
      %v2378 = vpow.pop %v2377
      %v2379 = vmul.f32 %v2374, 1.442695
      %v2380 = vpow.pop %v2379
      %v2381 = vadd.f32 %v2376, 1.0
      %v2382 = vadd.f32 %v2378, 1.0
      %v2383 = vadd.f32 %v2380, 1.0
      %v2384 = vrcp.pop %v2381
      %v2385 = vmul.f32 %v2381, %v2384
      %v2386 = vsub.f32 1.0, %v2385
      %v2387 = vmul.f32 %v2384, %v2386
      %v2388 = vadd.f32 %v2384, %v2387
      %vm2389 = vweird.f32 %v2381
      %vm2390 = vweird.f32 %v2384
      %vm2391 = vmor %vm2389, %vm2390
      %v2392 = vsel %vm2391, %v2384, %v2388
      %v2393 = vand.u32 2147483647, %v2381
      %vm2394 = vcmp.eq.f32.partialorder %v2393, 8.507059e+37
      %v2395 = vand.u32 %v2381, 2147483648
      %v2396 = vor.u32 1.1754944e-38, %v2395
      %v2397 = vsel %vm2394, %v2396, %v2392
      %v2398 = vmul.f32 1.0, %v2397
      %v2399 = vrcp.pop %v2382
      %v2400 = vmul.f32 %v2382, %v2399
      %v2401 = vsub.f32 1.0, %v2400
      %v2402 = vmul.f32 %v2399, %v2401
      %v2403 = vadd.f32 %v2399, %v2402
      %vm2404 = vweird.f32 %v2382
      %vm2405 = vweird.f32 %v2399
      %vm2406 = vmor %vm2404, %vm2405
      %v2407 = vsel %vm2406, %v2399, %v2403
      %v2408 = vand.u32 2147483647, %v2382
      %vm2409 = vcmp.eq.f32.partialorder %v2408, 8.507059e+37
      %v2410 = vand.u32 %v2382, 2147483648
      %v2411 = vor.u32 1.1754944e-38, %v2410
      %v2412 = vsel %vm2409, %v2411, %v2407
      %v2413 = vmul.f32 1.0, %v2412
      %v2414 = vrcp.pop %v2383
      %v2415 = vmul.f32 %v2383, %v2414
      %v2416 = vsub.f32 1.0, %v2415
      %v2417 = vmul.f32 %v2414, %v2416
      %v2418 = vadd.f32 %v2414, %v2417
      %vm2419 = vweird.f32 %v2383
      %vm2420 = vweird.f32 %v2414
      %vm2421 = vmor %vm2419, %vm2420
      %v2422 = vsel %vm2421, %v2414, %v2418
      %v2423 = vand.u32 2147483647, %v2383
      %vm2424 = vcmp.eq.f32.partialorder %v2423, 8.507059e+37
      %v2425 = vand.u32 %v2383, 2147483648
      %v2426 = vor.u32 1.1754944e-38, %v2425
      %v2427 = vsel %vm2424, %v2426, %v2422
      %v2428 = vmul.f32 1.0, %v2427
      %v2429 = vtanh.pop %v2371
      %v2430 = vmul.f32 %v2413, %v2119
      %v2431 = vmul.f32 %v2398, %v2429
      %v2432 = vadd.f32 %v2430, %v2431
      %v2433 = vtanh.pop %v2432
      %v2434 = vmul.f32 %v2428, %v2433
      %v2435 = vpack.c.bf16 %v2434, %v2434
      %2436 = vst [vmem:[#allocation3] sm:$0xf] %v2435
      %v2437 = vld [vmem:[%s841] sm:$0xff]
      %v2438 = vld [vmem:[%s841 + $0x8] sm:$0xff]
      %v2439 = vld [vmem:[%s841 + $0x10] sm:$0xff]
      %v2440 = vld [vmem:[%s841 + $0x18] sm:$0xff]
      %v2441 = vld [vmem:[%s5] sm:$0xff]
      %v2442 = vld [vmem:[%s5 + $0x8] sm:$0xff]
      %v2443 = vld [vmem:[%s5 + $0x10] sm:$0xff]
      %v2444 = vld [vmem:[%s5 + $0x18] sm:$0xff]
      %v2445 = vld [vmem:[%s5 + $0x20] sm:$0xff]
      %v2446 = vld [vmem:[%s5 + $0x28] sm:$0xff]
      %v2447 = vld [vmem:[%s5 + $0x30] sm:$0xff]
      %v2448 = vld [vmem:[%s5 + $0x38] sm:$0xff]
      %v2449 = vld [vmem:[%s5 + $0x40] sm:$0xff]
      %v2450 = vld [vmem:[%s5 + $0x48] sm:$0xff]
      %v2451 = vld [vmem:[%s5 + $0x50] sm:$0xff]
      %v2452 = vld [vmem:[%s5 + $0x58] sm:$0xff]
      %v2453 = vld [vmem:[%s5 + $0x60] sm:$0xff]
      %v2454 = vld [vmem:[%s5 + $0x68] sm:$0xff]
      %v2455 = vld [vmem:[%s5 + $0x70] sm:$0xff]
      %v2456 = vld [vmem:[%s5 + $0x78] sm:$0xff]
      %v2457 = vld [vmem:[%s5 + $0x80] sm:$0xff]
      %v2458 = vld [vmem:[%s5 + $0x88] sm:$0xff]
      %v2459 = vld [vmem:[%s5 + $0x90] sm:$0xff]
      %v2460 = vld [vmem:[%s5 + $0x98] sm:$0xff]
      %v2461 = vld [vmem:[%s5 + $0xa0] sm:$0xff]
      %v2462 = vld [vmem:[%s5 + $0xa8] sm:$0xff]
      %v2463 = vld [vmem:[%s5 + $0xb0] sm:$0xff]
      %v2464 = vld [vmem:[%s5 + $0xb8] sm:$0xff]
      %v2465 = vld [vmem:[%s5 + $0xc0] sm:$0xff]
      %v2466 = vld [vmem:[%s5 + $0xc8] sm:$0xff]
      %v2467 = vld [vmem:[%s5 + $0xd0] sm:$0xff]
      %v2468 = vld [vmem:[%s5 + $0xd8] sm:$0xff]
      %v2469 = vld [vmem:[%s5 + $0xe0] sm:$0xff]
      %v2470 = vld [vmem:[%s5 + $0xe8] sm:$0xff]
      %v2471 = vld [vmem:[%s5 + $0xf0] sm:$0xff]
      %v2472 = vld [vmem:[%s5 + $0xf8] sm:$0xff]
      %v2505 = vunpack.c.l.b16 %v2441
      %v2506 = vunpack.c.h.b16 %v2441
      %v2507 = vunpack.c.l.b16 %v2442
      %v2508 = vunpack.c.h.b16 %v2442
      %v2509 = vunpack.c.l.b16 %v2443
      %v2510 = vunpack.c.h.b16 %v2443
      %v2511 = vunpack.c.l.b16 %v2444
      %v2512 = vunpack.c.h.b16 %v2444
      %v2513 = vunpack.c.l.b16 %v2445
      %v2514 = vunpack.c.h.b16 %v2445
      %v2515 = vunpack.c.l.b16 %v2446
      %v2516 = vunpack.c.h.b16 %v2446
      %v2517 = vunpack.c.l.b16 %v2447
      %v2518 = vunpack.c.h.b16 %v2447
      %v2519 = vunpack.c.l.b16 %v2448
      %v2520 = vunpack.c.h.b16 %v2448
      %v2521 = vunpack.c.l.b16 %v2449
      %v2522 = vunpack.c.h.b16 %v2449
      %v2523 = vunpack.c.l.b16 %v2450
      %v2524 = vunpack.c.h.b16 %v2450
      %v2525 = vunpack.c.l.b16 %v2451
      %v2526 = vunpack.c.h.b16 %v2451
      %v2527 = vunpack.c.l.b16 %v2452
      %v2528 = vunpack.c.h.b16 %v2452
      %v2529 = vunpack.c.l.b16 %v2453
      %v2530 = vunpack.c.h.b16 %v2453
      %v2531 = vunpack.c.l.b16 %v2454
      %v2532 = vunpack.c.h.b16 %v2454
      %v2533 = vunpack.c.l.b16 %v2455
      %v2534 = vunpack.c.h.b16 %v2455
      %v2535 = vunpack.c.l.b16 %v2456
      %v2536 = vunpack.c.h.b16 %v2456
      %v2537 = vunpack.c.l.b16 %v2457
      %v2538 = vunpack.c.h.b16 %v2457
      %v2539 = vunpack.c.l.b16 %v2458
      %v2540 = vunpack.c.h.b16 %v2458
      %v2541 = vunpack.c.l.b16 %v2459
      %v2542 = vunpack.c.h.b16 %v2459
      %v2543 = vunpack.c.l.b16 %v2460
      %v2544 = vunpack.c.h.b16 %v2460
      %v2545 = vunpack.c.l.b16 %v2461
      %v2546 = vunpack.c.h.b16 %v2461
      %v2547 = vunpack.c.l.b16 %v2462
      %v2548 = vunpack.c.h.b16 %v2462
      %v2549 = vunpack.c.l.b16 %v2463
      %v2550 = vunpack.c.h.b16 %v2463
      %v2551 = vunpack.c.l.b16 %v2464
      %v2552 = vunpack.c.h.b16 %v2464
      %v2553 = vunpack.c.l.b16 %v2465
      %v2554 = vunpack.c.h.b16 %v2465
      %v2555 = vunpack.c.l.b16 %v2466
      %v2556 = vunpack.c.h.b16 %v2466
      %v2557 = vunpack.c.l.b16 %v2467
      %v2558 = vunpack.c.h.b16 %v2467
      %v2559 = vunpack.c.l.b16 %v2468
      %v2560 = vunpack.c.h.b16 %v2468
      %v2561 = vunpack.c.l.b16 %v2469
      %v2562 = vunpack.c.h.b16 %v2469
      %v2563 = vunpack.c.l.b16 %v2470
      %v2564 = vunpack.c.h.b16 %v2470
      %v2565 = vunpack.c.l.b16 %v2471
      %v2566 = vunpack.c.h.b16 %v2471
      %v2567 = vunpack.c.l.b16 %v2472
      %v2568 = vunpack.c.h.b16 %v2472
      %v2569 = vpack.c.b16 %v2509, %v2505
      %v2570 = vpack.c.b16 %v2510, %v2506
      %v2571 = vpack.c.b16 %v2511, %v2507
      %v2572 = vpack.c.b16 %v2512, %v2508
      %v2573 = vpack.c.b16 %v2517, %v2513
      %v2574 = vpack.c.b16 %v2518, %v2514
      %v2575 = vpack.c.b16 %v2519, %v2515
      %v2576 = vpack.c.b16 %v2520, %v2516
      %v2577 = vpack.c.b16 %v2525, %v2521
      %v2578 = vpack.c.b16 %v2526, %v2522
      %v2579 = vpack.c.b16 %v2527, %v2523
      %v2580 = vpack.c.b16 %v2528, %v2524
      %v2581 = vpack.c.b16 %v2533, %v2529
      %v2582 = vpack.c.b16 %v2534, %v2530
      %v2583 = vpack.c.b16 %v2535, %v2531
      %v2584 = vpack.c.b16 %v2536, %v2532
      %v2585 = vpack.c.b16 %v2541, %v2537
      %v2586 = vpack.c.b16 %v2542, %v2538
      %v2587 = vpack.c.b16 %v2543, %v2539
      %v2588 = vpack.c.b16 %v2544, %v2540
      %v2589 = vpack.c.b16 %v2549, %v2545
      %v2590 = vpack.c.b16 %v2550, %v2546
      %v2591 = vpack.c.b16 %v2551, %v2547
      %v2592 = vpack.c.b16 %v2552, %v2548
      %v2593 = vpack.c.b16 %v2557, %v2553
      %v2594 = vpack.c.b16 %v2558, %v2554
      %v2595 = vpack.c.b16 %v2559, %v2555
      %v2596 = vpack.c.b16 %v2560, %v2556
      %v2597 = vpack.c.b16 %v2565, %v2561
      %v2598 = vpack.c.b16 %v2566, %v2562
      %v2599 = vpack.c.b16 %v2567, %v2563
      %v2600 = vpack.c.b16 %v2568, %v2564
      %2633 = vmatpush.bf16.msra.mxu0 %v2597
      %2634 = vmatpush.bf16.msra.mxu0 %v2593
      %2635 = vmatpush.bf16.msra.mxu0 %v2589
      %2636 = vmatpush.bf16.msra.mxu0 %v2585
      %2637 = vmatpush.bf16.msra.mxu0 %v2581
      %2638 = vmatpush.bf16.msra.mxu0 %v2577
      %2639 = vmatpush.bf16.msra.mxu0 %v2573
      %2640 = vmatpush.bf16.msra.mxu0 %v2569
      %2641 = vmatmul.bf16.gmra.mxu0 %v2435
      %v2642 = vpop.f32.mrf.mxu0
      %v2643 = vadd.f32 0.0, %v2642
      %v2644 = vpop.f32.mrf.mxu0
      %2645 = vdwg.mxu0
      %2646 = vmatpush.bf16.msra.mxu0 %v2598
      %2647 = vmatpush.bf16.msra.mxu0 %v2594
      %2648 = vmatpush.bf16.msra.mxu0 %v2590
      %2649 = vmatpush.bf16.msra.mxu0 %v2586
      %2650 = vmatpush.bf16.msra.mxu0 %v2582
      %2651 = vmatpush.bf16.msra.mxu0 %v2578
      %2652 = vmatpush.bf16.msra.mxu0 %v2574
      %2653 = vmatpush.bf16.msra.mxu0 %v2570
      %2654 = vmatmul.bf16.gmra.mxu0 %v2435
      %v2655 = vpop.f32.mrf.mxu0
      %v2656 = vadd.f32 0.0, %v2655
      %v2657 = vpop.f32.mrf.mxu0
      %2658 = vdwg.mxu0
      %2659 = vmatpush.bf16.msra.mxu0 %v2599
      %2660 = vmatpush.bf16.msra.mxu0 %v2595
      %2661 = vmatpush.bf16.msra.mxu0 %v2591
      %2662 = vmatpush.bf16.msra.mxu0 %v2587
      %2663 = vmatpush.bf16.msra.mxu0 %v2583
      %2664 = vmatpush.bf16.msra.mxu0 %v2579
      %2665 = vmatpush.bf16.msra.mxu0 %v2575
      %2666 = vmatpush.bf16.msra.mxu0 %v2571
      %2667 = vmatmul.bf16.gmra.mxu0 %v2435
      %v2668 = vpop.f32.mrf.mxu0
      %v2669 = vadd.f32 0.0, %v2668
      %v2670 = vpop.f32.mrf.mxu0
      %2671 = vdwg.mxu0
      %2672 = vmatpush.bf16.msra.mxu0 %v2600
      %2673 = vmatpush.bf16.msra.mxu0 %v2596
      %2674 = vmatpush.bf16.msra.mxu0 %v2592
      %2675 = vmatpush.bf16.msra.mxu0 %v2588
      %2676 = vmatpush.bf16.msra.mxu0 %v2584
      %2677 = vmatpush.bf16.msra.mxu0 %v2580
      %2678 = vmatpush.bf16.msra.mxu0 %v2576
      %2679 = vmatpush.bf16.msra.mxu0 %v2572
      %2680 = vmatmul.bf16.gmra.mxu0 %v2435
      %v2681 = vpop.f32.mrf.mxu0
      %v2682 = vadd.f32 0.0, %v2681
      %v2683 = vpop.f32.mrf.mxu0
      %2684 = vdwg.mxu0
      %v2685 = vadd.f32 %v2437, %v2643
      %v2686 = vadd.f32 %v2438, %v2656
      %v2687 = vadd.f32 %v2439, %v2669
      %v2688 = vadd.f32 %v2440, %v2682
      %v2689 = vxor.u32 %v2685, 2147483648
      %v2690 = vxor.u32 %v2686, 2147483648
      %v2691 = vxor.u32 %v2687, 2147483648
      %v2692 = vmul.f32 %v2689, 1.442695
      %v2693 = vpow.pop %v2692
      %v2694 = vmul.f32 %v2690, 1.442695
      %v2695 = vpow.pop %v2694
      %v2696 = vmul.f32 %v2691, 1.442695
      %v2697 = vpow.pop %v2696
      %v2698 = vadd.f32 %v2693, 1.0
      %v2699 = vadd.f32 %v2695, 1.0
      %v2700 = vadd.f32 %v2697, 1.0
      %v2701 = vrcp.pop %v2698
      %v2702 = vmul.f32 %v2698, %v2701
      %v2703 = vsub.f32 1.0, %v2702
      %v2704 = vmul.f32 %v2701, %v2703
      %v2705 = vadd.f32 %v2701, %v2704
      %vm2706 = vweird.f32 %v2698
      %vm2707 = vweird.f32 %v2701
      %vm2708 = vmor %vm2706, %vm2707
      %v2709 = vsel %vm2708, %v2701, %v2705
      %v2710 = vand.u32 2147483647, %v2698
      %vm2711 = vcmp.eq.f32.partialorder %v2710, 8.507059e+37
      %v2712 = vand.u32 %v2698, 2147483648
      %v2713 = vor.u32 1.1754944e-38, %v2712
      %v2714 = vsel %vm2711, %v2713, %v2709
      %v2715 = vmul.f32 1.0, %v2714
      %v2716 = vrcp.pop %v2699
      %v2717 = vmul.f32 %v2699, %v2716
      %v2718 = vsub.f32 1.0, %v2717
      %v2719 = vmul.f32 %v2716, %v2718
      %v2720 = vadd.f32 %v2716, %v2719
      %vm2721 = vweird.f32 %v2699
      %vm2722 = vweird.f32 %v2716
      %vm2723 = vmor %vm2721, %vm2722
      %v2724 = vsel %vm2723, %v2716, %v2720
      %v2725 = vand.u32 2147483647, %v2699
      %vm2726 = vcmp.eq.f32.partialorder %v2725, 8.507059e+37
      %v2727 = vand.u32 %v2699, 2147483648
      %v2728 = vor.u32 1.1754944e-38, %v2727
      %v2729 = vsel %vm2726, %v2728, %v2724
      %v2730 = vmul.f32 1.0, %v2729
      %v2731 = vrcp.pop %v2700
      %v2732 = vmul.f32 %v2700, %v2731
      %v2733 = vsub.f32 1.0, %v2732
      %v2734 = vmul.f32 %v2731, %v2733
      %v2735 = vadd.f32 %v2731, %v2734
      %vm2736 = vweird.f32 %v2700
      %vm2737 = vweird.f32 %v2731
      %vm2738 = vmor %vm2736, %vm2737
      %v2739 = vsel %vm2738, %v2731, %v2735
      %v2740 = vand.u32 2147483647, %v2700
      %vm2741 = vcmp.eq.f32.partialorder %v2740, 8.507059e+37
      %v2742 = vand.u32 %v2700, 2147483648
      %v2743 = vor.u32 1.1754944e-38, %v2742
      %v2744 = vsel %vm2741, %v2743, %v2739
      %v2745 = vmul.f32 1.0, %v2744
      %v2746 = vtanh.pop %v2688
      %v2747 = vmul.f32 %v2730, %v2432
      %v2748 = vmul.f32 %v2715, %v2746
      %v2749 = vadd.f32 %v2747, %v2748
      %v2750 = vtanh.pop %v2749
      %v2751 = vmul.f32 %v2745, %v2750
      %v2752 = vpack.c.bf16 %v2751, %v2751
      %2753 = vst [vmem:[%s1158] sm:$0xf] %v2752
      %v2754 = vld [vmem:[%s1162] sm:$0xff]
      %v2755 = vld [vmem:[%s1162 + $0x8] sm:$0xff]
      %v2756 = vld [vmem:[%s1162 + $0x10] sm:$0xff]
      %v2757 = vld [vmem:[%s1162 + $0x18] sm:$0xff]
      %v2758 = vld [vmem:[%s5] sm:$0xff]
      %v2759 = vld [vmem:[%s5 + $0x8] sm:$0xff]
      %v2760 = vld [vmem:[%s5 + $0x10] sm:$0xff]
      %v2761 = vld [vmem:[%s5 + $0x18] sm:$0xff]
      %v2762 = vld [vmem:[%s5 + $0x20] sm:$0xff]
      %v2763 = vld [vmem:[%s5 + $0x28] sm:$0xff]
      %v2764 = vld [vmem:[%s5 + $0x30] sm:$0xff]
      %v2765 = vld [vmem:[%s5 + $0x38] sm:$0xff]
      %v2766 = vld [vmem:[%s5 + $0x40] sm:$0xff]
      %v2767 = vld [vmem:[%s5 + $0x48] sm:$0xff]
      %v2768 = vld [vmem:[%s5 + $0x50] sm:$0xff]
      %v2769 = vld [vmem:[%s5 + $0x58] sm:$0xff]
      %v2770 = vld [vmem:[%s5 + $0x60] sm:$0xff]
      %v2771 = vld [vmem:[%s5 + $0x68] sm:$0xff]
      %v2772 = vld [vmem:[%s5 + $0x70] sm:$0xff]
      %v2773 = vld [vmem:[%s5 + $0x78] sm:$0xff]
      %v2774 = vld [vmem:[%s5 + $0x80] sm:$0xff]
      %v2775 = vld [vmem:[%s5 + $0x88] sm:$0xff]
      %v2776 = vld [vmem:[%s5 + $0x90] sm:$0xff]
      %v2777 = vld [vmem:[%s5 + $0x98] sm:$0xff]
      %v2778 = vld [vmem:[%s5 + $0xa0] sm:$0xff]
      %v2779 = vld [vmem:[%s5 + $0xa8] sm:$0xff]
      %v2780 = vld [vmem:[%s5 + $0xb0] sm:$0xff]
      %v2781 = vld [vmem:[%s5 + $0xb8] sm:$0xff]
      %v2782 = vld [vmem:[%s5 + $0xc0] sm:$0xff]
      %v2783 = vld [vmem:[%s5 + $0xc8] sm:$0xff]
      %v2784 = vld [vmem:[%s5 + $0xd0] sm:$0xff]
      %v2785 = vld [vmem:[%s5 + $0xd8] sm:$0xff]
      %v2786 = vld [vmem:[%s5 + $0xe0] sm:$0xff]
      %v2787 = vld [vmem:[%s5 + $0xe8] sm:$0xff]
      %v2788 = vld [vmem:[%s5 + $0xf0] sm:$0xff]
      %v2789 = vld [vmem:[%s5 + $0xf8] sm:$0xff]
      %v2822 = vunpack.c.l.b16 %v2758
      %v2823 = vunpack.c.h.b16 %v2758
      %v2824 = vunpack.c.l.b16 %v2759
      %v2825 = vunpack.c.h.b16 %v2759
      %v2826 = vunpack.c.l.b16 %v2760
      %v2827 = vunpack.c.h.b16 %v2760
      %v2828 = vunpack.c.l.b16 %v2761
      %v2829 = vunpack.c.h.b16 %v2761
      %v2830 = vunpack.c.l.b16 %v2762
      %v2831 = vunpack.c.h.b16 %v2762
      %v2832 = vunpack.c.l.b16 %v2763
      %v2833 = vunpack.c.h.b16 %v2763
      %v2834 = vunpack.c.l.b16 %v2764
      %v2835 = vunpack.c.h.b16 %v2764
      %v2836 = vunpack.c.l.b16 %v2765
      %v2837 = vunpack.c.h.b16 %v2765
      %v2838 = vunpack.c.l.b16 %v2766
      %v2839 = vunpack.c.h.b16 %v2766
      %v2840 = vunpack.c.l.b16 %v2767
      %v2841 = vunpack.c.h.b16 %v2767
      %v2842 = vunpack.c.l.b16 %v2768
      %v2843 = vunpack.c.h.b16 %v2768
      %v2844 = vunpack.c.l.b16 %v2769
      %v2845 = vunpack.c.h.b16 %v2769
      %v2846 = vunpack.c.l.b16 %v2770
      %v2847 = vunpack.c.h.b16 %v2770
      %v2848 = vunpack.c.l.b16 %v2771
      %v2849 = vunpack.c.h.b16 %v2771
      %v2850 = vunpack.c.l.b16 %v2772
      %v2851 = vunpack.c.h.b16 %v2772
      %v2852 = vunpack.c.l.b16 %v2773
      %v2853 = vunpack.c.h.b16 %v2773
      %v2854 = vunpack.c.l.b16 %v2774
      %v2855 = vunpack.c.h.b16 %v2774
      %v2856 = vunpack.c.l.b16 %v2775
      %v2857 = vunpack.c.h.b16 %v2775
      %v2858 = vunpack.c.l.b16 %v2776
      %v2859 = vunpack.c.h.b16 %v2776
      %v2860 = vunpack.c.l.b16 %v2777
      %v2861 = vunpack.c.h.b16 %v2777
      %v2862 = vunpack.c.l.b16 %v2778
      %v2863 = vunpack.c.h.b16 %v2778
      %v2864 = vunpack.c.l.b16 %v2779
      %v2865 = vunpack.c.h.b16 %v2779
      %v2866 = vunpack.c.l.b16 %v2780
      %v2867 = vunpack.c.h.b16 %v2780
      %v2868 = vunpack.c.l.b16 %v2781
      %v2869 = vunpack.c.h.b16 %v2781
      %v2870 = vunpack.c.l.b16 %v2782
      %v2871 = vunpack.c.h.b16 %v2782
      %v2872 = vunpack.c.l.b16 %v2783
      %v2873 = vunpack.c.h.b16 %v2783
      %v2874 = vunpack.c.l.b16 %v2784
      %v2875 = vunpack.c.h.b16 %v2784
      %v2876 = vunpack.c.l.b16 %v2785
      %v2877 = vunpack.c.h.b16 %v2785
      %v2878 = vunpack.c.l.b16 %v2786
      %v2879 = vunpack.c.h.b16 %v2786
      %v2880 = vunpack.c.l.b16 %v2787
      %v2881 = vunpack.c.h.b16 %v2787
      %v2882 = vunpack.c.l.b16 %v2788
      %v2883 = vunpack.c.h.b16 %v2788
      %v2884 = vunpack.c.l.b16 %v2789
      %v2885 = vunpack.c.h.b16 %v2789
      %v2886 = vpack.c.b16 %v2826, %v2822
      %v2887 = vpack.c.b16 %v2827, %v2823
      %v2888 = vpack.c.b16 %v2828, %v2824
      %v2889 = vpack.c.b16 %v2829, %v2825
      %v2890 = vpack.c.b16 %v2834, %v2830
      %v2891 = vpack.c.b16 %v2835, %v2831
      %v2892 = vpack.c.b16 %v2836, %v2832
      %v2893 = vpack.c.b16 %v2837, %v2833
      %v2894 = vpack.c.b16 %v2842, %v2838
      %v2895 = vpack.c.b16 %v2843, %v2839
      %v2896 = vpack.c.b16 %v2844, %v2840
      %v2897 = vpack.c.b16 %v2845, %v2841
      %v2898 = vpack.c.b16 %v2850, %v2846
      %v2899 = vpack.c.b16 %v2851, %v2847
      %v2900 = vpack.c.b16 %v2852, %v2848
      %v2901 = vpack.c.b16 %v2853, %v2849
      %v2902 = vpack.c.b16 %v2858, %v2854
      %v2903 = vpack.c.b16 %v2859, %v2855
      %v2904 = vpack.c.b16 %v2860, %v2856
      %v2905 = vpack.c.b16 %v2861, %v2857
      %v2906 = vpack.c.b16 %v2866, %v2862
      %v2907 = vpack.c.b16 %v2867, %v2863
      %v2908 = vpack.c.b16 %v2868, %v2864
      %v2909 = vpack.c.b16 %v2869, %v2865
      %v2910 = vpack.c.b16 %v2874, %v2870
      %v2911 = vpack.c.b16 %v2875, %v2871
      %v2912 = vpack.c.b16 %v2876, %v2872
      %v2913 = vpack.c.b16 %v2877, %v2873
      %v2914 = vpack.c.b16 %v2882, %v2878
      %v2915 = vpack.c.b16 %v2883, %v2879
      %v2916 = vpack.c.b16 %v2884, %v2880
      %v2917 = vpack.c.b16 %v2885, %v2881
      %2950 = vmatpush.bf16.msra.mxu0 %v2914
      %2951 = vmatpush.bf16.msra.mxu0 %v2910
      %2952 = vmatpush.bf16.msra.mxu0 %v2906
      %2953 = vmatpush.bf16.msra.mxu0 %v2902
      %2954 = vmatpush.bf16.msra.mxu0 %v2898
      %2955 = vmatpush.bf16.msra.mxu0 %v2894
      %2956 = vmatpush.bf16.msra.mxu0 %v2890
      %2957 = vmatpush.bf16.msra.mxu0 %v2886
      %2958 = vmatmul.bf16.gmra.mxu0 %v2752
      %v2959 = vpop.f32.mrf.mxu0
      %v2960 = vadd.f32 0.0, %v2959
      %v2961 = vpop.f32.mrf.mxu0
      %2962 = vdwg.mxu0
      %2963 = vmatpush.bf16.msra.mxu0 %v2915
      %2964 = vmatpush.bf16.msra.mxu0 %v2911
      %2965 = vmatpush.bf16.msra.mxu0 %v2907
      %2966 = vmatpush.bf16.msra.mxu0 %v2903
      %2967 = vmatpush.bf16.msra.mxu0 %v2899
      %2968 = vmatpush.bf16.msra.mxu0 %v2895
      %2969 = vmatpush.bf16.msra.mxu0 %v2891
      %2970 = vmatpush.bf16.msra.mxu0 %v2887
      %2971 = vmatmul.bf16.gmra.mxu0 %v2752
      %v2972 = vpop.f32.mrf.mxu0
      %v2973 = vadd.f32 0.0, %v2972
      %v2974 = vpop.f32.mrf.mxu0
      %2975 = vdwg.mxu0
      %2976 = vmatpush.bf16.msra.mxu0 %v2916
      %2977 = vmatpush.bf16.msra.mxu0 %v2912
      %2978 = vmatpush.bf16.msra.mxu0 %v2908
      %2979 = vmatpush.bf16.msra.mxu0 %v2904
      %2980 = vmatpush.bf16.msra.mxu0 %v2900
      %2981 = vmatpush.bf16.msra.mxu0 %v2896
      %2982 = vmatpush.bf16.msra.mxu0 %v2892
      %2983 = vmatpush.bf16.msra.mxu0 %v2888
      %2984 = vmatmul.bf16.gmra.mxu0 %v2752
      %v2985 = vpop.f32.mrf.mxu0
      %v2986 = vadd.f32 0.0, %v2985
      %v2987 = vpop.f32.mrf.mxu0
      %2988 = vdwg.mxu0
      %2989 = vmatpush.bf16.msra.mxu0 %v2917
      %2990 = vmatpush.bf16.msra.mxu0 %v2913
      %2991 = vmatpush.bf16.msra.mxu0 %v2909
      %2992 = vmatpush.bf16.msra.mxu0 %v2905
      %2993 = vmatpush.bf16.msra.mxu0 %v2901
      %2994 = vmatpush.bf16.msra.mxu0 %v2897
      %2995 = vmatpush.bf16.msra.mxu0 %v2893
      %2996 = vmatpush.bf16.msra.mxu0 %v2889
      %2997 = vmatmul.bf16.gmra.mxu0 %v2752
      %v2998 = vpop.f32.mrf.mxu0
      %v2999 = vadd.f32 0.0, %v2998
      %v3000 = vpop.f32.mrf.mxu0
      %3001 = vdwg.mxu0
      %v3002 = vadd.f32 %v2754, %v2960
      %v3003 = vadd.f32 %v2755, %v2973
      %v3004 = vadd.f32 %v2756, %v2986
      %v3005 = vadd.f32 %v2757, %v2999
      %v3006 = vxor.u32 %v3002, 2147483648
      %v3007 = vxor.u32 %v3003, 2147483648
      %v3008 = vxor.u32 %v3004, 2147483648
      %v3009 = vmul.f32 %v3006, 1.442695
      %v3010 = vpow.pop %v3009
      %v3011 = vmul.f32 %v3007, 1.442695
      %v3012 = vpow.pop %v3011
      %v3013 = vmul.f32 %v3008, 1.442695
      %v3014 = vpow.pop %v3013
      %v3015 = vadd.f32 %v3010, 1.0
      %v3016 = vadd.f32 %v3012, 1.0
      %v3017 = vadd.f32 %v3014, 1.0
      %v3018 = vrcp.pop %v3015
      %v3019 = vmul.f32 %v3015, %v3018
      %v3020 = vsub.f32 1.0, %v3019
      %v3021 = vmul.f32 %v3018, %v3020
      %v3022 = vadd.f32 %v3018, %v3021
      %vm3023 = vweird.f32 %v3015
      %vm3024 = vweird.f32 %v3018
      %vm3025 = vmor %vm3023, %vm3024
      %v3026 = vsel %vm3025, %v3018, %v3022
      %v3027 = vand.u32 2147483647, %v3015
      %vm3028 = vcmp.eq.f32.partialorder %v3027, 8.507059e+37
      %v3029 = vand.u32 %v3015, 2147483648
      %v3030 = vor.u32 1.1754944e-38, %v3029
      %v3031 = vsel %vm3028, %v3030, %v3026
      %v3032 = vmul.f32 1.0, %v3031
      %v3033 = vrcp.pop %v3016
      %v3034 = vmul.f32 %v3016, %v3033
      %v3035 = vsub.f32 1.0, %v3034
      %v3036 = vmul.f32 %v3033, %v3035
      %v3037 = vadd.f32 %v3033, %v3036
      %vm3038 = vweird.f32 %v3016
      %vm3039 = vweird.f32 %v3033
      %vm3040 = vmor %vm3038, %vm3039
      %v3041 = vsel %vm3040, %v3033, %v3037
      %v3042 = vand.u32 2147483647, %v3016
      %vm3043 = vcmp.eq.f32.partialorder %v3042, 8.507059e+37
      %v3044 = vand.u32 %v3016, 2147483648
      %v3045 = vor.u32 1.1754944e-38, %v3044
      %v3046 = vsel %vm3043, %v3045, %v3041
      %v3047 = vmul.f32 1.0, %v3046
      %v3048 = vrcp.pop %v3017
      %v3049 = vmul.f32 %v3017, %v3048
      %v3050 = vsub.f32 1.0, %v3049
      %v3051 = vmul.f32 %v3048, %v3050
      %v3052 = vadd.f32 %v3048, %v3051
      %vm3053 = vweird.f32 %v3017
      %vm3054 = vweird.f32 %v3048
      %vm3055 = vmor %vm3053, %vm3054
      %v3056 = vsel %vm3055, %v3048, %v3052
      %v3057 = vand.u32 2147483647, %v3017
      %vm3058 = vcmp.eq.f32.partialorder %v3057, 8.507059e+37
      %v3059 = vand.u32 %v3017, 2147483648
      %v3060 = vor.u32 1.1754944e-38, %v3059
      %v3061 = vsel %vm3058, %v3060, %v3056
      %v3062 = vmul.f32 1.0, %v3061
      %v3063 = vtanh.pop %v3005
      %v3064 = vmul.f32 %v3047, %v2749
      %v3065 = vmul.f32 %v3032, %v3063
      %v3066 = vadd.f32 %v3064, %v3065
      %v3067 = vtanh.pop %v3066
      %v3068 = vmul.f32 %v3062, %v3067
      %v3069 = vpack.c.bf16 %v3068, %v3068
      %3070 = vst [vmem:[%s1479] sm:$0xf] %v3069
      %v3071 = vld [vmem:[%s1483] sm:$0xff]
      %v3072 = vld [vmem:[%s1483 + $0x8] sm:$0xff]
      %v3073 = vld [vmem:[%s1483 + $0x10] sm:$0xff]
      %v3074 = vld [vmem:[%s1483 + $0x18] sm:$0xff]
      %v3075 = vld [vmem:[%s5] sm:$0xff]
      %v3076 = vld [vmem:[%s5 + $0x8] sm:$0xff]
      %v3077 = vld [vmem:[%s5 + $0x10] sm:$0xff]
      %v3078 = vld [vmem:[%s5 + $0x18] sm:$0xff]
      %v3079 = vld [vmem:[%s5 + $0x20] sm:$0xff]
      %v3080 = vld [vmem:[%s5 + $0x28] sm:$0xff]
      %v3081 = vld [vmem:[%s5 + $0x30] sm:$0xff]
      %v3082 = vld [vmem:[%s5 + $0x38] sm:$0xff]
      %v3083 = vld [vmem:[%s5 + $0x40] sm:$0xff]
      %v3084 = vld [vmem:[%s5 + $0x48] sm:$0xff]
      %v3085 = vld [vmem:[%s5 + $0x50] sm:$0xff]
      %v3086 = vld [vmem:[%s5 + $0x58] sm:$0xff]
      %v3087 = vld [vmem:[%s5 + $0x60] sm:$0xff]
      %v3088 = vld [vmem:[%s5 + $0x68] sm:$0xff]
      %v3089 = vld [vmem:[%s5 + $0x70] sm:$0xff]
      %v3090 = vld [vmem:[%s5 + $0x78] sm:$0xff]
      %v3091 = vld [vmem:[%s5 + $0x80] sm:$0xff]
      %v3092 = vld [vmem:[%s5 + $0x88] sm:$0xff]
      %v3093 = vld [vmem:[%s5 + $0x90] sm:$0xff]
      %v3094 = vld [vmem:[%s5 + $0x98] sm:$0xff]
      %v3095 = vld [vmem:[%s5 + $0xa0] sm:$0xff]
      %v3096 = vld [vmem:[%s5 + $0xa8] sm:$0xff]
      %v3097 = vld [vmem:[%s5 + $0xb0] sm:$0xff]
      %v3098 = vld [vmem:[%s5 + $0xb8] sm:$0xff]
      %v3099 = vld [vmem:[%s5 + $0xc0] sm:$0xff]
      %v3100 = vld [vmem:[%s5 + $0xc8] sm:$0xff]
      %v3101 = vld [vmem:[%s5 + $0xd0] sm:$0xff]
      %v3102 = vld [vmem:[%s5 + $0xd8] sm:$0xff]
      %v3103 = vld [vmem:[%s5 + $0xe0] sm:$0xff]
      %v3104 = vld [vmem:[%s5 + $0xe8] sm:$0xff]
      %v3105 = vld [vmem:[%s5 + $0xf0] sm:$0xff]
      %v3106 = vld [vmem:[%s5 + $0xf8] sm:$0xff]
      %v3139 = vunpack.c.l.b16 %v3075
      %v3140 = vunpack.c.h.b16 %v3075
      %v3141 = vunpack.c.l.b16 %v3076
      %v3142 = vunpack.c.h.b16 %v3076
      %v3143 = vunpack.c.l.b16 %v3077
      %v3144 = vunpack.c.h.b16 %v3077
      %v3145 = vunpack.c.l.b16 %v3078
      %v3146 = vunpack.c.h.b16 %v3078
      %v3147 = vunpack.c.l.b16 %v3079
      %v3148 = vunpack.c.h.b16 %v3079
      %v3149 = vunpack.c.l.b16 %v3080
      %v3150 = vunpack.c.h.b16 %v3080
      %v3151 = vunpack.c.l.b16 %v3081
      %v3152 = vunpack.c.h.b16 %v3081
      %v3153 = vunpack.c.l.b16 %v3082
      %v3154 = vunpack.c.h.b16 %v3082
      %v3155 = vunpack.c.l.b16 %v3083
      %v3156 = vunpack.c.h.b16 %v3083
      %v3157 = vunpack.c.l.b16 %v3084
      %v3158 = vunpack.c.h.b16 %v3084
      %v3159 = vunpack.c.l.b16 %v3085
      %v3160 = vunpack.c.h.b16 %v3085
      %v3161 = vunpack.c.l.b16 %v3086
      %v3162 = vunpack.c.h.b16 %v3086
      %v3163 = vunpack.c.l.b16 %v3087
      %v3164 = vunpack.c.h.b16 %v3087
      %v3165 = vunpack.c.l.b16 %v3088
      %v3166 = vunpack.c.h.b16 %v3088
      %v3167 = vunpack.c.l.b16 %v3089
      %v3168 = vunpack.c.h.b16 %v3089
      %v3169 = vunpack.c.l.b16 %v3090
      %v3170 = vunpack.c.h.b16 %v3090
      %v3171 = vunpack.c.l.b16 %v3091
      %v3172 = vunpack.c.h.b16 %v3091
      %v3173 = vunpack.c.l.b16 %v3092
      %v3174 = vunpack.c.h.b16 %v3092
      %v3175 = vunpack.c.l.b16 %v3093
      %v3176 = vunpack.c.h.b16 %v3093
      %v3177 = vunpack.c.l.b16 %v3094
      %v3178 = vunpack.c.h.b16 %v3094
      %v3179 = vunpack.c.l.b16 %v3095
      %v3180 = vunpack.c.h.b16 %v3095
      %v3181 = vunpack.c.l.b16 %v3096
      %v3182 = vunpack.c.h.b16 %v3096
      %v3183 = vunpack.c.l.b16 %v3097
      %v3184 = vunpack.c.h.b16 %v3097
      %v3185 = vunpack.c.l.b16 %v3098
      %v3186 = vunpack.c.h.b16 %v3098
      %v3187 = vunpack.c.l.b16 %v3099
      %v3188 = vunpack.c.h.b16 %v3099
      %v3189 = vunpack.c.l.b16 %v3100
      %v3190 = vunpack.c.h.b16 %v3100
      %v3191 = vunpack.c.l.b16 %v3101
      %v3192 = vunpack.c.h.b16 %v3101
      %v3193 = vunpack.c.l.b16 %v3102
      %v3194 = vunpack.c.h.b16 %v3102
      %v3195 = vunpack.c.l.b16 %v3103
      %v3196 = vunpack.c.h.b16 %v3103
      %v3197 = vunpack.c.l.b16 %v3104
      %v3198 = vunpack.c.h.b16 %v3104
      %v3199 = vunpack.c.l.b16 %v3105
      %v3200 = vunpack.c.h.b16 %v3105
      %v3201 = vunpack.c.l.b16 %v3106
      %v3202 = vunpack.c.h.b16 %v3106
      %v3203 = vpack.c.b16 %v3143, %v3139
      %v3204 = vpack.c.b16 %v3144, %v3140
      %v3205 = vpack.c.b16 %v3145, %v3141
      %v3206 = vpack.c.b16 %v3146, %v3142
      %v3207 = vpack.c.b16 %v3151, %v3147
      %v3208 = vpack.c.b16 %v3152, %v3148
      %v3209 = vpack.c.b16 %v3153, %v3149
      %v3210 = vpack.c.b16 %v3154, %v3150
      %v3211 = vpack.c.b16 %v3159, %v3155
      %v3212 = vpack.c.b16 %v3160, %v3156
      %v3213 = vpack.c.b16 %v3161, %v3157
      %v3214 = vpack.c.b16 %v3162, %v3158
      %v3215 = vpack.c.b16 %v3167, %v3163
      %v3216 = vpack.c.b16 %v3168, %v3164
      %v3217 = vpack.c.b16 %v3169, %v3165
      %v3218 = vpack.c.b16 %v3170, %v3166
      %v3219 = vpack.c.b16 %v3175, %v3171
      %v3220 = vpack.c.b16 %v3176, %v3172
      %v3221 = vpack.c.b16 %v3177, %v3173
      %v3222 = vpack.c.b16 %v3178, %v3174
      %v3223 = vpack.c.b16 %v3183, %v3179
      %v3224 = vpack.c.b16 %v3184, %v3180
      %v3225 = vpack.c.b16 %v3185, %v3181
      %v3226 = vpack.c.b16 %v3186, %v3182
      %v3227 = vpack.c.b16 %v3191, %v3187
      %v3228 = vpack.c.b16 %v3192, %v3188
      %v3229 = vpack.c.b16 %v3193, %v3189
      %v3230 = vpack.c.b16 %v3194, %v3190
      %v3231 = vpack.c.b16 %v3199, %v3195
      %v3232 = vpack.c.b16 %v3200, %v3196
      %v3233 = vpack.c.b16 %v3201, %v3197
      %v3234 = vpack.c.b16 %v3202, %v3198
      %3267 = vmatpush.bf16.msra.mxu0 %v3231
      %3268 = vmatpush.bf16.msra.mxu0 %v3227
      %3269 = vmatpush.bf16.msra.mxu0 %v3223
      %3270 = vmatpush.bf16.msra.mxu0 %v3219
      %3271 = vmatpush.bf16.msra.mxu0 %v3215
      %3272 = vmatpush.bf16.msra.mxu0 %v3211
      %3273 = vmatpush.bf16.msra.mxu0 %v3207
      %3274 = vmatpush.bf16.msra.mxu0 %v3203
      %3275 = vmatmul.bf16.gmra.mxu0 %v3069
      %v3276 = vpop.f32.mrf.mxu0
      %v3277 = vadd.f32 0.0, %v3276
      %v3278 = vpop.f32.mrf.mxu0
      %3279 = vdwg.mxu0
      %3280 = vmatpush.bf16.msra.mxu0 %v3232
      %3281 = vmatpush.bf16.msra.mxu0 %v3228
      %3282 = vmatpush.bf16.msra.mxu0 %v3224
      %3283 = vmatpush.bf16.msra.mxu0 %v3220
      %3284 = vmatpush.bf16.msra.mxu0 %v3216
      %3285 = vmatpush.bf16.msra.mxu0 %v3212
      %3286 = vmatpush.bf16.msra.mxu0 %v3208
      %3287 = vmatpush.bf16.msra.mxu0 %v3204
      %3288 = vmatmul.bf16.gmra.mxu0 %v3069
      %v3289 = vpop.f32.mrf.mxu0
      %v3290 = vadd.f32 0.0, %v3289
      %v3291 = vpop.f32.mrf.mxu0
      %3292 = vdwg.mxu0
      %3293 = vmatpush.bf16.msra.mxu0 %v3233
      %3294 = vmatpush.bf16.msra.mxu0 %v3229
      %3295 = vmatpush.bf16.msra.mxu0 %v3225
      %3296 = vmatpush.bf16.msra.mxu0 %v3221
      %3297 = vmatpush.bf16.msra.mxu0 %v3217
      %3298 = vmatpush.bf16.msra.mxu0 %v3213
      %3299 = vmatpush.bf16.msra.mxu0 %v3209
      %3300 = vmatpush.bf16.msra.mxu0 %v3205
      %3301 = vmatmul.bf16.gmra.mxu0 %v3069
      %v3302 = vpop.f32.mrf.mxu0
      %v3303 = vadd.f32 0.0, %v3302
      %v3304 = vpop.f32.mrf.mxu0
      %3305 = vdwg.mxu0
      %3306 = vmatpush.bf16.msra.mxu0 %v3234
      %3307 = vmatpush.bf16.msra.mxu0 %v3230
      %3308 = vmatpush.bf16.msra.mxu0 %v3226
      %3309 = vmatpush.bf16.msra.mxu0 %v3222
      %3310 = vmatpush.bf16.msra.mxu0 %v3218
      %3311 = vmatpush.bf16.msra.mxu0 %v3214
      %3312 = vmatpush.bf16.msra.mxu0 %v3210
      %3313 = vmatpush.bf16.msra.mxu0 %v3206
      %3314 = vmatmul.bf16.gmra.mxu0 %v3069
      %v3315 = vpop.f32.mrf.mxu0
      %v3316 = vadd.f32 0.0, %v3315
      %v3317 = vpop.f32.mrf.mxu0
      %3318 = vdwg.mxu0
      %v3319 = vadd.f32 %v3071, %v3277
      %v3320 = vadd.f32 %v3072, %v3290
      %v3321 = vadd.f32 %v3073, %v3303
      %v3322 = vadd.f32 %v3074, %v3316
      %v3323 = vxor.u32 %v3319, 2147483648
      %v3324 = vxor.u32 %v3320, 2147483648
      %v3325 = vxor.u32 %v3321, 2147483648
      %v3326 = vmul.f32 %v3323, 1.442695
      %v3327 = vpow.pop %v3326
      %v3328 = vmul.f32 %v3324, 1.442695
      %v3329 = vpow.pop %v3328
      %v3330 = vmul.f32 %v3325, 1.442695
      %v3331 = vpow.pop %v3330
      %v3332 = vadd.f32 %v3327, 1.0
      %v3333 = vadd.f32 %v3329, 1.0
      %v3334 = vadd.f32 %v3331, 1.0
      %v3335 = vrcp.pop %v3332
      %v3336 = vmul.f32 %v3332, %v3335
      %v3337 = vsub.f32 1.0, %v3336
      %v3338 = vmul.f32 %v3335, %v3337
      %v3339 = vadd.f32 %v3335, %v3338
      %vm3340 = vweird.f32 %v3332
      %vm3341 = vweird.f32 %v3335
      %vm3342 = vmor %vm3340, %vm3341
      %v3343 = vsel %vm3342, %v3335, %v3339
      %v3344 = vand.u32 2147483647, %v3332
      %vm3345 = vcmp.eq.f32.partialorder %v3344, 8.507059e+37
      %v3346 = vand.u32 %v3332, 2147483648
      %v3347 = vor.u32 1.1754944e-38, %v3346
      %v3348 = vsel %vm3345, %v3347, %v3343
      %v3349 = vmul.f32 1.0, %v3348
      %v3350 = vrcp.pop %v3333
      %v3351 = vmul.f32 %v3333, %v3350
      %v3352 = vsub.f32 1.0, %v3351
      %v3353 = vmul.f32 %v3350, %v3352
      %v3354 = vadd.f32 %v3350, %v3353
      %vm3355 = vweird.f32 %v3333
      %vm3356 = vweird.f32 %v3350
      %vm3357 = vmor %vm3355, %vm3356
      %v3358 = vsel %vm3357, %v3350, %v3354
      %v3359 = vand.u32 2147483647, %v3333
      %vm3360 = vcmp.eq.f32.partialorder %v3359, 8.507059e+37
      %v3361 = vand.u32 %v3333, 2147483648
      %v3362 = vor.u32 1.1754944e-38, %v3361
      %v3363 = vsel %vm3360, %v3362, %v3358
      %v3364 = vmul.f32 1.0, %v3363
      %v3365 = vrcp.pop %v3334
      %v3366 = vmul.f32 %v3334, %v3365
      %v3367 = vsub.f32 1.0, %v3366
      %v3368 = vmul.f32 %v3365, %v3367
      %v3369 = vadd.f32 %v3365, %v3368
      %vm3370 = vweird.f32 %v3334
      %vm3371 = vweird.f32 %v3365
      %vm3372 = vmor %vm3370, %vm3371
      %v3373 = vsel %vm3372, %v3365, %v3369
      %v3374 = vand.u32 2147483647, %v3334
      %vm3375 = vcmp.eq.f32.partialorder %v3374, 8.507059e+37
      %v3376 = vand.u32 %v3334, 2147483648
      %v3377 = vor.u32 1.1754944e-38, %v3376
      %v3378 = vsel %vm3375, %v3377, %v3373
      %v3379 = vmul.f32 1.0, %v3378
      %v3380 = vtanh.pop %v3322
      %v3381 = vmul.f32 %v3364, %v3066
      %v3382 = vmul.f32 %v3349, %v3380
      %v3383 = vadd.f32 %v3381, %v3382
      %v3384 = vtanh.pop %v3383
      %v3385 = vmul.f32 %v3379, %v3384
      %v3386 = vpack.c.bf16 %v3385, %v3385
      %3387 = vst [vmem:[%s1800] sm:$0xf] %v3386
      %v3388 = vunpack.c.l.bf16 %v3386
      %3389 = vst [vmem:[%s2115] sm:$0xff] %v3388
      %3390 = vst [vmem:[%s2118] sm:$0xff] %v3383
      %v3391 = vld [vmem:[#allocation3] sm:$0xf]
      %v3392 = vld [vmem:[#allocation3 + $0x4] sm:$0xf]
      %v3393 = vld [vmem:[#allocation3 + $0x8] sm:$0xf]
      %v3394 = vld [vmem:[#allocation3 + $0xc] sm:$0xf]
      %v3395 = vld [vmem:[%s7] sm:$0xf]
      %v3396 = vld [vmem:[%s7 + $0x4] sm:$0xf]
      %v3397 = vld [vmem:[%s7 + $0x8] sm:$0xf]
      %v3398 = vld [vmem:[%s7 + $0xc] sm:$0xf]
      %v3399 = vld [vmem:[%s7 + $0x10] sm:$0xf]
      %v3400 = vld [vmem:[%s7 + $0x14] sm:$0xf]
      %v3401 = vld [vmem:[%s7 + $0x18] sm:$0xf]
      %v3402 = vld [vmem:[%s7 + $0x1c] sm:$0xf]
      %v3403 = vld [vmem:[%s7 + $0x20] sm:$0xf]
      %v3404 = vld [vmem:[%s7 + $0x24] sm:$0xf]
      %v3405 = vld [vmem:[%s7 + $0x28] sm:$0xf]
      %v3406 = vld [vmem:[%s7 + $0x2c] sm:$0xf]
      %v3407 = vld [vmem:[%s7 + $0x30] sm:$0xf]
      %v3408 = vld [vmem:[%s7 + $0x34] sm:$0xf]
      %v3409 = vld [vmem:[%s7 + $0x38] sm:$0xf]
      %v3410 = vld [vmem:[%s7 + $0x3c] sm:$0xf]
      %v3411 = vld [vmem:[%s8] sm:$0x1]
      %v3413 = vperm.slane %v3411, 0
      %v3419 = vunpack.c.l.b16 %v3391
      %v3420 = vunpack.c.l.b16 %v3392
      %v3421 = vunpack.c.l.b16 %v3393
      %v3422 = vunpack.c.l.b16 %v3394
      %v3423 = vpack.c.b16 %v3420, %v3419
      %v3424 = vpack.c.b16 %v3422, %v3421
      %v3443 = vunpack.c.l.b16 %v3395
      %v3444 = vunpack.c.l.b16 %v3396
      %v3445 = vunpack.c.l.b16 %v3397
      %v3446 = vunpack.c.l.b16 %v3398
      %v3447 = vunpack.c.l.b16 %v3399
      %v3448 = vunpack.c.l.b16 %v3400
      %v3449 = vunpack.c.l.b16 %v3401
      %v3450 = vunpack.c.l.b16 %v3402
      %v3451 = vunpack.c.l.b16 %v3403
      %v3452 = vunpack.c.l.b16 %v3404
      %v3453 = vunpack.c.l.b16 %v3405
      %v3454 = vunpack.c.l.b16 %v3406
      %v3455 = vunpack.c.l.b16 %v3407
      %v3456 = vunpack.c.l.b16 %v3408
      %v3457 = vunpack.c.l.b16 %v3409
      %v3458 = vunpack.c.l.b16 %v3410
      %v3459 = vpack.c.b16 %v3444, %v3443
      %v3460 = vpack.c.b16 %v3446, %v3445
      %v3461 = vpack.c.b16 %v3448, %v3447
      %v3462 = vpack.c.b16 %v3450, %v3449
      %v3463 = vpack.c.b16 %v3452, %v3451
      %v3464 = vpack.c.b16 %v3454, %v3453
      %v3465 = vpack.c.b16 %v3456, %v3455
      %v3466 = vpack.c.b16 %v3458, %v3457
      %3475 = vmatpush.bf16.msra.mxu0 %v3466
      %3476 = vmatpush.bf16.msra.mxu0 %v3465
      %3477 = vmatpush.bf16.msra.mxu0 %v3464
      %3478 = vmatpush.bf16.msra.mxu0 %v3463
      %3479 = vmatpush.bf16.msra.mxu0 %v3462
      %3480 = vmatpush.bf16.msra.mxu0 %v3461
      %3481 = vmatpush.bf16.msra.mxu0 %v3460
      %3482 = vmatpush.bf16.msra.mxu0 %v3459
      %3483 = vmatmul.bf16.gmra.mxu0 %v3423
      %v3484 = vpop.f32.mrf.mxu0
      %v3485 = vadd.f32 %v3413, %v3484
      %v3486 = vpop.f32.mrf.mxu0
      %v3487 = vadd.f32 %v3413, %v3486
      %3488 = vmatmul.bf16.gmra.mxu0 %v3424
      %v3489 = vpop.f32.mrf.mxu0
      %v3490 = vadd.f32 %v3413, %v3489
      %v3491 = vpop.f32.mrf.mxu0
      %v3492 = vadd.f32 %v3413, %v3491
      %3493 = vdwg.mxu0
      %3494 = vst [vmem:[%s334] sm:$0xff] %v3485
      %3495 = vst [vmem:[%s334 + $0x8] sm:$0xff] %v3487
      %3496 = vst [vmem:[%s334 + $0x10] sm:$0xff] %v3490
      %3497 = vst [vmem:[%s334 + $0x18] sm:$0xff] %v3492
      %s3498 = smul.u32 4, %s20
      %p3499 = scmp.lt.s32.totalorder %s3498, 7
      %s3500 = scalar_select %p3499, %s3498, 7
      %s3501 = smul.addr %s3500, 8
      %s3502 = scalar_lea.vmem %s9, %s3501
      // Predicated region
      $region61: #{lstm_model_forward.1} parent=55 // pred_check
        %p3503 = pneg %p232
      $region62: #{lstm_model_forward.1} parent=55 // pred_check_branch
        %3505 = sbr.rel (%p3503) target = $region64
      $region63: #{lstm_model_forward.1} parent=55 // pred_region
        %s3506 = smul.u32 4, %s20
      $region64: #{lstm_model_forward.1} parent=55 // pred_fallthru
        _
    $region56: #{lstm_model_forward.1} parent=5 // pred_fallthru
      _
    %p3507 = scmp.le.s32.totalorder 2, %s15
    // Predicated region
    $region65: #{lstm_model_forward.1} parent=5 // pred_check
      %p3508 = pneg %p3507
    $region66: #{lstm_model_forward.1} parent=5 // pred_check_branch
      %3510 = sbr.rel (%p3508) target = $region68
    $region67: #{lstm_model_forward.1} parent=5 // pred_region
      %s3511 = ssub.s32 %s15, 2
      // Predicated region
      $region69: #{lstm_model_forward.1} parent=67 // pred_check
        %p3512 = pneg %p238
      $region70: #{lstm_model_forward.1} parent=67 // pred_check_branch
        %3514 = sbr.rel (%p3512) target = $region72
      $region71: #{lstm_model_forward.1} parent=67 // pred_region
        %s3515 = smul.u32 4, %s21
        %p3516 = scmp.lt.s32.totalorder %s3515, 7
        %s3517 = scalar_select %p3516, %s3515, 7
        %s3518 = smul.addr %s3517, 8
        %s3519 = scalar_lea.vmem %s9, %s3518
      $region72: #{lstm_model_forward.1} parent=67 // pred_fallthru
        _
    $region68: #{lstm_model_forward.1} parent=5 // pred_fallthru
      _
  $region6: #{lstm_model_forward.1} parent=0 // loop_footer
    %s19 = sadd.s32 1, %s15
  $region7: #{lstm_model_forward.1} parent=0 // loop_footer_branch
    %14 = sbr.rel target = $region3
  $region8: #{lstm_model_forward.1} parent=0 // loop_exit
    _

</llo_original>
